<compile_context>
chip_gen: v7x
topology: tpu7x:2x2x1
jax: 0.10.0
libtpu: 0.0.40
codegen_flags: <defaults>
</compile_context>

<pallas_src>
import math
import jax
import jax.numpy as jnp
from jax.experimental import pallas as pl
from jax.experimental.pallas import tpu as pltpu

CIN_PAD = 64     # layer-1 input channels padded to 64 -> K = 2*64 = 128
OUT_PAD = 128    # lane-dense output block; sliced to num_classes in wrapper
BIAS_W = 512     # bias table lane width (max layer width)
BIAS_ROWS = 16   # 10 layers, padded up to a sublane multiple


def vgg_mimo_kernel(x_ref, w12, w3, w4, w5, w67f1, wf2, wf3, b_ref, out_ref):
    """Whole network as 10 z @ W matmuls on one (TILE_B, .) activation slab."""

    def dense(z, w, brow, width, relu=True):
        # bf16 operands into the MXU, f32 accumulate; bias/ReLU stay f32.
        y = jnp.dot(z.astype(jnp.bfloat16), w,
                    preferred_element_type=jnp.float32)
        y = y + b_ref[pl.ds(brow, 1), pl.ds(0, width)]
        return jnp.maximum(y, 0.0) if relu else y

    z = x_ref[...]                                  # (TILE_B, 128) f32
    z = dense(z, w12[0], 0, 128)                    # conv1 + BN + ReLU (Toeplitz)
    z = dense(z, w12[1], 1, 128)                    # conv2
    z = dense(z, w3[...], 2, 256)                   # conv3
    z = dense(z, w4[...], 3, 256)                   # conv4
    z = dense(z, w5[...], 4, 512)                   # conv5
    z = dense(z, w67f1[0], 5, 512)                  # conv6
    z = dense(z, w67f1[1], 6, 512)                  # conv7
    # Flatten: z is already [pos0-channels | pos1-channels]; torch's
    # channel-major flatten order is absorbed into fc1's column permutation.
    z = dense(z, w67f1[2], 7, 512)                  # fc1 + ReLU
    # TODO(synk): Dropout(0.5) is identity in eval mode; training-mode RNG masking not implemented.
    z = dense(z, wf2[...], 8, 256)                  # fc2 + ReLU
    z = dense(z, wf3[...], 9, OUT_PAD, relu=False)  # fc3 (lane-padded)
    out_ref[...] = jax.nn.sigmoid(z)


def _fold_bn(w, b, gamma, beta, mean, var, eps=1e-5):
    """Fold BatchNorm1d (eval-mode running stats) into the preceding conv."""
    scale = gamma / jnp.sqrt(var + eps)
    return w * scale[:, None, None], (b - mean) * scale + beta


def _toeplitz(w_folded, cin_pad):
    """(cout, cin, 3) torch conv weight -> (2*cin_pad, 2*cout) block-Toeplitz
    matrix for seq_len=2, padding=1:  [o0|o1] = [h0|h1] @ [[w1, w0],
                                                           [w2, w1]]."""
    cout, cin, _ = w_folded.shape
    taps = jnp.transpose(w_folded, (2, 1, 0))            # (3, cin, cout)
    if cin < cin_pad:
        taps = jnp.pad(taps, ((0, 0), (0, cin_pad - cin), (0, 0)))
    w0, w1, w2 = taps[0], taps[1], taps[2]
    top = jnp.concatenate([w1, w0], axis=1)
    bot = jnp.concatenate([w2, w1], axis=1)
    return jnp.concatenate([top, bot], axis=0)


def init_params(key, in_channels=2, num_classes=8):
    """Deterministic params matching VGGForMIMO.__init__ (tx=2, rx=1),
    pre-packed for the kernel (block-Toeplitz convs, bf16, shape-grouped)."""
    conv_channels = [in_channels, 64, 64, 128, 128, 256, 256, 256]
    eps = 1e-5
    keys = jax.random.split(key, 10)

    toeps, bias_rows = [], []
    for i in range(7):
        cin, cout = conv_channels[i], conv_channels[i + 1]
        std = math.sqrt(2.0 / (cout * 3))        # kaiming_normal_, fan_out, relu
        w = std * jax.random.normal(keys[i], (cout, cin, 3), dtype=jnp.float32)
        b = jnp.zeros((cout,), jnp.float32)
        # Fresh BatchNorm1d in eval mode: gamma=1, beta=0, mean=0, var=1.
        gamma, beta = jnp.ones((cout,)), jnp.zeros((cout,))
        mean, var = jnp.zeros((cout,)), jnp.ones((cout,))
        w_f, b_f = _fold_bn(w, b, gamma, beta, mean, var, eps)
        toeps.append(_toeplitz(w_f, CIN_PAD if i == 0 else cin))
        bpair = jnp.concatenate([b_f, b_f])       # bias for [o0 | o1]
        bias_rows.append(jnp.pad(bpair, (0, BIAS_W - 2 * cout)))

    # Linear layers: torch weight (out, in) ~ N(0, 0.01), bias 0.
    fc_dims = [(512, 256 * 2), (256, 512), (num_classes, 256)]
    fcs = []
    for j, (dout, din) in enumerate(fc_dims):
        w = 0.01 * jax.random.normal(keys[7 + j], (dout, din), dtype=jnp.float32)
        fcs.append((w, jnp.zeros((dout,), jnp.float32)))

    # fc1 column permutation: kernel flatten j = l*256 + c  <->  torch c*2 + l.
    C, L = 256, 2
    idx = jnp.arange(L * C)
    perm = (idx % C) * L + (idx // C)
    fcs[0] = (fcs[0][0][:, perm], fcs[0][1])

    wf1 = jnp.transpose(fcs[0][0])                                    # (512, 512)
    wf2 = jnp.transpose(fcs[1][0])                                    # (512, 256)
    wf3 = jnp.pad(jnp.transpose(fcs[2][0]),
                  ((0, 0), (0, OUT_PAD - num_classes)))               # (256, 128)
    bias_rows.append(jnp.pad(fcs[0][1], (0, BIAS_W - 512)))
    bias_rows.append(jnp.pad(fcs[1][1], (0, BIAS_W - 256)))
    bias_rows.append(jnp.pad(fcs[2][1], (0, BIAS_W - num_classes)))

    biases = jnp.zeros((BIAS_ROWS, BIAS_W), jnp.float32)
    biases = biases.at[:len(bias_rows)].set(jnp.stack(bias_rows))

    bf16 = jnp.bfloat16
    w12 = jnp.stack([toeps[0], toeps[1]]).astype(bf16)         # (2, 128, 128)
    w3 = toeps[2].astype(bf16)                                 # (128, 256)
    w4 = toeps[3].astype(bf16)                                 # (256, 256)
    w5 = toeps[4].astype(bf16)                                 # (256, 512)
    w67f1 = jnp.stack([toeps[5], toeps[6], wf1]).astype(bf16)  # (3, 512, 512)
    return (w12, w3, w4, w5, w67f1, wf2.astype(bf16), wf3.astype(bf16), biases)


def vgg_mimo_forward(x_ncl, params, num_classes=8):
    """x_ncl: PyTorch-convention input (B, C_in, L=2)."""
    w12, w3, w4, w5, w67f1, wf2, wf3, biases = params
    B, C, L = x_ncl.shape
    assert L == 2, "classifier's Linear(256*2, 512) requires seq_len == 2"
    assert C <= CIN_PAD

    # Pack into the Toeplitz activation layout: (B, [pos0 chans | pos1 chans]).
    x = jnp.transpose(x_ncl, (0, 2, 1)).astype(jnp.float32)     # (B, L, C)
    x = jnp.pad(x, ((0, 0), (0, 0), (0, CIN_PAD - C)))          # (B, L, 64)
    x = x.reshape(B, L * CIN_PAD)                               # (B, 128)

    # Batch tile: multiple of 8 sublanes, up to 256 rows (v6e/v7x MXU height).
    b8 = ((B + 7) // 8) * 8
    tile_b = min(256, b8)
    b_pad = ((B + tile_b - 1) // tile_b) * tile_b
    if b_pad > B:
        x = jnp.pad(x, ((0, b_pad - B), (0, 0)))

    const2 = lambda i: (0, 0)
    const3 = lambda i: (0, 0, 0)
    grid_spec = pltpu.PrefetchScalarGridSpec(
        num_scalar_prefetch=0,
        grid=(b_pad // tile_b,),
        in_specs=[
            pl.BlockSpec((tile_b, 2 * CIN_PAD), lambda i: (i, 0)),   # x
            pl.BlockSpec(w12.shape, const3),                         # conv1,2
            pl.BlockSpec(w3.shape, const2),                          # conv3
            pl.BlockSpec(w4.shape, const2),                          # conv4
            pl.BlockSpec(w5.shape, const2),                          # conv5
            pl.BlockSpec(w67f1.shape, const3),                       # conv6,7+fc1
            pl.BlockSpec(wf2.shape, const2),                         # fc2
            pl.BlockSpec(wf3.shape, const2),                         # fc3 (padded)
            pl.BlockSpec(biases.shape, const2),                      # bias table
        ],
        out_specs=pl.BlockSpec((tile_b, OUT_PAD), lambda i: (i, 0)),
    )
    out = pl.pallas_call(
        vgg_mimo_kernel,
        out_shape=jax.ShapeDtypeStruct((b_pad, OUT_PAD), jnp.float32),
        grid_spec=grid_spec,
        compiler_params=pltpu.CompilerParams(
            dimension_semantics=("parallel",)),
    )(x, w12, w3, w4, w5, w67f1, wf2, wf3, biases)
    return out[:B, :num_classes]


if __name__ == "__main__":
    key = jax.random.PRNGKey(0)
    k_params, k_x = jax.random.split(key)

    B, C_in, L, num_classes = 4, 2, 2, 8          # tx=2, rx=1 -> actual_in_channels=2
    params = init_params(k_params, in_channels=C_in, num_classes=num_classes)
    x = jax.random.normal(k_x, (B, C_in, L), dtype=jnp.float32)   # PyTorch NCL input

    y = vgg_mimo_forward(x, params, num_classes=num_classes)
    y = jax.block_until_ready(y)

    assert y.shape == (B, num_classes)
    assert bool(jnp.all(jnp.isfinite(y))) and bool(jnp.all((y >= 0.0) & (y <= 1.0)))
    print("KERNEL_OK")
</pallas_src>

<mosaic_0001>
module attributes {stable_mosaic.version = 11 : i64} {
  func.func @vgg_mimo_kernel(%arg0: i32, %arg1: memref<8x128xf32, #tpu.memory_space<vmem>>, %arg2: memref<2x128x128xbf16, #tpu.memory_space<vmem>>, %arg3: memref<128x256xbf16, #tpu.memory_space<vmem>>, %arg4: memref<256x256xbf16, #tpu.memory_space<vmem>>, %arg5: memref<256x512xbf16, #tpu.memory_space<vmem>>, %arg6: memref<3x512x512xbf16, #tpu.memory_space<vmem>>, %arg7: memref<512x256xbf16, #tpu.memory_space<vmem>>, %arg8: memref<256x128xbf16, #tpu.memory_space<vmem>>, %arg9: memref<16x512xf32, #tpu.memory_space<vmem>>, %arg10: memref<8x128xf32, #tpu.memory_space<vmem>>) attributes {dimension_semantics = [#tpu.dimension_semantics<parallel>], iteration_bounds = array<i64: 1>, scalar_prefetch = 0 : i64, scratch_operands = 0 : i64, tpu.core_type = #tpu.core_type<tc>, window_params = [{transform_indices = @transform_0, window_bounds = array<i64: 8, 128>}, {pipeline_mode = #tpu.pipeline_mode<synchronous>, transform_indices = @transform_1, window_bounds = array<i64: 2, 128, 128>}, {pipeline_mode = #tpu.pipeline_mode<synchronous>, transform_indices = @transform_2, window_bounds = array<i64: 128, 256>}, {pipeline_mode = #tpu.pipeline_mode<synchronous>, transform_indices = @transform_3, window_bounds = array<i64: 256, 256>}, {pipeline_mode = #tpu.pipeline_mode<synchronous>, transform_indices = @transform_4, window_bounds = array<i64: 256, 512>}, {pipeline_mode = #tpu.pipeline_mode<synchronous>, transform_indices = @transform_5, window_bounds = array<i64: 3, 512, 512>}, {pipeline_mode = #tpu.pipeline_mode<synchronous>, transform_indices = @transform_6, window_bounds = array<i64: 512, 256>}, {pipeline_mode = #tpu.pipeline_mode<synchronous>, transform_indices = @transform_7, window_bounds = array<i64: 256, 128>}, {pipeline_mode = #tpu.pipeline_mode<synchronous>, transform_indices = @transform_8, window_bounds = array<i64: 16, 512>}, {transform_indices = @transform_9, window_bounds = array<i64: 8, 128>}]} {
    %c0 = arith.constant 0 : index
    %c0_0 = arith.constant 0 : index
    %0 = vector.load %arg1[%c0, %c0_0] : memref<8x128xf32, #tpu.memory_space<vmem>>, vector<8x128xf32>
    %c0_1 = arith.constant 0 : index
    %c0_2 = arith.constant 0 : index
    %c0_3 = arith.constant 0 : index
    %1 = vector.load %arg2[%c0_1, %c0_2, %c0_3] : memref<2x128x128xbf16, #tpu.memory_space<vmem>>, vector<1x128x128xbf16>
    %2 = vector.shape_cast %1 : vector<1x128x128xbf16> to vector<128x128xbf16>
    %3 = arith.truncf %0 : vector<8x128xf32> to vector<8x128xbf16>
    %cst = arith.constant dense<0.000000e+00> : vector<8x128xf32>
    %4 = tpu.matmul %3, %2, %cst {dimension_numbers = #tpu.dot_dimension_numbers<[1], [0], [0], [1], [0, 0, 1, 1], [], []>} : vector<8x128xbf16>, vector<128x128xbf16>, vector<8x128xf32> -> vector<8x128xf32>
    %c0_4 = arith.constant 0 : index
    %c0_5 = arith.constant 0 : index
    %5 = vector.load %arg9[%c0_4, %c0_5] : memref<16x512xf32, #tpu.memory_space<vmem>>, vector<1x128xf32>
    %6 = vector.broadcast %5 : vector<1x128xf32> to vector<8x128xf32>
    %7 = arith.addf %4, %6 : vector<8x128xf32>
    %cst_6 = arith.constant 0.000000e+00 : f32
    %8 = vector.broadcast %cst_6 : f32 to vector<8x128xf32>
    %9 = arith.maximumf %7, %8 : vector<8x128xf32>
    %c1 = arith.constant 1 : index
    %c0_7 = arith.constant 0 : index
    %c0_8 = arith.constant 0 : index
    %10 = vector.load %arg2[%c1, %c0_7, %c0_8] : memref<2x128x128xbf16, #tpu.memory_space<vmem>>, vector<1x128x128xbf16>
    %11 = vector.shape_cast %10 : vector<1x128x128xbf16> to vector<128x128xbf16>
    %12 = arith.truncf %9 : vector<8x128xf32> to vector<8x128xbf16>
    %cst_9 = arith.constant dense<0.000000e+00> : vector<8x128xf32>
    %13 = tpu.matmul %12, %11, %cst_9 {dimension_numbers = #tpu.dot_dimension_numbers<[1], [0], [0], [1], [0, 0, 1, 1], [], []>} : vector<8x128xbf16>, vector<128x128xbf16>, vector<8x128xf32> -> vector<8x128xf32>
    %c1_10 = arith.constant 1 : index
    %c0_11 = arith.constant 0 : index
    %14 = vector.load %arg9[%c1_10, %c0_11] : memref<16x512xf32, #tpu.memory_space<vmem>>, vector<1x128xf32>
    %15 = vector.broadcast %14 : vector<1x128xf32> to vector<8x128xf32>
    %16 = arith.addf %13, %15 : vector<8x128xf32>
    %cst_12 = arith.constant 0.000000e+00 : f32
    %17 = vector.broadcast %cst_12 : f32 to vector<8x128xf32>
    %18 = arith.maximumf %16, %17 : vector<8x128xf32>
    %c0_13 = arith.constant 0 : index
    %c0_14 = arith.constant 0 : index
    %19 = vector.load %arg3[%c0_13, %c0_14] : memref<128x256xbf16, #tpu.memory_space<vmem>>, vector<128x256xbf16>
    %20 = arith.truncf %18 : vector<8x128xf32> to vector<8x128xbf16>
    %cst_15 = arith.constant dense<0.000000e+00> : vector<8x256xf32>
    %21 = tpu.matmul %20, %19, %cst_15 {dimension_numbers = #tpu.dot_dimension_numbers<[1], [0], [0], [1], [0, 0, 1, 1], [], []>} : vector<8x128xbf16>, vector<128x256xbf16>, vector<8x256xf32> -> vector<8x256xf32>
    %c2 = arith.constant 2 : index
    %c0_16 = arith.constant 0 : index
    %22 = vector.load %arg9[%c2, %c0_16] : memref<16x512xf32, #tpu.memory_space<vmem>>, vector<1x256xf32>
    %23 = vector.broadcast %22 : vector<1x256xf32> to vector<8x256xf32>
    %24 = arith.addf %21, %23 : vector<8x256xf32>
    %cst_17 = arith.constant 0.000000e+00 : f32
    %25 = vector.broadcast %cst_17 : f32 to vector<8x256xf32>
    %26 = arith.maximumf %24, %25 : vector<8x256xf32>
    %c0_18 = arith.constant 0 : index
    %c0_19 = arith.constant 0 : index
    %27 = vector.load %arg4[%c0_18, %c0_19] : memref<256x256xbf16, #tpu.memory_space<vmem>>, vector<256x256xbf16>
    %28 = arith.truncf %26 : vector<8x256xf32> to vector<8x256xbf16>
    %cst_20 = arith.constant dense<0.000000e+00> : vector<8x256xf32>
    %29 = tpu.matmul %28, %27, %cst_20 {dimension_numbers = #tpu.dot_dimension_numbers<[1], [0], [0], [1], [0, 0, 1, 1], [], []>} : vector<8x256xbf16>, vector<256x256xbf16>, vector<8x256xf32> -> vector<8x256xf32>
    %c3 = arith.constant 3 : index
    %c0_21 = arith.constant 0 : index
    %30 = vector.load %arg9[%c3, %c0_21] : memref<16x512xf32, #tpu.memory_space<vmem>>, vector<1x256xf32>
    %31 = vector.broadcast %30 : vector<1x256xf32> to vector<8x256xf32>
    %32 = arith.addf %29, %31 : vector<8x256xf32>
    %cst_22 = arith.constant 0.000000e+00 : f32
    %33 = vector.broadcast %cst_22 : f32 to vector<8x256xf32>
    %34 = arith.maximumf %32, %33 : vector<8x256xf32>
    %c0_23 = arith.constant 0 : index
    %c0_24 = arith.constant 0 : index
    %35 = vector.load %arg5[%c0_23, %c0_24] : memref<256x512xbf16, #tpu.memory_space<vmem>>, vector<256x512xbf16>
    %36 = arith.truncf %34 : vector<8x256xf32> to vector<8x256xbf16>
    %cst_25 = arith.constant dense<0.000000e+00> : vector<8x512xf32>
    %37 = tpu.matmul %36, %35, %cst_25 {dimension_numbers = #tpu.dot_dimension_numbers<[1], [0], [0], [1], [0, 0, 1, 1], [], []>} : vector<8x256xbf16>, vector<256x512xbf16>, vector<8x512xf32> -> vector<8x512xf32>
    %c4 = arith.constant 4 : index
    %c0_26 = arith.constant 0 : index
    %38 = vector.load %arg9[%c4, %c0_26] : memref<16x512xf32, #tpu.memory_space<vmem>>, vector<1x512xf32>
    %39 = vector.broadcast %38 : vector<1x512xf32> to vector<8x512xf32>
    %40 = arith.addf %37, %39 : vector<8x512xf32>
    %cst_27 = arith.constant 0.000000e+00 : f32
    %41 = vector.broadcast %cst_27 : f32 to vector<8x512xf32>
    %42 = arith.maximumf %40, %41 : vector<8x512xf32>
    %c0_28 = arith.constant 0 : index
    %c0_29 = arith.constant 0 : index
    %c0_30 = arith.constant 0 : index
    %43 = vector.load %arg6[%c0_28, %c0_29, %c0_30] : memref<3x512x512xbf16, #tpu.memory_space<vmem>>, vector<1x512x512xbf16>
    %44 = vector.shape_cast %43 : vector<1x512x512xbf16> to vector<512x512xbf16>
    %45 = arith.truncf %42 : vector<8x512xf32> to vector<8x512xbf16>
    %cst_31 = arith.constant dense<0.000000e+00> : vector<8x512xf32>
    %46 = tpu.matmul %45, %44, %cst_31 {dimension_numbers = #tpu.dot_dimension_numbers<[1], [0], [0], [1], [0, 0, 1, 1], [], []>} : vector<8x512xbf16>, vector<512x512xbf16>, vector<8x512xf32> -> vector<8x512xf32>
    %c5 = arith.constant 5 : index
    %c0_32 = arith.constant 0 : index
    %47 = vector.load %arg9[%c5, %c0_32] : memref<16x512xf32, #tpu.memory_space<vmem>>, vector<1x512xf32>
    %48 = vector.broadcast %47 : vector<1x512xf32> to vector<8x512xf32>
    %49 = arith.addf %46, %48 : vector<8x512xf32>
    %cst_33 = arith.constant 0.000000e+00 : f32
    %50 = vector.broadcast %cst_33 : f32 to vector<8x512xf32>
    %51 = arith.maximumf %49, %50 : vector<8x512xf32>
    %c1_34 = arith.constant 1 : index
    %c0_35 = arith.constant 0 : index
    %c0_36 = arith.constant 0 : index
    %52 = vector.load %arg6[%c1_34, %c0_35, %c0_36] : memref<3x512x512xbf16, #tpu.memory_space<vmem>>, vector<1x512x512xbf16>
    %53 = vector.shape_cast %52 : vector<1x512x512xbf16> to vector<512x512xbf16>
    %54 = arith.truncf %51 : vector<8x512xf32> to vector<8x512xbf16>
    %cst_37 = arith.constant dense<0.000000e+00> : vector<8x512xf32>
    %55 = tpu.matmul %54, %53, %cst_37 {dimension_numbers = #tpu.dot_dimension_numbers<[1], [0], [0], [1], [0, 0, 1, 1], [], []>} : vector<8x512xbf16>, vector<512x512xbf16>, vector<8x512xf32> -> vector<8x512xf32>
    %c6 = arith.constant 6 : index
    %c0_38 = arith.constant 0 : index
    %56 = vector.load %arg9[%c6, %c0_38] : memref<16x512xf32, #tpu.memory_space<vmem>>, vector<1x512xf32>
    %57 = vector.broadcast %56 : vector<1x512xf32> to vector<8x512xf32>
    %58 = arith.addf %55, %57 : vector<8x512xf32>
    %cst_39 = arith.constant 0.000000e+00 : f32
    %59 = vector.broadcast %cst_39 : f32 to vector<8x512xf32>
    %60 = arith.maximumf %58, %59 : vector<8x512xf32>
    %c2_40 = arith.constant 2 : index
    %c0_41 = arith.constant 0 : index
    %c0_42 = arith.constant 0 : index
    %61 = vector.load %arg6[%c2_40, %c0_41, %c0_42] : memref<3x512x512xbf16, #tpu.memory_space<vmem>>, vector<1x512x512xbf16>
    %62 = vector.shape_cast %61 : vector<1x512x512xbf16> to vector<512x512xbf16>
    %63 = arith.truncf %60 : vector<8x512xf32> to vector<8x512xbf16>
    %cst_43 = arith.constant dense<0.000000e+00> : vector<8x512xf32>
    %64 = tpu.matmul %63, %62, %cst_43 {dimension_numbers = #tpu.dot_dimension_numbers<[1], [0], [0], [1], [0, 0, 1, 1], [], []>} : vector<8x512xbf16>, vector<512x512xbf16>, vector<8x512xf32> -> vector<8x512xf32>
    %c7 = arith.constant 7 : index
    %c0_44 = arith.constant 0 : index
    %65 = vector.load %arg9[%c7, %c0_44] : memref<16x512xf32, #tpu.memory_space<vmem>>, vector<1x512xf32>
    %66 = vector.broadcast %65 : vector<1x512xf32> to vector<8x512xf32>
    %67 = arith.addf %64, %66 : vector<8x512xf32>
    %cst_45 = arith.constant 0.000000e+00 : f32
    %68 = vector.broadcast %cst_45 : f32 to vector<8x512xf32>
    %69 = arith.maximumf %67, %68 : vector<8x512xf32>
    %c0_46 = arith.constant 0 : index
    %c0_47 = arith.constant 0 : index
    %70 = vector.load %arg7[%c0_46, %c0_47] : memref<512x256xbf16, #tpu.memory_space<vmem>>, vector<512x256xbf16>
    %71 = arith.truncf %69 : vector<8x512xf32> to vector<8x512xbf16>
    %cst_48 = arith.constant dense<0.000000e+00> : vector<8x256xf32>
    %72 = tpu.matmul %71, %70, %cst_48 {dimension_numbers = #tpu.dot_dimension_numbers<[1], [0], [0], [1], [0, 0, 1, 1], [], []>} : vector<8x512xbf16>, vector<512x256xbf16>, vector<8x256xf32> -> vector<8x256xf32>
    %c8 = arith.constant 8 : index
    %c0_49 = arith.constant 0 : index
    %73 = vector.load %arg9[%c8, %c0_49] : memref<16x512xf32, #tpu.memory_space<vmem>>, vector<1x256xf32>
    %74 = vector.broadcast %73 : vector<1x256xf32> to vector<8x256xf32>
    %75 = arith.addf %72, %74 : vector<8x256xf32>
    %cst_50 = arith.constant 0.000000e+00 : f32
    %76 = vector.broadcast %cst_50 : f32 to vector<8x256xf32>
    %77 = arith.maximumf %75, %76 : vector<8x256xf32>
    %c0_51 = arith.constant 0 : index
    %c0_52 = arith.constant 0 : index
    %78 = vector.load %arg8[%c0_51, %c0_52] : memref<256x128xbf16, #tpu.memory_space<vmem>>, vector<256x128xbf16>
    %79 = arith.truncf %77 : vector<8x256xf32> to vector<8x256xbf16>
    %cst_53 = arith.constant dense<0.000000e+00> : vector<8x128xf32>
    %80 = tpu.matmul %79, %78, %cst_53 {dimension_numbers = #tpu.dot_dimension_numbers<[1], [0], [0], [1], [0, 0, 1, 1], [], []>} : vector<8x256xbf16>, vector<256x128xbf16>, vector<8x128xf32> -> vector<8x128xf32>
    %c9 = arith.constant 9 : index
    %c0_54 = arith.constant 0 : index
    %81 = vector.load %arg9[%c9, %c0_54] : memref<16x512xf32, #tpu.memory_space<vmem>>, vector<1x128xf32>
    %82 = vector.broadcast %81 : vector<1x128xf32> to vector<8x128xf32>
    %83 = arith.addf %80, %82 : vector<8x128xf32>
    %84 = arith.negf %83 : vector<8x128xf32>
    %85 = math.exp %84 : vector<8x128xf32>
    %cst_55 = arith.constant 1.000000e+00 : f32
    %86 = vector.broadcast %cst_55 : f32 to vector<8x128xf32>
    %87 = arith.addf %86, %85 : vector<8x128xf32>
    %88 = arith.divf %86, %87 : vector<8x128xf32>
    %c0_56 = arith.constant 0 : index
    %c0_57 = arith.constant 0 : index
    %89 = vector.load %arg10[%c0_56, %c0_57] : memref<8x128xf32, #tpu.memory_space<vmem>>, vector<8x128xf32>
    tpu.vector_store %arg10[%c0_56, %c0_57], %88 {strides = array<i32>} : memref<8x128xf32, #tpu.memory_space<vmem>>, vector<8x128xf32>,
    return
  }
  func.func @transform_0(%arg0: i32) -> (i32, i32) {
    %c0_i32 = arith.constant 0 : i32
    %c0_i32_0 = arith.constant 0 : i32
    return %arg0, %c0_i32 : i32, i32
  }
  func.func @transform_1(%arg0: i32) -> (i32, i32, i32) {
    %c0_i32 = arith.constant 0 : i32
    %c0_i32_0 = arith.constant 0 : i32
    %c0_i32_1 = arith.constant 0 : i32
    %c0_i32_2 = arith.constant 0 : i32
    return %c0_i32, %c0_i32_0, %c0_i32_1 : i32, i32, i32
  }
  func.func @transform_2(%arg0: i32) -> (i32, i32) {
    %c0_i32 = arith.constant 0 : i32
    %c0_i32_0 = arith.constant 0 : i32
    %c0_i32_1 = arith.constant 0 : i32
    return %c0_i32, %c0_i32_0 : i32, i32
  }
  func.func @transform_3(%arg0: i32) -> (i32, i32) {
    %c0_i32 = arith.constant 0 : i32
    %c0_i32_0 = arith.constant 0 : i32
    %c0_i32_1 = arith.constant 0 : i32
    return %c0_i32, %c0_i32_0 : i32, i32
  }
  func.func @transform_4(%arg0: i32) -> (i32, i32) {
    %c0_i32 = arith.constant 0 : i32
    %c0_i32_0 = arith.constant 0 : i32
    %c0_i32_1 = arith.constant 0 : i32
    return %c0_i32, %c0_i32_0 : i32, i32
  }
  func.func @transform_5(%arg0: i32) -> (i32, i32, i32) {
    %c0_i32 = arith.constant 0 : i32
    %c0_i32_0 = arith.constant 0 : i32
    %c0_i32_1 = arith.constant 0 : i32
    %c0_i32_2 = arith.constant 0 : i32
    return %c0_i32, %c0_i32_0, %c0_i32_1 : i32, i32, i32
  }
  func.func @transform_6(%arg0: i32) -> (i32, i32) {
    %c0_i32 = arith.constant 0 : i32
    %c0_i32_0 = arith.constant 0 : i32
    %c0_i32_1 = arith.constant 0 : i32
    return %c0_i32, %c0_i32_0 : i32, i32
  }
  func.func @transform_7(%arg0: i32) -> (i32, i32) {
    %c0_i32 = arith.constant 0 : i32
    %c0_i32_0 = arith.constant 0 : i32
    %c0_i32_1 = arith.constant 0 : i32
    return %c0_i32, %c0_i32_0 : i32, i32
  }
  func.func @transform_8(%arg0: i32) -> (i32, i32) {
    %c0_i32 = arith.constant 0 : i32
    %c0_i32_0 = arith.constant 0 : i32
    %c0_i32_1 = arith.constant 0 : i32
    return %c0_i32, %c0_i32_0 : i32, i32
  }
  func.func @transform_9(%arg0: i32) -> (i32, i32) {
    %c0_i32 = arith.constant 0 : i32
    %c0_i32_0 = arith.constant 0 : i32
    return %arg0, %c0_i32 : i32, i32
  }
}

</mosaic_0001>

<llo_original>
// kernel: tpu_custom_call.1
$region0: #{tpu_custom_call.1}
  #allocation0 [shape = 'u32[]', space=smem, size = 0x4, offset = 0x4, fixed_abs, tag = 'smem constant byte address 0x4 - core index']
  #allocation1 [shape = 'u32[144,128]{1,0:T(1,128)}', space=vmem, size = 0x12000, scoped, tag = 'internal scratch']
  %s0 = inlined_call_operand.hbm [shape: f32[8,128], index: 0, kind: input, shape index: {}]
  %s1 = inlined_call_operand.hbm [shape: bf16[2,128,128], index: 1, kind: input, shape index: {}]
  %s2 = inlined_call_operand.hbm [shape: bf16[128,256], index: 2, kind: input, shape index: {}]
  %s3 = inlined_call_operand.hbm [shape: bf16[256,256], index: 3, kind: input, shape index: {}]
  %s4 = inlined_call_operand.hbm [shape: bf16[256,512], index: 4, kind: input, shape index: {}]
  %s5 = inlined_call_operand.hbm [shape: bf16[3,512,512], index: 5, kind: input, shape index: {}]
  %s6 = inlined_call_operand.hbm [shape: bf16[512,256], index: 6, kind: input, shape index: {}]
  %s7 = inlined_call_operand.hbm [shape: bf16[256,128], index: 7, kind: input, shape index: {}]
  %s8 = inlined_call_operand.hbm [shape: f32[16,512], index: 8, kind: input, shape index: {}]
  %s9 = inlined_call_operand.hbm [shape: f32[8,128], index: 9, kind: output, shape index: {}]
  %s10 = sld [smem:[#allocation0]]
  $region82: #{tpu_custom_call.1} parent=0
    _
  %s12 = ssub.s32 1, %s10
  %s13 = scalar_select 0, %s12, %s10
  $region1: #{tpu_custom_call.1} parent=0
    #allocation2 [shape = 'u8[4096]{0}', space=vmem, size = 0x1000, scoped, tag = 'input window, operand 0, single buffered']
    #allocation3 [shape = 's32[1]{0}', space=sflag, size = 0x4, scoped, tag = 'scoped memory for tpu_custom_call.1']
    #allocation4 [shape = 's32[1]{0}', space=sflag, size = 0x4, scoped, tag = 'scoped memory for tpu_custom_call.1']
    #allocation5 [shape = 'u8[65536]{0}', space=vmem, size = 0x10000, scoped, tag = 'input window, operand 1, single buffered']
    #allocation6 [shape = 's32[1]{0}', space=sflag, size = 0x4, scoped, tag = 'scoped memory for tpu_custom_call.1']
    #allocation7 [shape = 'u8[65536]{0}', space=vmem, size = 0x10000, scoped, tag = 'input window, operand 2, single buffered']
    #allocation8 [shape = 'u8[131072]{0}', space=vmem, size = 0x20000, scoped, tag = 'input window, operand 3, single buffered']
    #allocation9 [shape = 's32[1]{0}', space=sflag, size = 0x4, scoped, tag = 'scoped memory for tpu_custom_call.1']
    #allocation10 [shape = 'u8[262144]{0}', space=vmem, size = 0x40000, scoped, tag = 'input window, operand 4, single buffered']
    #allocation11 [shape = 'u8[1572864]{0}', space=vmem, size = 0x180000, scoped, tag = 'input window, operand 5, single buffered']
    #allocation12 [shape = 's32[1]{0}', space=sflag, size = 0x4, scoped, tag = 'scoped memory for tpu_custom_call.1']
    #allocation13 [shape = 'u8[262144]{0}', space=vmem, size = 0x40000, scoped, tag = 'input window, operand 6, single buffered']
    #allocation14 [shape = 'u8[65536]{0}', space=vmem, size = 0x10000, scoped, tag = 'input window, operand 7, single buffered']
    #allocation15 [shape = 's32[1]{0}', space=sflag, size = 0x4, scoped, tag = 'scoped memory for tpu_custom_call.1']
    #allocation16 [shape = 'u8[32768]{0}', space=vmem, size = 0x8000, scoped, tag = 'input window, operand 8, single buffered']
    #allocation17 [shape = 'u8[4096]{0}', space=vmem, size = 0x1000, scoped, tag = 'output window, operand 0, single buffered']
    %14 = vsyncpa [#allocation3], 0
    %15 = vsyncpa [#allocation6], 0
    %16 = vsyncpa [#allocation9], 0
    %17 = vsyncpa [#allocation12], 0
    %18 = vsyncpa [#allocation15], 0
    %19 = vsyncpa [#allocation4], 0
    // Predicated region
    $region2: #{tpu_custom_call.1} parent=1 // pred_check
      _
    $region3: #{tpu_custom_call.1} parent=1 // pred_check_branch
      %21 = sbr.rel (0) target = $region5
    $region4: #{tpu_custom_call.1} parent=1 // pred_region
      %s23 = ssub.s32 128, 128
      %24 = vsyncadd [#allocation3], %s23
      %s26 = sshll.u32 [#allocation2], 4
      %s27 = int_to_ptr.vmem [resolvable:$true] %s26
      %29 = dma.hbm_to_vmem [thread:$0]  %s0, 128, %s27, [#allocation3]
    $region5: #{tpu_custom_call.1} parent=1 // pred_fallthru
      _
    // Predicated region
    $region6: #{tpu_custom_call.1} parent=1 // pred_check
      _
    $region7: #{tpu_custom_call.1} parent=1 // pred_check_branch
      %31 = sbr.rel (0) target = $region9
    $region8: #{tpu_custom_call.1} parent=1 // pred_region
      %s33 = ssub.s32 2048, 2048
      %34 = vsyncadd [#allocation6], %s33
      %s35 = sshll.u32 [#allocation5], 4
      %s36 = int_to_ptr.vmem [resolvable:$true] %s35
      %41 = dma.hbm_to_vmem [thread:$0]  %s1, 2048, %s36, [#allocation6], 64, 64, 4
    $region9: #{tpu_custom_call.1} parent=1 // pred_fallthru
      _
    // Predicated region
    $region10: #{tpu_custom_call.1} parent=1 // pred_check
      _
    $region11: #{tpu_custom_call.1} parent=1 // pred_check_branch
      %43 = sbr.rel (0) target = $region13
    $region12: #{tpu_custom_call.1} parent=1 // pred_region
      %s45 = ssub.s32 2048, 2048
      %46 = vsyncadd [#allocation6], %s45
      %s47 = sshll.u32 [#allocation7], 4
      %s48 = int_to_ptr.vmem [resolvable:$true] %s47
      %53 = dma.hbm_to_vmem [thread:$0]  %s2, 2048, %s48, [#allocation6], 128, 128, 8
    $region13: #{tpu_custom_call.1} parent=1 // pred_fallthru
      _
    // Predicated region
    $region14: #{tpu_custom_call.1} parent=1 // pred_check
      _
    $region15: #{tpu_custom_call.1} parent=1 // pred_check_branch
      %55 = sbr.rel (0) target = $region17
    $region16: #{tpu_custom_call.1} parent=1 // pred_region
      %s57 = ssub.s32 4096, 4096
      %58 = vsyncadd [#allocation9], %s57
      %s59 = sshll.u32 [#allocation8], 4
      %s60 = int_to_ptr.vmem [resolvable:$true] %s59
      %65 = dma.hbm_to_vmem [thread:$0]  %s3, 4096, %s60, [#allocation9], 128, 128, 8
    $region17: #{tpu_custom_call.1} parent=1 // pred_fallthru
      _
    // Predicated region
    $region18: #{tpu_custom_call.1} parent=1 // pred_check
      _
    $region19: #{tpu_custom_call.1} parent=1 // pred_check_branch
      %67 = sbr.rel (0) target = $region21
    $region20: #{tpu_custom_call.1} parent=1 // pred_region
      %s69 = ssub.s32 8192, 8192
      %70 = vsyncadd [#allocation9], %s69
      %s71 = sshll.u32 [#allocation10], 4
      %s72 = int_to_ptr.vmem [resolvable:$true] %s71
      %77 = dma.hbm_to_vmem [thread:$0]  %s4, 8192, %s72, [#allocation9], 256, 256, 16
    $region21: #{tpu_custom_call.1} parent=1 // pred_fallthru
      _
    // Predicated region
    $region22: #{tpu_custom_call.1} parent=1 // pred_check
      _
    $region23: #{tpu_custom_call.1} parent=1 // pred_check_branch
      %79 = sbr.rel (0) target = $region25
    $region24: #{tpu_custom_call.1} parent=1 // pred_region
      %s81 = ssub.s32 49152, 49152
      %82 = vsyncadd [#allocation12], %s81
      %s83 = sshll.u32 [#allocation11], 4
      %s84 = int_to_ptr.vmem [resolvable:$true] %s83
      %89 = dma.hbm_to_vmem [thread:$0]  %s5, 49152, %s84, [#allocation12], 256, 256, 16
    $region25: #{tpu_custom_call.1} parent=1 // pred_fallthru
      _
    // Predicated region
    $region26: #{tpu_custom_call.1} parent=1 // pred_check
      _
    $region27: #{tpu_custom_call.1} parent=1 // pred_check_branch
      %91 = sbr.rel (0) target = $region29
    $region28: #{tpu_custom_call.1} parent=1 // pred_region
      %s93 = ssub.s32 8192, 8192
      %94 = vsyncadd [#allocation12], %s93
      %s95 = sshll.u32 [#allocation13], 4
      %s96 = int_to_ptr.vmem [resolvable:$true] %s95
      %101 = dma.hbm_to_vmem [thread:$0]  %s6, 8192, %s96, [#allocation12], 128, 128, 8
    $region29: #{tpu_custom_call.1} parent=1 // pred_fallthru
      _
    // Predicated region
    $region30: #{tpu_custom_call.1} parent=1 // pred_check
      _
    $region31: #{tpu_custom_call.1} parent=1 // pred_check_branch
      %103 = sbr.rel (0) target = $region33
    $region32: #{tpu_custom_call.1} parent=1 // pred_region
      %s105 = ssub.s32 2048, 2048
      %106 = vsyncadd [#allocation15], %s105
      %s107 = sshll.u32 [#allocation14], 4
      %s108 = int_to_ptr.vmem [resolvable:$true] %s107
      %113 = dma.hbm_to_vmem [thread:$0]  %s7, 2048, %s108, [#allocation15], 64, 64, 4
    $region33: #{tpu_custom_call.1} parent=1 // pred_fallthru
      _
    // Predicated region
    $region34: #{tpu_custom_call.1} parent=1 // pred_check
      _
    $region35: #{tpu_custom_call.1} parent=1 // pred_check_branch
      %115 = sbr.rel (0) target = $region37
    $region36: #{tpu_custom_call.1} parent=1 // pred_region
      %s117 = ssub.s32 1024, 1024
      %118 = vsyncadd [#allocation15], %s117
      %s119 = sshll.u32 [#allocation16], 4
      %s120 = int_to_ptr.vmem [resolvable:$true] %s119
      %125 = dma.hbm_to_vmem [thread:$0]  %s8, 1024, %s120, [#allocation15], 512, 512, 32
    $region37: #{tpu_custom_call.1} parent=1 // pred_fallthru
      _
    // Predicated region
    $region38: #{tpu_custom_call.1} parent=1 // pred_check
      _
    $region39: #{tpu_custom_call.1} parent=1 // pred_check_branch
      %127 = sbr.rel (0) target = $region41
    $region40: #{tpu_custom_call.1} parent=1 // pred_region
      %128 = dma.done [#allocation3], 128
    $region41: #{tpu_custom_call.1} parent=1 // pred_fallthru
      _
    // Predicated region
    $region42: #{tpu_custom_call.1} parent=1 // pred_check
      _
    $region43: #{tpu_custom_call.1} parent=1 // pred_check_branch
      %130 = sbr.rel (0) target = $region45
    $region44: #{tpu_custom_call.1} parent=1 // pred_region
      %131 = dma.done [#allocation6], 2048
    $region45: #{tpu_custom_call.1} parent=1 // pred_fallthru
      _
    // Predicated region
    $region46: #{tpu_custom_call.1} parent=1 // pred_check
      _
    $region47: #{tpu_custom_call.1} parent=1 // pred_check_branch
      %133 = sbr.rel (0) target = $region49
    $region48: #{tpu_custom_call.1} parent=1 // pred_region
      %134 = dma.done [#allocation6], 2048
    $region49: #{tpu_custom_call.1} parent=1 // pred_fallthru
      _
    // Predicated region
    $region50: #{tpu_custom_call.1} parent=1 // pred_check
      _
    $region51: #{tpu_custom_call.1} parent=1 // pred_check_branch
      %136 = sbr.rel (0) target = $region53
    $region52: #{tpu_custom_call.1} parent=1 // pred_region
      %137 = dma.done [#allocation9], 4096
    $region53: #{tpu_custom_call.1} parent=1 // pred_fallthru
      _
    // Predicated region
    $region54: #{tpu_custom_call.1} parent=1 // pred_check
      _
    $region55: #{tpu_custom_call.1} parent=1 // pred_check_branch
      %139 = sbr.rel (0) target = $region57
    $region56: #{tpu_custom_call.1} parent=1 // pred_region
      %140 = dma.done [#allocation9], 8192
    $region57: #{tpu_custom_call.1} parent=1 // pred_fallthru
      _
    // Predicated region
    $region58: #{tpu_custom_call.1} parent=1 // pred_check
      _
    $region59: #{tpu_custom_call.1} parent=1 // pred_check_branch
      %142 = sbr.rel (0) target = $region61
    $region60: #{tpu_custom_call.1} parent=1 // pred_region
      %143 = dma.done [#allocation12], 49152
    $region61: #{tpu_custom_call.1} parent=1 // pred_fallthru
      _
    // Predicated region
    $region62: #{tpu_custom_call.1} parent=1 // pred_check
      _
    $region63: #{tpu_custom_call.1} parent=1 // pred_check_branch
      %145 = sbr.rel (0) target = $region65
    $region64: #{tpu_custom_call.1} parent=1 // pred_region
      %146 = dma.done [#allocation12], 8192
    $region65: #{tpu_custom_call.1} parent=1 // pred_fallthru
      _
    // Predicated region
    $region66: #{tpu_custom_call.1} parent=1 // pred_check
      _
    $region67: #{tpu_custom_call.1} parent=1 // pred_check_branch
      %148 = sbr.rel (0) target = $region69
    $region68: #{tpu_custom_call.1} parent=1 // pred_region
      %149 = dma.done [#allocation15], 2048
    $region69: #{tpu_custom_call.1} parent=1 // pred_fallthru
      _
    // Predicated region
    $region70: #{tpu_custom_call.1} parent=1 // pred_check
      _
    $region71: #{tpu_custom_call.1} parent=1 // pred_check_branch
      %151 = sbr.rel (0) target = $region73
    $region72: #{tpu_custom_call.1} parent=1 // pred_region
      %152 = dma.done [#allocation15], 1024
    $region73: #{tpu_custom_call.1} parent=1 // pred_fallthru
      _
    %v154 = vld [vmem:[#allocation2] sm:$0xff]
    %v155 = vld [vmem:[#allocation5] sm:$0xf]
    %v156 = vld [vmem:[#allocation5 + $0x4] sm:$0xf]
    %v157 = vld [vmem:[#allocation5 + $0x8] sm:$0xf]
    %v158 = vld [vmem:[#allocation5 + $0xc] sm:$0xf]
    %v159 = vld [vmem:[#allocation5 + $0x10] sm:$0xf]
    %v160 = vld [vmem:[#allocation5 + $0x14] sm:$0xf]
    %v161 = vld [vmem:[#allocation5 + $0x18] sm:$0xf]
    %v162 = vld [vmem:[#allocation5 + $0x1c] sm:$0xf]
    %v163 = vld [vmem:[#allocation5 + $0x20] sm:$0xf]
    %v164 = vld [vmem:[#allocation5 + $0x24] sm:$0xf]
    %v165 = vld [vmem:[#allocation5 + $0x28] sm:$0xf]
    %v166 = vld [vmem:[#allocation5 + $0x2c] sm:$0xf]
    %v167 = vld [vmem:[#allocation5 + $0x30] sm:$0xf]
    %v168 = vld [vmem:[#allocation5 + $0x34] sm:$0xf]
    %v169 = vld [vmem:[#allocation5 + $0x38] sm:$0xf]
    %v170 = vld [vmem:[#allocation5 + $0x3c] sm:$0xf]
    %v171 = vpack.c.bf16 %v154, %v154
    %v172 = vld [vmem:[#allocation16] ss:$0 sm:$0xff]
    %v189 = vunpack.c.l.b16 %v155
    %v190 = vunpack.c.l.b16 %v156
    %v191 = vunpack.c.l.b16 %v157
    %v192 = vunpack.c.l.b16 %v158
    %v193 = vunpack.c.l.b16 %v159
    %v194 = vunpack.c.l.b16 %v160
    %v195 = vunpack.c.l.b16 %v161
    %v196 = vunpack.c.l.b16 %v162
    %v197 = vunpack.c.l.b16 %v163
    %v198 = vunpack.c.l.b16 %v164
    %v199 = vunpack.c.l.b16 %v165
    %v200 = vunpack.c.l.b16 %v166
    %v201 = vunpack.c.l.b16 %v167
    %v202 = vunpack.c.l.b16 %v168
    %v203 = vunpack.c.l.b16 %v169
    %v204 = vunpack.c.l.b16 %v170
    %v205 = vpack.c.b16 %v190, %v189
    %v206 = vpack.c.b16 %v192, %v191
    %v207 = vpack.c.b16 %v194, %v193
    %v208 = vpack.c.b16 %v196, %v195
    %v209 = vpack.c.b16 %v198, %v197
    %v210 = vpack.c.b16 %v200, %v199
    %v211 = vpack.c.b16 %v202, %v201
    %v212 = vpack.c.b16 %v204, %v203
    %221 = vmatprep.subr.bf16.mxu0 0
    %222 = vmatpush1.bf16.msra.mxu0 %v205
    %223 = vmatprep.subr.bf16.mxu0 0
    %224 = vmatpush1.bf16.msra.mxu0 %v206
    %225 = vmatprep.subr.bf16.mxu0 0
    %226 = vmatpush1.bf16.msra.mxu0 %v207
    %227 = vmatprep.subr.bf16.mxu0 0
    %228 = vmatpush1.bf16.msra.mxu0 %v208
    %229 = vmatprep.subr.bf16.mxu0 0
    %230 = vmatpush1.bf16.msra.mxu0 %v209
    %231 = vmatprep.subr.bf16.mxu0 0
    %232 = vmatpush1.bf16.msra.mxu0 %v210
    %233 = vmatprep.subr.bf16.mxu0 0
    %234 = vmatpush1.bf16.msra.mxu0 %v211
    %235 = vmatprep.subr.bf16.mxu0 0
    %236 = vmatpush1.bf16.msra.mxu0 %v212
    %237 = vmatprep.subr.bf16.mxu0 0
    %238 = vmatpush1.bf16.msra.mxu0 0
    %239 = vmatprep.subr.bf16.mxu0 0
    %240 = vmatpush1.bf16.msra.mxu0 0
    %241 = vmatprep.subr.bf16.mxu0 0
    %242 = vmatpush1.bf16.msra.mxu0 0
    %243 = vmatprep.subr.bf16.mxu0 0
    %244 = vmatpush1.bf16.msra.mxu0 0
    %245 = vmatprep.subr.bf16.mxu0 0
    %246 = vmatpush1.bf16.msra.mxu0 0
    %247 = vmatprep.subr.bf16.mxu0 0
    %248 = vmatpush1.bf16.msra.mxu0 0
    %249 = vmatprep.subr.bf16.mxu0 0
    %250 = vmatpush1.bf16.msra.mxu0 0
    %251 = vmatprep.subr.bf16.mxu0 0
    %252 = vmatpush1.bf16.msra.mxu0 0
    %253 = vmatprep.mubr.bf16.mxu0 0
    %254 = vmatmul.mubr.bf16.gmra.mrb[0].mxu0 %v171
    %v255 = vpop.f32.mrb[0].mxu0
    %v256 = vadd.f32 %v172, %v255
    %v257 = vpop.f32.mrb[0].mxu0
    %v258 = vpop.f32.mrb[0].mxu0
    %v259 = vpop.f32.mrb[0].mxu0
    %260 = vdwg.mxu0
    %v261 = vmax.f32 %v256, 0.0
    %s262 = scalar_lea.vmem [#allocation5], 64
    %v263 = vld [vmem:[%s262] sm:$0xf]
    %v264 = vld [vmem:[%s262 + $0x4] sm:$0xf]
    %v265 = vld [vmem:[%s262 + $0x8] sm:$0xf]
    %v266 = vld [vmem:[%s262 + $0xc] sm:$0xf]
    %v267 = vld [vmem:[%s262 + $0x10] sm:$0xf]
    %v268 = vld [vmem:[%s262 + $0x14] sm:$0xf]
    %v269 = vld [vmem:[%s262 + $0x18] sm:$0xf]
    %v270 = vld [vmem:[%s262 + $0x1c] sm:$0xf]
    %v271 = vld [vmem:[%s262 + $0x20] sm:$0xf]
    %v272 = vld [vmem:[%s262 + $0x24] sm:$0xf]
    %v273 = vld [vmem:[%s262 + $0x28] sm:$0xf]
    %v274 = vld [vmem:[%s262 + $0x2c] sm:$0xf]
    %v275 = vld [vmem:[%s262 + $0x30] sm:$0xf]
    %v276 = vld [vmem:[%s262 + $0x34] sm:$0xf]
    %v277 = vld [vmem:[%s262 + $0x38] sm:$0xf]
    %v278 = vld [vmem:[%s262 + $0x3c] sm:$0xf]
    %v279 = vpack.c.bf16 %v261, %v261
    %v280 = vld [vmem:[#allocation16 + $0x1] ss:$0 sm:$0xff]
    %v297 = vunpack.c.l.b16 %v263
    %v298 = vunpack.c.l.b16 %v264
    %v299 = vunpack.c.l.b16 %v265
    %v300 = vunpack.c.l.b16 %v266
    %v301 = vunpack.c.l.b16 %v267
    %v302 = vunpack.c.l.b16 %v268
    %v303 = vunpack.c.l.b16 %v269
    %v304 = vunpack.c.l.b16 %v270
    %v305 = vunpack.c.l.b16 %v271
    %v306 = vunpack.c.l.b16 %v272
    %v307 = vunpack.c.l.b16 %v273
    %v308 = vunpack.c.l.b16 %v274
    %v309 = vunpack.c.l.b16 %v275
    %v310 = vunpack.c.l.b16 %v276
    %v311 = vunpack.c.l.b16 %v277
    %v312 = vunpack.c.l.b16 %v278
    %v313 = vpack.c.b16 %v298, %v297
    %v314 = vpack.c.b16 %v300, %v299
    %v315 = vpack.c.b16 %v302, %v301
    %v316 = vpack.c.b16 %v304, %v303
    %v317 = vpack.c.b16 %v306, %v305
    %v318 = vpack.c.b16 %v308, %v307
    %v319 = vpack.c.b16 %v310, %v309
    %v320 = vpack.c.b16 %v312, %v311
    %329 = vmatprep.subr.bf16.mxu0 0
    %330 = vmatpush1.bf16.msra.mxu0 %v313
    %331 = vmatprep.subr.bf16.mxu0 0
    %332 = vmatpush1.bf16.msra.mxu0 %v314
    %333 = vmatprep.subr.bf16.mxu0 0
    %334 = vmatpush1.bf16.msra.mxu0 %v315
    %335 = vmatprep.subr.bf16.mxu0 0
    %336 = vmatpush1.bf16.msra.mxu0 %v316
    %337 = vmatprep.subr.bf16.mxu0 0
    %338 = vmatpush1.bf16.msra.mxu0 %v317
    %339 = vmatprep.subr.bf16.mxu0 0
    %340 = vmatpush1.bf16.msra.mxu0 %v318
    %341 = vmatprep.subr.bf16.mxu0 0
    %342 = vmatpush1.bf16.msra.mxu0 %v319
    %343 = vmatprep.subr.bf16.mxu0 0
    %344 = vmatpush1.bf16.msra.mxu0 %v320
    %345 = vmatprep.subr.bf16.mxu0 0
    %346 = vmatpush1.bf16.msra.mxu0 0
    %347 = vmatprep.subr.bf16.mxu0 0
    %348 = vmatpush1.bf16.msra.mxu0 0
    %349 = vmatprep.subr.bf16.mxu0 0
    %350 = vmatpush1.bf16.msra.mxu0 0
    %351 = vmatprep.subr.bf16.mxu0 0
    %352 = vmatpush1.bf16.msra.mxu0 0
    %353 = vmatprep.subr.bf16.mxu0 0
    %354 = vmatpush1.bf16.msra.mxu0 0
    %355 = vmatprep.subr.bf16.mxu0 0
    %356 = vmatpush1.bf16.msra.mxu0 0
    %357 = vmatprep.subr.bf16.mxu0 0
    %358 = vmatpush1.bf16.msra.mxu0 0
    %359 = vmatprep.subr.bf16.mxu0 0
    %360 = vmatpush1.bf16.msra.mxu0 0
    %361 = vmatprep.mubr.bf16.mxu0 0
    %362 = vmatmul.mubr.bf16.gmra.mrb[0].mxu0 %v279
    %v363 = vpop.f32.mrb[0].mxu0
    %v364 = vadd.f32 %v280, %v363
    %v365 = vpop.f32.mrb[0].mxu0
    %v366 = vpop.f32.mrb[0].mxu0
    %v367 = vpop.f32.mrb[0].mxu0
    %368 = vdwg.mxu0
    %v369 = vmax.f32 %v364, 0.0
    %v370 = vld [vmem:[#allocation7] sm:$0xff]
    %v371 = vld [vmem:[#allocation7 + $0x8] sm:$0xff]
    %v372 = vld [vmem:[#allocation7 + $0x10] sm:$0xff]
    %v373 = vld [vmem:[#allocation7 + $0x18] sm:$0xff]
    %v374 = vld [vmem:[#allocation7 + $0x20] sm:$0xff]
    %v375 = vld [vmem:[#allocation7 + $0x28] sm:$0xff]
    %v376 = vld [vmem:[#allocation7 + $0x30] sm:$0xff]
    %v377 = vld [vmem:[#allocation7 + $0x38] sm:$0xff]
    %v378 = vld [vmem:[#allocation7 + $0x40] sm:$0xff]
    %v379 = vld [vmem:[#allocation7 + $0x48] sm:$0xff]
    %v380 = vld [vmem:[#allocation7 + $0x50] sm:$0xff]
    %v381 = vld [vmem:[#allocation7 + $0x58] sm:$0xff]
    %v382 = vld [vmem:[#allocation7 + $0x60] sm:$0xff]
    %v383 = vld [vmem:[#allocation7 + $0x68] sm:$0xff]
    %v384 = vld [vmem:[#allocation7 + $0x70] sm:$0xff]
    %v385 = vld [vmem:[#allocation7 + $0x78] sm:$0xff]
    %v386 = vpack.c.bf16 %v369, %v369
    %s387 = scalar_lea.vmem [#allocation16], 2
    %v388 = vld [vmem:[%s387] ss:$8 sm:$0x3]
    %v390 = vlaneseq
    %v391 = vshrl.u32 %v390, 7
    %v392 = vsub.s32 0, %v391
    %v393 = vrot.slane %v388, %v392
    %v394 = vlaneseq
    %v395 = vshrl.u32 %v394, 7
    %v396 = vsub.s32 1, %v395
    %v397 = vrot.slane %v388, %v396
    %v416 = vunpack.c.l.b16 %v370
    %v417 = vunpack.c.h.b16 %v370
    %v418 = vunpack.c.l.b16 %v371
    %v419 = vunpack.c.h.b16 %v371
    %v420 = vunpack.c.l.b16 %v372
    %v421 = vunpack.c.h.b16 %v372
    %v422 = vunpack.c.l.b16 %v373
    %v423 = vunpack.c.h.b16 %v373
    %v424 = vunpack.c.l.b16 %v374
    %v425 = vunpack.c.h.b16 %v374
    %v426 = vunpack.c.l.b16 %v375
    %v427 = vunpack.c.h.b16 %v375
    %v428 = vunpack.c.l.b16 %v376
    %v429 = vunpack.c.h.b16 %v376
    %v430 = vunpack.c.l.b16 %v377
    %v431 = vunpack.c.h.b16 %v377
    %v432 = vunpack.c.l.b16 %v378
    %v433 = vunpack.c.h.b16 %v378
    %v434 = vunpack.c.l.b16 %v379
    %v435 = vunpack.c.h.b16 %v379
    %v436 = vunpack.c.l.b16 %v380
    %v437 = vunpack.c.h.b16 %v380
    %v438 = vunpack.c.l.b16 %v381
    %v439 = vunpack.c.h.b16 %v381
    %v440 = vunpack.c.l.b16 %v382
    %v441 = vunpack.c.h.b16 %v382
    %v442 = vunpack.c.l.b16 %v383
    %v443 = vunpack.c.h.b16 %v383
    %v444 = vunpack.c.l.b16 %v384
    %v445 = vunpack.c.h.b16 %v384
    %v446 = vunpack.c.l.b16 %v385
    %v447 = vunpack.c.h.b16 %v385
    %v448 = vpack.c.b16 %v418, %v416
    %v449 = vpack.c.b16 %v419, %v417
    %v450 = vpack.c.b16 %v422, %v420
    %v451 = vpack.c.b16 %v423, %v421
    %v452 = vpack.c.b16 %v426, %v424
    %v453 = vpack.c.b16 %v427, %v425
    %v454 = vpack.c.b16 %v430, %v428
    %v455 = vpack.c.b16 %v431, %v429
    %v456 = vpack.c.b16 %v434, %v432
    %v457 = vpack.c.b16 %v435, %v433
    %v458 = vpack.c.b16 %v438, %v436
    %v459 = vpack.c.b16 %v439, %v437
    %v460 = vpack.c.b16 %v442, %v440
    %v461 = vpack.c.b16 %v443, %v441
    %v462 = vpack.c.b16 %v446, %v444
    %v463 = vpack.c.b16 %v447, %v445
    %480 = vmatprep.subr.bf16.mxu0 %v449
    %481 = vmatpush1.bf16.msra.mxu0 %v448
    %482 = vmatprep.subr.bf16.mxu0 %v451
    %483 = vmatpush1.bf16.msra.mxu0 %v450
    %484 = vmatprep.subr.bf16.mxu0 %v453
    %485 = vmatpush1.bf16.msra.mxu0 %v452
    %486 = vmatprep.subr.bf16.mxu0 %v455
    %487 = vmatpush1.bf16.msra.mxu0 %v454
    %488 = vmatprep.subr.bf16.mxu0 %v457
    %489 = vmatpush1.bf16.msra.mxu0 %v456
    %490 = vmatprep.subr.bf16.mxu0 %v459
    %491 = vmatpush1.bf16.msra.mxu0 %v458
    %492 = vmatprep.subr.bf16.mxu0 %v461
    %493 = vmatpush1.bf16.msra.mxu0 %v460
    %494 = vmatprep.subr.bf16.mxu0 %v463
    %495 = vmatpush1.bf16.msra.mxu0 %v462
    %496 = vmatprep.subr.bf16.mxu0 0
    %497 = vmatpush1.bf16.msra.mxu0 0
    %498 = vmatprep.subr.bf16.mxu0 0
    %499 = vmatpush1.bf16.msra.mxu0 0
    %500 = vmatprep.subr.bf16.mxu0 0
    %501 = vmatpush1.bf16.msra.mxu0 0
    %502 = vmatprep.subr.bf16.mxu0 0
    %503 = vmatpush1.bf16.msra.mxu0 0
    %504 = vmatprep.subr.bf16.mxu0 0
    %505 = vmatpush1.bf16.msra.mxu0 0
    %506 = vmatprep.subr.bf16.mxu0 0
    %507 = vmatpush1.bf16.msra.mxu0 0
    %508 = vmatprep.subr.bf16.mxu0 0
    %509 = vmatpush1.bf16.msra.mxu0 0
    %510 = vmatprep.subr.bf16.mxu0 0
    %511 = vmatpush1.bf16.msra.mxu0 0
    %512 = vmatprep.mubr.bf16.mxu0 0
    %513 = vmatmul.mubr.bf16.gmra.mrb[0].mxu0 %v386
    %v514 = vpop.f32.mrb[0].mxu0
    %v515 = vadd.f32 %v393, %v514
    %v516 = vpop.f32.mrb[0].mxu0
    %v517 = vadd.f32 %v397, %v516
    %v518 = vpop.f32.mrb[0].mxu0
    %v519 = vpop.f32.mrb[0].mxu0
    %520 = vdwg.mxu0
    %v521 = vmax.f32 %v515, 0.0
    %v522 = vmax.f32 %v517, 0.0
    %v523 = vld [vmem:[#allocation8] sm:$0xff]
    %v524 = vld [vmem:[#allocation8 + $0x8] sm:$0xff]
    %v525 = vld [vmem:[#allocation8 + $0x10] sm:$0xff]
    %v526 = vld [vmem:[#allocation8 + $0x18] sm:$0xff]
    %v527 = vld [vmem:[#allocation8 + $0x20] sm:$0xff]
    %v528 = vld [vmem:[#allocation8 + $0x28] sm:$0xff]
    %v529 = vld [vmem:[#allocation8 + $0x30] sm:$0xff]
    %v530 = vld [vmem:[#allocation8 + $0x38] sm:$0xff]
    %v531 = vld [vmem:[#allocation8 + $0x40] sm:$0xff]
    %v532 = vld [vmem:[#allocation8 + $0x48] sm:$0xff]
    %v533 = vld [vmem:[#allocation8 + $0x50] sm:$0xff]
    %v534 = vld [vmem:[#allocation8 + $0x58] sm:$0xff]
    %v535 = vld [vmem:[#allocation8 + $0x60] sm:$0xff]
    %v536 = vld [vmem:[#allocation8 + $0x68] sm:$0xff]
    %v537 = vld [vmem:[#allocation8 + $0x70] sm:$0xff]
    %v538 = vld [vmem:[#allocation8 + $0x78] sm:$0xff]
    %v539 = vld [vmem:[#allocation8 + $0x80] sm:$0xff]
    %v540 = vld [vmem:[#allocation8 + $0x88] sm:$0xff]
    %v541 = vld [vmem:[#allocation8 + $0x90] sm:$0xff]
    %v542 = vld [vmem:[#allocation8 + $0x98] sm:$0xff]
    %v543 = vld [vmem:[#allocation8 + $0xa0] sm:$0xff]
    %v544 = vld [vmem:[#allocation8 + $0xa8] sm:$0xff]
    %v545 = vld [vmem:[#allocation8 + $0xb0] sm:$0xff]
    %v546 = vld [vmem:[#allocation8 + $0xb8] sm:$0xff]
    %v547 = vld [vmem:[#allocation8 + $0xc0] sm:$0xff]
    %v548 = vld [vmem:[#allocation8 + $0xc8] sm:$0xff]
    %v549 = vld [vmem:[#allocation8 + $0xd0] sm:$0xff]
    %v550 = vld [vmem:[#allocation8 + $0xd8] sm:$0xff]
    %v551 = vld [vmem:[#allocation8 + $0xe0] sm:$0xff]
    %v552 = vld [vmem:[#allocation8 + $0xe8] sm:$0xff]
    %v553 = vld [vmem:[#allocation8 + $0xf0] sm:$0xff]
    %v554 = vld [vmem:[#allocation8 + $0xf8] sm:$0xff]
    %v555 = vpack.c.bf16 %v521, %v521
    %v556 = vpack.c.bf16 %v522, %v522
    %s557 = scalar_lea.vmem [#allocation16], 3
    %v558 = vld [vmem:[%s557] ss:$8 sm:$0x3]
    %v560 = vlaneseq
    %v561 = vshrl.u32 %v560, 7
    %v562 = vsub.s32 0, %v561
    %v563 = vrot.slane %v558, %v562
    %v564 = vlaneseq
    %v565 = vshrl.u32 %v564, 7
    %v566 = vsub.s32 1, %v565
    %v567 = vrot.slane %v558, %v566
    %v602 = vunpack.c.l.b16 %v523
    %v603 = vunpack.c.h.b16 %v523
    %v604 = vunpack.c.l.b16 %v524
    %v605 = vunpack.c.h.b16 %v524
    %v606 = vunpack.c.l.b16 %v525
    %v607 = vunpack.c.h.b16 %v525
    %v608 = vunpack.c.l.b16 %v526
    %v609 = vunpack.c.h.b16 %v526
    %v610 = vunpack.c.l.b16 %v527
    %v611 = vunpack.c.h.b16 %v527
    %v612 = vunpack.c.l.b16 %v528
    %v613 = vunpack.c.h.b16 %v528
    %v614 = vunpack.c.l.b16 %v529
    %v615 = vunpack.c.h.b16 %v529
    %v616 = vunpack.c.l.b16 %v530
    %v617 = vunpack.c.h.b16 %v530
    %v618 = vunpack.c.l.b16 %v531
    %v619 = vunpack.c.h.b16 %v531
    %v620 = vunpack.c.l.b16 %v532
    %v621 = vunpack.c.h.b16 %v532
    %v622 = vunpack.c.l.b16 %v533
    %v623 = vunpack.c.h.b16 %v533
    %v624 = vunpack.c.l.b16 %v534
    %v625 = vunpack.c.h.b16 %v534
    %v626 = vunpack.c.l.b16 %v535
    %v627 = vunpack.c.h.b16 %v535
    %v628 = vunpack.c.l.b16 %v536
    %v629 = vunpack.c.h.b16 %v536
    %v630 = vunpack.c.l.b16 %v537
    %v631 = vunpack.c.h.b16 %v537
    %v632 = vunpack.c.l.b16 %v538
    %v633 = vunpack.c.h.b16 %v538
    %v634 = vunpack.c.l.b16 %v539
    %v635 = vunpack.c.h.b16 %v539
    %v636 = vunpack.c.l.b16 %v540
    %v637 = vunpack.c.h.b16 %v540
    %v638 = vunpack.c.l.b16 %v541
    %v639 = vunpack.c.h.b16 %v541
    %v640 = vunpack.c.l.b16 %v542
    %v641 = vunpack.c.h.b16 %v542
    %v642 = vunpack.c.l.b16 %v543
    %v643 = vunpack.c.h.b16 %v543
    %v644 = vunpack.c.l.b16 %v544
    %v645 = vunpack.c.h.b16 %v544
    %v646 = vunpack.c.l.b16 %v545
    %v647 = vunpack.c.h.b16 %v545
    %v648 = vunpack.c.l.b16 %v546
    %v649 = vunpack.c.h.b16 %v546
    %v650 = vunpack.c.l.b16 %v547
    %v651 = vunpack.c.h.b16 %v547
    %v652 = vunpack.c.l.b16 %v548
    %v653 = vunpack.c.h.b16 %v548
    %v654 = vunpack.c.l.b16 %v549
    %v655 = vunpack.c.h.b16 %v549
    %v656 = vunpack.c.l.b16 %v550
    %v657 = vunpack.c.h.b16 %v550
    %v658 = vunpack.c.l.b16 %v551
    %v659 = vunpack.c.h.b16 %v551
    %v660 = vunpack.c.l.b16 %v552
    %v661 = vunpack.c.h.b16 %v552
    %v662 = vunpack.c.l.b16 %v553
    %v663 = vunpack.c.h.b16 %v553
    %v664 = vunpack.c.l.b16 %v554
    %v665 = vunpack.c.h.b16 %v554
    %v666 = vpack.c.b16 %v604, %v602
    %v667 = vpack.c.b16 %v605, %v603
    %v668 = vpack.c.b16 %v608, %v606
    %v669 = vpack.c.b16 %v609, %v607
    %v670 = vpack.c.b16 %v612, %v610
    %v671 = vpack.c.b16 %v613, %v611
    %v672 = vpack.c.b16 %v616, %v614
    %v673 = vpack.c.b16 %v617, %v615
    %v674 = vpack.c.b16 %v620, %v618
    %v675 = vpack.c.b16 %v621, %v619
    %v676 = vpack.c.b16 %v624, %v622
    %v677 = vpack.c.b16 %v625, %v623
    %v678 = vpack.c.b16 %v628, %v626
    %v679 = vpack.c.b16 %v629, %v627
    %v680 = vpack.c.b16 %v632, %v630
    %v681 = vpack.c.b16 %v633, %v631
    %v682 = vpack.c.b16 %v636, %v634
    %v683 = vpack.c.b16 %v637, %v635
    %v684 = vpack.c.b16 %v640, %v638
    %v685 = vpack.c.b16 %v641, %v639
    %v686 = vpack.c.b16 %v644, %v642
    %v687 = vpack.c.b16 %v645, %v643
    %v688 = vpack.c.b16 %v648, %v646
    %v689 = vpack.c.b16 %v649, %v647
    %v690 = vpack.c.b16 %v652, %v650
    %v691 = vpack.c.b16 %v653, %v651
    %v692 = vpack.c.b16 %v656, %v654
    %v693 = vpack.c.b16 %v657, %v655
    %v694 = vpack.c.b16 %v660, %v658
    %v695 = vpack.c.b16 %v661, %v659
    %v696 = vpack.c.b16 %v664, %v662
    %v697 = vpack.c.b16 %v665, %v663
    %730 = vmatprep.subr.bf16.mxu0 %v667
    %731 = vmatpush1.bf16.msra.mxu0 %v666
    %732 = vmatprep.subr.bf16.mxu0 %v669
    %733 = vmatpush1.bf16.msra.mxu0 %v668
    %734 = vmatprep.subr.bf16.mxu0 %v671
    %735 = vmatpush1.bf16.msra.mxu0 %v670
    %736 = vmatprep.subr.bf16.mxu0 %v673
    %737 = vmatpush1.bf16.msra.mxu0 %v672
    %738 = vmatprep.subr.bf16.mxu0 %v675
    %739 = vmatpush1.bf16.msra.mxu0 %v674
    %740 = vmatprep.subr.bf16.mxu0 %v677
    %741 = vmatpush1.bf16.msra.mxu0 %v676
    %742 = vmatprep.subr.bf16.mxu0 %v679
    %743 = vmatpush1.bf16.msra.mxu0 %v678
    %744 = vmatprep.subr.bf16.mxu0 %v681
    %745 = vmatpush1.bf16.msra.mxu0 %v680
    %746 = vmatprep.subr.bf16.mxu0 %v683
    %747 = vmatpush1.bf16.msra.mxu0 %v682
    %748 = vmatprep.subr.bf16.mxu0 %v685
    %749 = vmatpush1.bf16.msra.mxu0 %v684
    %750 = vmatprep.subr.bf16.mxu0 %v687
    %751 = vmatpush1.bf16.msra.mxu0 %v686
    %752 = vmatprep.subr.bf16.mxu0 %v689
    %753 = vmatpush1.bf16.msra.mxu0 %v688
    %754 = vmatprep.subr.bf16.mxu0 %v691
    %755 = vmatpush1.bf16.msra.mxu0 %v690
    %756 = vmatprep.subr.bf16.mxu0 %v693
    %757 = vmatpush1.bf16.msra.mxu0 %v692
    %758 = vmatprep.subr.bf16.mxu0 %v695
    %759 = vmatpush1.bf16.msra.mxu0 %v694
    %760 = vmatprep.subr.bf16.mxu0 %v697
    %761 = vmatpush1.bf16.msra.mxu0 %v696
    %762 = vmatprep.mubr.bf16.mxu0 %v556
    %763 = vmatmul.mubr.bf16.gmra.mrb[0].mxu0 %v555
    %v764 = vpop.f32.mrb[0].mxu0
    %v765 = vadd.f32 %v563, %v764
    %v766 = vpop.f32.mrb[0].mxu0
    %v767 = vadd.f32 %v567, %v766
    %v768 = vpop.f32.mrb[0].mxu0
    %v769 = vpop.f32.mrb[0].mxu0
    %770 = vdwg.mxu0
    %v771 = vmax.f32 %v765, 0.0
    %v772 = vmax.f32 %v767, 0.0
    %v773 = vld [vmem:[#allocation10] sm:$0xff]
    %v774 = vld [vmem:[#allocation10 + $0x8] sm:$0xff]
    %v775 = vld [vmem:[#allocation10 + $0x10] sm:$0xff]
    %v776 = vld [vmem:[#allocation10 + $0x18] sm:$0xff]
    %v777 = vld [vmem:[#allocation10 + $0x20] sm:$0xff]
    %v778 = vld [vmem:[#allocation10 + $0x28] sm:$0xff]
    %v779 = vld [vmem:[#allocation10 + $0x30] sm:$0xff]
    %v780 = vld [vmem:[#allocation10 + $0x38] sm:$0xff]
    %v781 = vld [vmem:[#allocation10 + $0x40] sm:$0xff]
    %v782 = vld [vmem:[#allocation10 + $0x48] sm:$0xff]
    %v783 = vld [vmem:[#allocation10 + $0x50] sm:$0xff]
    %v784 = vld [vmem:[#allocation10 + $0x58] sm:$0xff]
    %v785 = vld [vmem:[#allocation10 + $0x60] sm:$0xff]
    %v786 = vld [vmem:[#allocation10 + $0x68] sm:$0xff]
    %v787 = vld [vmem:[#allocation10 + $0x70] sm:$0xff]
    %v788 = vld [vmem:[#allocation10 + $0x78] sm:$0xff]
    %v789 = vld [vmem:[#allocation10 + $0x80] sm:$0xff]
    %v790 = vld [vmem:[#allocation10 + $0x88] sm:$0xff]
    %v791 = vld [vmem:[#allocation10 + $0x90] sm:$0xff]
    %v792 = vld [vmem:[#allocation10 + $0x98] sm:$0xff]
    %v793 = vld [vmem:[#allocation10 + $0xa0] sm:$0xff]
    %v794 = vld [vmem:[#allocation10 + $0xa8] sm:$0xff]
    %v795 = vld [vmem:[#allocation10 + $0xb0] sm:$0xff]
    %v796 = vld [vmem:[#allocation10 + $0xb8] sm:$0xff]
    %v797 = vld [vmem:[#allocation10 + $0xc0] sm:$0xff]
    %v798 = vld [vmem:[#allocation10 + $0xc8] sm:$0xff]
    %v799 = vld [vmem:[#allocation10 + $0xd0] sm:$0xff]
    %v800 = vld [vmem:[#allocation10 + $0xd8] sm:$0xff]
    %v801 = vld [vmem:[#allocation10 + $0xe0] sm:$0xff]
    %v802 = vld [vmem:[#allocation10 + $0xe8] sm:$0xff]
    %v803 = vld [vmem:[#allocation10 + $0xf0] sm:$0xff]
    %v804 = vld [vmem:[#allocation10 + $0xf8] sm:$0xff]
    %v805 = vld [vmem:[#allocation10 + $0x100] sm:$0xff]
    %v806 = vld [vmem:[#allocation10 + $0x108] sm:$0xff]
    %v807 = vld [vmem:[#allocation10 + $0x110] sm:$0xff]
    %v808 = vld [vmem:[#allocation10 + $0x118] sm:$0xff]
    %v809 = vld [vmem:[#allocation10 + $0x120] sm:$0xff]
    %v810 = vld [vmem:[#allocation10 + $0x128] sm:$0xff]
    %v811 = vld [vmem:[#allocation10 + $0x130] sm:$0xff]
    %v812 = vld [vmem:[#allocation10 + $0x138] sm:$0xff]
    %v813 = vld [vmem:[#allocation10 + $0x140] sm:$0xff]
    %v814 = vld [vmem:[#allocation10 + $0x148] sm:$0xff]
    %v815 = vld [vmem:[#allocation10 + $0x150] sm:$0xff]
    %v816 = vld [vmem:[#allocation10 + $0x158] sm:$0xff]
    %v817 = vld [vmem:[#allocation10 + $0x160] sm:$0xff]
    %v818 = vld [vmem:[#allocation10 + $0x168] sm:$0xff]
    %v819 = vld [vmem:[#allocation10 + $0x170] sm:$0xff]
    %v820 = vld [vmem:[#allocation10 + $0x178] sm:$0xff]
    %v821 = vld [vmem:[#allocation10 + $0x180] sm:$0xff]
    %v822 = vld [vmem:[#allocation10 + $0x188] sm:$0xff]
    %v823 = vld [vmem:[#allocation10 + $0x190] sm:$0xff]
    %v824 = vld [vmem:[#allocation10 + $0x198] sm:$0xff]
    %v825 = vld [vmem:[#allocation10 + $0x1a0] sm:$0xff]
    %v826 = vld [vmem:[#allocation10 + $0x1a8] sm:$0xff]
    %v827 = vld [vmem:[#allocation10 + $0x1b0] sm:$0xff]
    %v828 = vld [vmem:[#allocation10 + $0x1b8] sm:$0xff]
    %v829 = vld [vmem:[#allocation10 + $0x1c0] sm:$0xff]
    %v830 = vld [vmem:[#allocation10 + $0x1c8] sm:$0xff]
    %v831 = vld [vmem:[#allocation10 + $0x1d0] sm:$0xff]
    %v832 = vld [vmem:[#allocation10 + $0x1d8] sm:$0xff]
    %v833 = vld [vmem:[#allocation10 + $0x1e0] sm:$0xff]
    %v834 = vld [vmem:[#allocation10 + $0x1e8] sm:$0xff]
    %v835 = vld [vmem:[#allocation10 + $0x1f0] sm:$0xff]
    %v836 = vld [vmem:[#allocation10 + $0x1f8] sm:$0xff]
    %v837 = vpack.c.bf16 %v771, %v771
    %v838 = vpack.c.bf16 %v772, %v772
    %s839 = scalar_lea.vmem [#allocation16], 4
    %v840 = vld [vmem:[%s839] ss:$8 sm:$0xf]
    %v842 = vlaneseq
    %v843 = vshrl.u32 %v842, 7
    %v844 = vsub.s32 0, %v843
    %v845 = vrot.slane %v840, %v844
    %v846 = vlaneseq
    %v847 = vshrl.u32 %v846, 7
    %v848 = vsub.s32 1, %v847
    %v849 = vrot.slane %v840, %v848
    %v850 = vlaneseq
    %v851 = vshrl.u32 %v850, 7
    %v852 = vsub.s32 2, %v851
    %v853 = vrot.slane %v840, %v852
    %v854 = vlaneseq
    %v855 = vshrl.u32 %v854, 7
    %v856 = vsub.s32 3, %v855
    %v857 = vrot.slane %v840, %v856
    %v926 = vunpack.c.l.b16 %v773
    %v927 = vunpack.c.h.b16 %v773
    %v928 = vunpack.c.l.b16 %v774
    %v929 = vunpack.c.h.b16 %v774
    %v930 = vunpack.c.l.b16 %v775
    %v931 = vunpack.c.h.b16 %v775
    %v932 = vunpack.c.l.b16 %v776
    %v933 = vunpack.c.h.b16 %v776
    %v934 = vunpack.c.l.b16 %v777
    %v935 = vunpack.c.h.b16 %v777
    %v936 = vunpack.c.l.b16 %v778
    %v937 = vunpack.c.h.b16 %v778
    %v938 = vunpack.c.l.b16 %v779
    %v939 = vunpack.c.h.b16 %v779
    %v940 = vunpack.c.l.b16 %v780
    %v941 = vunpack.c.h.b16 %v780
    %v942 = vunpack.c.l.b16 %v781
    %v943 = vunpack.c.h.b16 %v781
    %v944 = vunpack.c.l.b16 %v782
    %v945 = vunpack.c.h.b16 %v782
    %v946 = vunpack.c.l.b16 %v783
    %v947 = vunpack.c.h.b16 %v783
    %v948 = vunpack.c.l.b16 %v784
    %v949 = vunpack.c.h.b16 %v784
    %v950 = vunpack.c.l.b16 %v785
    %v951 = vunpack.c.h.b16 %v785
    %v952 = vunpack.c.l.b16 %v786
    %v953 = vunpack.c.h.b16 %v786
    %v954 = vunpack.c.l.b16 %v787
    %v955 = vunpack.c.h.b16 %v787
    %v956 = vunpack.c.l.b16 %v788
    %v957 = vunpack.c.h.b16 %v788
    %v958 = vunpack.c.l.b16 %v789
    %v959 = vunpack.c.h.b16 %v789
    %v960 = vunpack.c.l.b16 %v790
    %v961 = vunpack.c.h.b16 %v790
    %v962 = vunpack.c.l.b16 %v791
    %v963 = vunpack.c.h.b16 %v791
    %v964 = vunpack.c.l.b16 %v792
    %v965 = vunpack.c.h.b16 %v792
    %v966 = vunpack.c.l.b16 %v793
    %v967 = vunpack.c.h.b16 %v793
    %v968 = vunpack.c.l.b16 %v794
    %v969 = vunpack.c.h.b16 %v794
    %v970 = vunpack.c.l.b16 %v795
    %v971 = vunpack.c.h.b16 %v795
    %v972 = vunpack.c.l.b16 %v796
    %v973 = vunpack.c.h.b16 %v796
    %v974 = vunpack.c.l.b16 %v797
    %v975 = vunpack.c.h.b16 %v797
    %v976 = vunpack.c.l.b16 %v798
    %v977 = vunpack.c.h.b16 %v798
    %v978 = vunpack.c.l.b16 %v799
    %v979 = vunpack.c.h.b16 %v799
    %v980 = vunpack.c.l.b16 %v800
    %v981 = vunpack.c.h.b16 %v800
    %v982 = vunpack.c.l.b16 %v801
    %v983 = vunpack.c.h.b16 %v801
    %v984 = vunpack.c.l.b16 %v802
    %v985 = vunpack.c.h.b16 %v802
    %v986 = vunpack.c.l.b16 %v803
    %v987 = vunpack.c.h.b16 %v803
    %v988 = vunpack.c.l.b16 %v804
    %v989 = vunpack.c.h.b16 %v804
    %v990 = vunpack.c.l.b16 %v805
    %v991 = vunpack.c.h.b16 %v805
    %v992 = vunpack.c.l.b16 %v806
    %v993 = vunpack.c.h.b16 %v806
    %v994 = vunpack.c.l.b16 %v807
    %v995 = vunpack.c.h.b16 %v807
    %v996 = vunpack.c.l.b16 %v808
    %v997 = vunpack.c.h.b16 %v808
    %v998 = vunpack.c.l.b16 %v809
    %v999 = vunpack.c.h.b16 %v809
    %v1000 = vunpack.c.l.b16 %v810
    %v1001 = vunpack.c.h.b16 %v810
    %v1002 = vunpack.c.l.b16 %v811
    %v1003 = vunpack.c.h.b16 %v811
    %v1004 = vunpack.c.l.b16 %v812
    %v1005 = vunpack.c.h.b16 %v812
    %v1006 = vunpack.c.l.b16 %v813
    %v1007 = vunpack.c.h.b16 %v813
    %v1008 = vunpack.c.l.b16 %v814
    %v1009 = vunpack.c.h.b16 %v814
    %v1010 = vunpack.c.l.b16 %v815
    %v1011 = vunpack.c.h.b16 %v815
    %v1012 = vunpack.c.l.b16 %v816
    %v1013 = vunpack.c.h.b16 %v816
    %v1014 = vunpack.c.l.b16 %v817
    %v1015 = vunpack.c.h.b16 %v817
    %v1016 = vunpack.c.l.b16 %v818
    %v1017 = vunpack.c.h.b16 %v818
    %v1018 = vunpack.c.l.b16 %v819
    %v1019 = vunpack.c.h.b16 %v819
    %v1020 = vunpack.c.l.b16 %v820
    %v1021 = vunpack.c.h.b16 %v820
    %v1022 = vunpack.c.l.b16 %v821
    %v1023 = vunpack.c.h.b16 %v821
    %v1024 = vunpack.c.l.b16 %v822
    %v1025 = vunpack.c.h.b16 %v822
    %v1026 = vunpack.c.l.b16 %v823
    %v1027 = vunpack.c.h.b16 %v823
    %v1028 = vunpack.c.l.b16 %v824
    %v1029 = vunpack.c.h.b16 %v824
    %v1030 = vunpack.c.l.b16 %v825
    %v1031 = vunpack.c.h.b16 %v825
    %v1032 = vunpack.c.l.b16 %v826
    %v1033 = vunpack.c.h.b16 %v826
    %v1034 = vunpack.c.l.b16 %v827
    %v1035 = vunpack.c.h.b16 %v827
    %v1036 = vunpack.c.l.b16 %v828
    %v1037 = vunpack.c.h.b16 %v828
    %v1038 = vunpack.c.l.b16 %v829
    %v1039 = vunpack.c.h.b16 %v829
    %v1040 = vunpack.c.l.b16 %v830
    %v1041 = vunpack.c.h.b16 %v830
    %v1042 = vunpack.c.l.b16 %v831
    %v1043 = vunpack.c.h.b16 %v831
    %v1044 = vunpack.c.l.b16 %v832
    %v1045 = vunpack.c.h.b16 %v832
    %v1046 = vunpack.c.l.b16 %v833
    %v1047 = vunpack.c.h.b16 %v833
    %v1048 = vunpack.c.l.b16 %v834
    %v1049 = vunpack.c.h.b16 %v834
    %v1050 = vunpack.c.l.b16 %v835
    %v1051 = vunpack.c.h.b16 %v835
    %v1052 = vunpack.c.l.b16 %v836
    %v1053 = vunpack.c.h.b16 %v836
    %v1054 = vpack.c.b16 %v930, %v926
    %v1055 = vpack.c.b16 %v931, %v927
    %v1056 = vpack.c.b16 %v932, %v928
    %v1057 = vpack.c.b16 %v933, %v929
    %v1058 = vpack.c.b16 %v938, %v934
    %v1059 = vpack.c.b16 %v939, %v935
    %v1060 = vpack.c.b16 %v940, %v936
    %v1061 = vpack.c.b16 %v941, %v937
    %v1062 = vpack.c.b16 %v946, %v942
    %v1063 = vpack.c.b16 %v947, %v943
    %v1064 = vpack.c.b16 %v948, %v944
    %v1065 = vpack.c.b16 %v949, %v945
    %v1066 = vpack.c.b16 %v954, %v950
    %v1067 = vpack.c.b16 %v955, %v951
    %v1068 = vpack.c.b16 %v956, %v952
    %v1069 = vpack.c.b16 %v957, %v953
    %v1070 = vpack.c.b16 %v962, %v958
    %v1071 = vpack.c.b16 %v963, %v959
    %v1072 = vpack.c.b16 %v964, %v960
    %v1073 = vpack.c.b16 %v965, %v961
    %v1074 = vpack.c.b16 %v970, %v966
    %v1075 = vpack.c.b16 %v971, %v967
    %v1076 = vpack.c.b16 %v972, %v968
    %v1077 = vpack.c.b16 %v973, %v969
    %v1078 = vpack.c.b16 %v978, %v974
    %v1079 = vpack.c.b16 %v979, %v975
    %v1080 = vpack.c.b16 %v980, %v976
    %v1081 = vpack.c.b16 %v981, %v977
    %v1082 = vpack.c.b16 %v986, %v982
    %v1083 = vpack.c.b16 %v987, %v983
    %v1084 = vpack.c.b16 %v988, %v984
    %v1085 = vpack.c.b16 %v989, %v985
    %v1086 = vpack.c.b16 %v994, %v990
    %v1087 = vpack.c.b16 %v995, %v991
    %v1088 = vpack.c.b16 %v996, %v992
    %v1089 = vpack.c.b16 %v997, %v993
    %v1090 = vpack.c.b16 %v1002, %v998
    %v1091 = vpack.c.b16 %v1003, %v999
    %v1092 = vpack.c.b16 %v1004, %v1000
    %v1093 = vpack.c.b16 %v1005, %v1001
    %v1094 = vpack.c.b16 %v1010, %v1006
    %v1095 = vpack.c.b16 %v1011, %v1007
    %v1096 = vpack.c.b16 %v1012, %v1008
    %v1097 = vpack.c.b16 %v1013, %v1009
    %v1098 = vpack.c.b16 %v1018, %v1014
    %v1099 = vpack.c.b16 %v1019, %v1015
    %v1100 = vpack.c.b16 %v1020, %v1016
    %v1101 = vpack.c.b16 %v1021, %v1017
    %v1102 = vpack.c.b16 %v1026, %v1022
    %v1103 = vpack.c.b16 %v1027, %v1023
    %v1104 = vpack.c.b16 %v1028, %v1024
    %v1105 = vpack.c.b16 %v1029, %v1025
    %v1106 = vpack.c.b16 %v1034, %v1030
    %v1107 = vpack.c.b16 %v1035, %v1031
    %v1108 = vpack.c.b16 %v1036, %v1032
    %v1109 = vpack.c.b16 %v1037, %v1033
    %v1110 = vpack.c.b16 %v1042, %v1038
    %v1111 = vpack.c.b16 %v1043, %v1039
    %v1112 = vpack.c.b16 %v1044, %v1040
    %v1113 = vpack.c.b16 %v1045, %v1041
    %v1114 = vpack.c.b16 %v1050, %v1046
    %v1115 = vpack.c.b16 %v1051, %v1047
    %v1116 = vpack.c.b16 %v1052, %v1048
    %v1117 = vpack.c.b16 %v1053, %v1049
    %1182 = vmatprep.subr.bf16.mxu0 %v1055
    %1183 = vmatpush1.bf16.msra.mxu0 %v1054
    %1184 = vmatprep.subr.bf16.mxu0 %v1059
    %1185 = vmatpush1.bf16.msra.mxu0 %v1058
    %1186 = vmatprep.subr.bf16.mxu0 %v1063
    %1187 = vmatpush1.bf16.msra.mxu0 %v1062
    %1188 = vmatprep.subr.bf16.mxu0 %v1067
    %1189 = vmatpush1.bf16.msra.mxu0 %v1066
    %1190 = vmatprep.subr.bf16.mxu0 %v1071
    %1191 = vmatpush1.bf16.msra.mxu0 %v1070
    %1192 = vmatprep.subr.bf16.mxu0 %v1075
    %1193 = vmatpush1.bf16.msra.mxu0 %v1074
    %1194 = vmatprep.subr.bf16.mxu0 %v1079
    %1195 = vmatpush1.bf16.msra.mxu0 %v1078
    %1196 = vmatprep.subr.bf16.mxu0 %v1083
    %1197 = vmatpush1.bf16.msra.mxu0 %v1082
    %1198 = vmatprep.subr.bf16.mxu0 %v1087
    %1199 = vmatpush1.bf16.msra.mxu0 %v1086
    %1200 = vmatprep.subr.bf16.mxu0 %v1091
    %1201 = vmatpush1.bf16.msra.mxu0 %v1090
    %1202 = vmatprep.subr.bf16.mxu0 %v1095
    %1203 = vmatpush1.bf16.msra.mxu0 %v1094
    %1204 = vmatprep.subr.bf16.mxu0 %v1099
    %1205 = vmatpush1.bf16.msra.mxu0 %v1098
    %1206 = vmatprep.subr.bf16.mxu0 %v1103
    %1207 = vmatpush1.bf16.msra.mxu0 %v1102
    %1208 = vmatprep.subr.bf16.mxu0 %v1107
    %1209 = vmatpush1.bf16.msra.mxu0 %v1106
    %1210 = vmatprep.subr.bf16.mxu0 %v1111
    %1211 = vmatpush1.bf16.msra.mxu0 %v1110
    %1212 = vmatprep.subr.bf16.mxu0 %v1115
    %1213 = vmatpush1.bf16.msra.mxu0 %v1114
    %1214 = vmatprep.mubr.bf16.mxu0 %v838
    %1215 = vmatmul.mubr.bf16.gmra.mrb[0].mxu0 %v837
    %v1216 = vpop.f32.mrb[0].mxu0
    %v1217 = vadd.f32 %v845, %v1216
    %v1218 = vpop.f32.mrb[0].mxu0
    %v1219 = vadd.f32 %v849, %v1218
    %v1220 = vpop.f32.mrb[0].mxu0
    %v1221 = vpop.f32.mrb[0].mxu0
    %1222 = vdwg.mxu0
    %1223 = vmatprep.subr.bf16.mxu0 %v1057
    %1224 = vmatpush1.bf16.msra.mxu0 %v1056
    %1225 = vmatprep.subr.bf16.mxu0 %v1061
    %1226 = vmatpush1.bf16.msra.mxu0 %v1060
    %1227 = vmatprep.subr.bf16.mxu0 %v1065
    %1228 = vmatpush1.bf16.msra.mxu0 %v1064
    %1229 = vmatprep.subr.bf16.mxu0 %v1069
    %1230 = vmatpush1.bf16.msra.mxu0 %v1068
    %1231 = vmatprep.subr.bf16.mxu0 %v1073
    %1232 = vmatpush1.bf16.msra.mxu0 %v1072
    %1233 = vmatprep.subr.bf16.mxu0 %v1077
    %1234 = vmatpush1.bf16.msra.mxu0 %v1076
    %1235 = vmatprep.subr.bf16.mxu0 %v1081
    %1236 = vmatpush1.bf16.msra.mxu0 %v1080
    %1237 = vmatprep.subr.bf16.mxu0 %v1085
    %1238 = vmatpush1.bf16.msra.mxu0 %v1084
    %1239 = vmatprep.subr.bf16.mxu0 %v1089
    %1240 = vmatpush1.bf16.msra.mxu0 %v1088
    %1241 = vmatprep.subr.bf16.mxu0 %v1093
    %1242 = vmatpush1.bf16.msra.mxu0 %v1092
    %1243 = vmatprep.subr.bf16.mxu0 %v1097
    %1244 = vmatpush1.bf16.msra.mxu0 %v1096
    %1245 = vmatprep.subr.bf16.mxu0 %v1101
    %1246 = vmatpush1.bf16.msra.mxu0 %v1100
    %1247 = vmatprep.subr.bf16.mxu0 %v1105
    %1248 = vmatpush1.bf16.msra.mxu0 %v1104
    %1249 = vmatprep.subr.bf16.mxu0 %v1109
    %1250 = vmatpush1.bf16.msra.mxu0 %v1108
    %1251 = vmatprep.subr.bf16.mxu0 %v1113
    %1252 = vmatpush1.bf16.msra.mxu0 %v1112
    %1253 = vmatprep.subr.bf16.mxu0 %v1117
    %1254 = vmatpush1.bf16.msra.mxu0 %v1116
    %1255 = vmatprep.mubr.bf16.mxu0 %v838
    %1256 = vmatmul.mubr.bf16.gmra.mrb[0].mxu0 %v837
    %v1257 = vpop.f32.mrb[0].mxu0
    %v1258 = vadd.f32 %v853, %v1257
    %v1259 = vpop.f32.mrb[0].mxu0
    %v1260 = vadd.f32 %v857, %v1259
    %v1261 = vpop.f32.mrb[0].mxu0
    %v1262 = vpop.f32.mrb[0].mxu0
    %1263 = vdwg.mxu0
    %v1264 = vmax.f32 %v1217, 0.0
    %v1265 = vmax.f32 %v1219, 0.0
    %v1266 = vmax.f32 %v1258, 0.0
    %v1267 = vmax.f32 %v1260, 0.0
    %v1268 = vld [vmem:[#allocation11] sm:$0xff]
    %v1269 = vld [vmem:[#allocation11 + $0x8] sm:$0xff]
    %v1270 = vld [vmem:[#allocation11 + $0x10] sm:$0xff]
    %v1271 = vld [vmem:[#allocation11 + $0x18] sm:$0xff]
    %v1272 = vld [vmem:[#allocation11 + $0x20] sm:$0xff]
    %v1273 = vld [vmem:[#allocation11 + $0x28] sm:$0xff]
    %v1274 = vld [vmem:[#allocation11 + $0x30] sm:$0xff]
    %v1275 = vld [vmem:[#allocation11 + $0x38] sm:$0xff]
    %v1276 = vld [vmem:[#allocation11 + $0x40] sm:$0xff]
    %v1277 = vld [vmem:[#allocation11 + $0x48] sm:$0xff]
    %v1278 = vld [vmem:[#allocation11 + $0x50] sm:$0xff]
    %v1279 = vld [vmem:[#allocation11 + $0x58] sm:$0xff]
    %v1280 = vld [vmem:[#allocation11 + $0x60] sm:$0xff]
    %v1281 = vld [vmem:[#allocation11 + $0x68] sm:$0xff]
    %v1282 = vld [vmem:[#allocation11 + $0x70] sm:$0xff]
    %v1283 = vld [vmem:[#allocation11 + $0x78] sm:$0xff]
    %v1284 = vld [vmem:[#allocation11 + $0x80] sm:$0xff]
    %v1285 = vld [vmem:[#allocation11 + $0x88] sm:$0xff]
    %v1286 = vld [vmem:[#allocation11 + $0x90] sm:$0xff]
    %v1287 = vld [vmem:[#allocation11 + $0x98] sm:$0xff]
    %v1288 = vld [vmem:[#allocation11 + $0xa0] sm:$0xff]
    %v1289 = vld [vmem:[#allocation11 + $0xa8] sm:$0xff]
    %v1290 = vld [vmem:[#allocation11 + $0xb0] sm:$0xff]
    %v1291 = vld [vmem:[#allocation11 + $0xb8] sm:$0xff]
    %v1292 = vld [vmem:[#allocation11 + $0xc0] sm:$0xff]
    %v1293 = vld [vmem:[#allocation11 + $0xc8] sm:$0xff]
    %v1294 = vld [vmem:[#allocation11 + $0xd0] sm:$0xff]
    %v1295 = vld [vmem:[#allocation11 + $0xd8] sm:$0xff]
    %v1296 = vld [vmem:[#allocation11 + $0xe0] sm:$0xff]
    %v1297 = vld [vmem:[#allocation11 + $0xe8] sm:$0xff]
    %v1298 = vld [vmem:[#allocation11 + $0xf0] sm:$0xff]
    %v1299 = vld [vmem:[#allocation11 + $0xf8] sm:$0xff]
    %v1300 = vld [vmem:[#allocation11 + $0x100] sm:$0xff]
    %v1301 = vld [vmem:[#allocation11 + $0x108] sm:$0xff]
    %v1302 = vld [vmem:[#allocation11 + $0x110] sm:$0xff]
    %v1303 = vld [vmem:[#allocation11 + $0x118] sm:$0xff]
    %v1304 = vld [vmem:[#allocation11 + $0x120] sm:$0xff]
    %v1305 = vld [vmem:[#allocation11 + $0x128] sm:$0xff]
    %v1306 = vld [vmem:[#allocation11 + $0x130] sm:$0xff]
    %v1307 = vld [vmem:[#allocation11 + $0x138] sm:$0xff]
    %v1308 = vld [vmem:[#allocation11 + $0x140] sm:$0xff]
    %v1309 = vld [vmem:[#allocation11 + $0x148] sm:$0xff]
    %v1310 = vld [vmem:[#allocation11 + $0x150] sm:$0xff]
    %v1311 = vld [vmem:[#allocation11 + $0x158] sm:$0xff]
    %v1312 = vld [vmem:[#allocation11 + $0x160] sm:$0xff]
    %v1313 = vld [vmem:[#allocation11 + $0x168] sm:$0xff]
    %v1314 = vld [vmem:[#allocation11 + $0x170] sm:$0xff]
    %v1315 = vld [vmem:[#allocation11 + $0x178] sm:$0xff]
    %v1316 = vld [vmem:[#allocation11 + $0x180] sm:$0xff]
    %v1317 = vld [vmem:[#allocation11 + $0x188] sm:$0xff]
    %v1318 = vld [vmem:[#allocation11 + $0x190] sm:$0xff]
    %v1319 = vld [vmem:[#allocation11 + $0x198] sm:$0xff]
    %v1320 = vld [vmem:[#allocation11 + $0x1a0] sm:$0xff]
    %v1321 = vld [vmem:[#allocation11 + $0x1a8] sm:$0xff]
    %v1322 = vld [vmem:[#allocation11 + $0x1b0] sm:$0xff]
    %v1323 = vld [vmem:[#allocation11 + $0x1b8] sm:$0xff]
    %v1324 = vld [vmem:[#allocation11 + $0x1c0] sm:$0xff]
    %v1325 = vld [vmem:[#allocation11 + $0x1c8] sm:$0xff]
    %v1326 = vld [vmem:[#allocation11 + $0x1d0] sm:$0xff]
    %v1327 = vld [vmem:[#allocation11 + $0x1d8] sm:$0xff]
    %v1328 = vld [vmem:[#allocation11 + $0x1e0] sm:$0xff]
    %v1329 = vld [vmem:[#allocation11 + $0x1e8] sm:$0xff]
    %v1330 = vld [vmem:[#allocation11 + $0x1f0] sm:$0xff]
    %v1331 = vld [vmem:[#allocation11 + $0x1f8] sm:$0xff]
    %v1332 = vld [vmem:[#allocation11 + $0x200] sm:$0xff]
    %v1333 = vld [vmem:[#allocation11 + $0x208] sm:$0xff]
    %v1334 = vld [vmem:[#allocation11 + $0x210] sm:$0xff]
    %v1335 = vld [vmem:[#allocation11 + $0x218] sm:$0xff]
    %v1336 = vld [vmem:[#allocation11 + $0x220] sm:$0xff]
    %v1337 = vld [vmem:[#allocation11 + $0x228] sm:$0xff]
    %v1338 = vld [vmem:[#allocation11 + $0x230] sm:$0xff]
    %v1339 = vld [vmem:[#allocation11 + $0x238] sm:$0xff]
    %v1340 = vld [vmem:[#allocation11 + $0x240] sm:$0xff]
    %v1341 = vld [vmem:[#allocation11 + $0x248] sm:$0xff]
    %v1342 = vld [vmem:[#allocation11 + $0x250] sm:$0xff]
    %v1343 = vld [vmem:[#allocation11 + $0x258] sm:$0xff]
    %v1344 = vld [vmem:[#allocation11 + $0x260] sm:$0xff]
    %v1345 = vld [vmem:[#allocation11 + $0x268] sm:$0xff]
    %v1346 = vld [vmem:[#allocation11 + $0x270] sm:$0xff]
    %v1347 = vld [vmem:[#allocation11 + $0x278] sm:$0xff]
    %v1348 = vld [vmem:[#allocation11 + $0x280] sm:$0xff]
    %v1349 = vld [vmem:[#allocation11 + $0x288] sm:$0xff]
    %v1350 = vld [vmem:[#allocation11 + $0x290] sm:$0xff]
    %v1351 = vld [vmem:[#allocation11 + $0x298] sm:$0xff]
    %v1352 = vld [vmem:[#allocation11 + $0x2a0] sm:$0xff]
    %v1353 = vld [vmem:[#allocation11 + $0x2a8] sm:$0xff]
    %v1354 = vld [vmem:[#allocation11 + $0x2b0] sm:$0xff]
    %v1355 = vld [vmem:[#allocation11 + $0x2b8] sm:$0xff]
    %v1356 = vld [vmem:[#allocation11 + $0x2c0] sm:$0xff]
    %v1357 = vld [vmem:[#allocation11 + $0x2c8] sm:$0xff]
    %v1358 = vld [vmem:[#allocation11 + $0x2d0] sm:$0xff]
    %v1359 = vld [vmem:[#allocation11 + $0x2d8] sm:$0xff]
    %v1360 = vld [vmem:[#allocation11 + $0x2e0] sm:$0xff]
    %v1361 = vld [vmem:[#allocation11 + $0x2e8] sm:$0xff]
    %v1362 = vld [vmem:[#allocation11 + $0x2f0] sm:$0xff]
    %v1363 = vld [vmem:[#allocation11 + $0x2f8] sm:$0xff]
    %v1364 = vld [vmem:[#allocation11 + $0x300] sm:$0xff]
    %v1365 = vld [vmem:[#allocation11 + $0x308] sm:$0xff]
    %v1366 = vld [vmem:[#allocation11 + $0x310] sm:$0xff]
    %v1367 = vld [vmem:[#allocation11 + $0x318] sm:$0xff]
    %v1368 = vld [vmem:[#allocation11 + $0x320] sm:$0xff]
    %v1369 = vld [vmem:[#allocation11 + $0x328] sm:$0xff]
    %v1370 = vld [vmem:[#allocation11 + $0x330] sm:$0xff]
    %v1371 = vld [vmem:[#allocation11 + $0x338] sm:$0xff]
    %v1372 = vld [vmem:[#allocation11 + $0x340] sm:$0xff]
    %v1373 = vld [vmem:[#allocation11 + $0x348] sm:$0xff]
    %v1374 = vld [vmem:[#allocation11 + $0x350] sm:$0xff]
    %v1375 = vld [vmem:[#allocation11 + $0x358] sm:$0xff]
    %v1376 = vld [vmem:[#allocation11 + $0x360] sm:$0xff]
    %v1377 = vld [vmem:[#allocation11 + $0x368] sm:$0xff]
    %v1378 = vld [vmem:[#allocation11 + $0x370] sm:$0xff]
    %v1379 = vld [vmem:[#allocation11 + $0x378] sm:$0xff]
    %v1380 = vld [vmem:[#allocation11 + $0x380] sm:$0xff]
    %v1381 = vld [vmem:[#allocation11 + $0x388] sm:$0xff]
    %v1382 = vld [vmem:[#allocation11 + $0x390] sm:$0xff]
    %v1383 = vld [vmem:[#allocation11 + $0x398] sm:$0xff]
    %v1384 = vld [vmem:[#allocation11 + $0x3a0] sm:$0xff]
    %v1385 = vld [vmem:[#allocation11 + $0x3a8] sm:$0xff]
    %v1386 = vld [vmem:[#allocation11 + $0x3b0] sm:$0xff]
    %v1387 = vld [vmem:[#allocation11 + $0x3b8] sm:$0xff]
    %v1388 = vld [vmem:[#allocation11 + $0x3c0] sm:$0xff]
    %v1389 = vld [vmem:[#allocation11 + $0x3c8] sm:$0xff]
    %v1390 = vld [vmem:[#allocation11 + $0x3d0] sm:$0xff]
    %v1391 = vld [vmem:[#allocation11 + $0x3d8] sm:$0xff]
    %v1392 = vld [vmem:[#allocation11 + $0x3e0] sm:$0xff]
    %v1393 = vld [vmem:[#allocation11 + $0x3e8] sm:$0xff]
    %v1394 = vld [vmem:[#allocation11 + $0x3f0] sm:$0xff]
    %v1395 = vld [vmem:[#allocation11 + $0x3f8] sm:$0xff]
    %v1396 = vpack.c.bf16 %v1264, %v1264
    %v1397 = vpack.c.bf16 %v1265, %v1265
    %v1398 = vpack.c.bf16 %v1266, %v1266
    %v1399 = vpack.c.bf16 %v1267, %v1267
    %s1400 = scalar_lea.vmem [#allocation16], 5
    %v1401 = vld [vmem:[%s1400] ss:$8 sm:$0xf]
    %v1403 = vlaneseq
    %v1404 = vshrl.u32 %v1403, 7
    %v1405 = vsub.s32 0, %v1404
    %v1406 = vrot.slane %v1401, %v1405
    %v1407 = vlaneseq
    %v1408 = vshrl.u32 %v1407, 7
    %v1409 = vsub.s32 1, %v1408
    %v1410 = vrot.slane %v1401, %v1409
    %v1411 = vlaneseq
    %v1412 = vshrl.u32 %v1411, 7
    %v1413 = vsub.s32 2, %v1412
    %v1414 = vrot.slane %v1401, %v1413
    %v1415 = vlaneseq
    %v1416 = vshrl.u32 %v1415, 7
    %v1417 = vsub.s32 3, %v1416
    %v1418 = vrot.slane %v1401, %v1417
    %v1551 = vunpack.c.l.b16 %v1268
    %v1552 = vunpack.c.h.b16 %v1268
    %v1553 = vunpack.c.l.b16 %v1269
    %v1554 = vunpack.c.h.b16 %v1269
    %v1555 = vunpack.c.l.b16 %v1270
    %v1556 = vunpack.c.h.b16 %v1270
    %v1557 = vunpack.c.l.b16 %v1271
    %v1558 = vunpack.c.h.b16 %v1271
    %v1559 = vunpack.c.l.b16 %v1272
    %v1560 = vunpack.c.h.b16 %v1272
    %v1561 = vunpack.c.l.b16 %v1273
    %v1562 = vunpack.c.h.b16 %v1273
    %v1563 = vunpack.c.l.b16 %v1274
    %v1564 = vunpack.c.h.b16 %v1274
    %v1565 = vunpack.c.l.b16 %v1275
    %v1566 = vunpack.c.h.b16 %v1275
    %v1567 = vunpack.c.l.b16 %v1276
    %v1568 = vunpack.c.h.b16 %v1276
    %v1569 = vunpack.c.l.b16 %v1277
    %v1570 = vunpack.c.h.b16 %v1277
    %v1571 = vunpack.c.l.b16 %v1278
    %v1572 = vunpack.c.h.b16 %v1278
    %v1573 = vunpack.c.l.b16 %v1279
    %v1574 = vunpack.c.h.b16 %v1279
    %v1575 = vunpack.c.l.b16 %v1280
    %v1576 = vunpack.c.h.b16 %v1280
    %v1577 = vunpack.c.l.b16 %v1281
    %v1578 = vunpack.c.h.b16 %v1281
    %v1579 = vunpack.c.l.b16 %v1282
    %v1580 = vunpack.c.h.b16 %v1282
    %v1581 = vunpack.c.l.b16 %v1283
    %v1582 = vunpack.c.h.b16 %v1283
    %v1583 = vunpack.c.l.b16 %v1284
    %v1584 = vunpack.c.h.b16 %v1284
    %v1585 = vunpack.c.l.b16 %v1285
    %v1586 = vunpack.c.h.b16 %v1285
    %v1587 = vunpack.c.l.b16 %v1286
    %v1588 = vunpack.c.h.b16 %v1286
    %v1589 = vunpack.c.l.b16 %v1287
    %v1590 = vunpack.c.h.b16 %v1287
    %v1591 = vunpack.c.l.b16 %v1288
    %v1592 = vunpack.c.h.b16 %v1288
    %v1593 = vunpack.c.l.b16 %v1289
    %v1594 = vunpack.c.h.b16 %v1289
    %v1595 = vunpack.c.l.b16 %v1290
    %v1596 = vunpack.c.h.b16 %v1290
    %v1597 = vunpack.c.l.b16 %v1291
    %v1598 = vunpack.c.h.b16 %v1291
    %v1599 = vunpack.c.l.b16 %v1292
    %v1600 = vunpack.c.h.b16 %v1292
    %v1601 = vunpack.c.l.b16 %v1293
    %v1602 = vunpack.c.h.b16 %v1293
    %v1603 = vunpack.c.l.b16 %v1294
    %v1604 = vunpack.c.h.b16 %v1294
    %v1605 = vunpack.c.l.b16 %v1295
    %v1606 = vunpack.c.h.b16 %v1295
    %v1607 = vunpack.c.l.b16 %v1296
    %v1608 = vunpack.c.h.b16 %v1296
    %v1609 = vunpack.c.l.b16 %v1297
    %v1610 = vunpack.c.h.b16 %v1297
    %v1611 = vunpack.c.l.b16 %v1298
    %v1612 = vunpack.c.h.b16 %v1298
    %v1613 = vunpack.c.l.b16 %v1299
    %v1614 = vunpack.c.h.b16 %v1299
    %v1615 = vunpack.c.l.b16 %v1300
    %v1616 = vunpack.c.h.b16 %v1300
    %v1617 = vunpack.c.l.b16 %v1301
    %v1618 = vunpack.c.h.b16 %v1301
    %v1619 = vunpack.c.l.b16 %v1302
    %v1620 = vunpack.c.h.b16 %v1302
    %v1621 = vunpack.c.l.b16 %v1303
    %v1622 = vunpack.c.h.b16 %v1303
    %v1623 = vunpack.c.l.b16 %v1304
    %v1624 = vunpack.c.h.b16 %v1304
    %v1625 = vunpack.c.l.b16 %v1305
    %v1626 = vunpack.c.h.b16 %v1305
    %v1627 = vunpack.c.l.b16 %v1306
    %v1628 = vunpack.c.h.b16 %v1306
    %v1629 = vunpack.c.l.b16 %v1307
    %v1630 = vunpack.c.h.b16 %v1307
    %v1631 = vunpack.c.l.b16 %v1308
    %v1632 = vunpack.c.h.b16 %v1308
    %v1633 = vunpack.c.l.b16 %v1309
    %v1634 = vunpack.c.h.b16 %v1309
    %v1635 = vunpack.c.l.b16 %v1310
    %v1636 = vunpack.c.h.b16 %v1310
    %v1637 = vunpack.c.l.b16 %v1311
    %v1638 = vunpack.c.h.b16 %v1311
    %v1639 = vunpack.c.l.b16 %v1312
    %v1640 = vunpack.c.h.b16 %v1312
    %v1641 = vunpack.c.l.b16 %v1313
    %v1642 = vunpack.c.h.b16 %v1313
    %v1643 = vunpack.c.l.b16 %v1314
    %v1644 = vunpack.c.h.b16 %v1314
    %v1645 = vunpack.c.l.b16 %v1315
    %v1646 = vunpack.c.h.b16 %v1315
    %v1647 = vunpack.c.l.b16 %v1316
    %v1648 = vunpack.c.h.b16 %v1316
    %v1649 = vunpack.c.l.b16 %v1317
    %v1650 = vunpack.c.h.b16 %v1317
    %v1651 = vunpack.c.l.b16 %v1318
    %v1652 = vunpack.c.h.b16 %v1318
    %v1653 = vunpack.c.l.b16 %v1319
    %v1654 = vunpack.c.h.b16 %v1319
    %v1655 = vunpack.c.l.b16 %v1320
    %v1656 = vunpack.c.h.b16 %v1320
    %v1657 = vunpack.c.l.b16 %v1321
    %v1658 = vunpack.c.h.b16 %v1321
    %v1659 = vunpack.c.l.b16 %v1322
    %v1660 = vunpack.c.h.b16 %v1322
    %v1661 = vunpack.c.l.b16 %v1323
    %v1662 = vunpack.c.h.b16 %v1323
    %v1663 = vunpack.c.l.b16 %v1324
    %v1664 = vunpack.c.h.b16 %v1324
    %v1665 = vunpack.c.l.b16 %v1325
    %v1666 = vunpack.c.h.b16 %v1325
    %v1667 = vunpack.c.l.b16 %v1326
    %v1668 = vunpack.c.h.b16 %v1326
    %v1669 = vunpack.c.l.b16 %v1327
    %v1670 = vunpack.c.h.b16 %v1327
    %v1671 = vunpack.c.l.b16 %v1328
    %v1672 = vunpack.c.h.b16 %v1328
    %v1673 = vunpack.c.l.b16 %v1329
    %v1674 = vunpack.c.h.b16 %v1329
    %v1675 = vunpack.c.l.b16 %v1330
    %v1676 = vunpack.c.h.b16 %v1330
    %v1677 = vunpack.c.l.b16 %v1331
    %v1678 = vunpack.c.h.b16 %v1331
    %v1679 = vunpack.c.l.b16 %v1332
    %v1680 = vunpack.c.h.b16 %v1332
    %v1681 = vunpack.c.l.b16 %v1333
    %v1682 = vunpack.c.h.b16 %v1333
    %v1683 = vunpack.c.l.b16 %v1334
    %v1684 = vunpack.c.h.b16 %v1334
    %v1685 = vunpack.c.l.b16 %v1335
    %v1686 = vunpack.c.h.b16 %v1335
    %v1687 = vunpack.c.l.b16 %v1336
    %v1688 = vunpack.c.h.b16 %v1336
    %v1689 = vunpack.c.l.b16 %v1337
    %v1690 = vunpack.c.h.b16 %v1337
    %v1691 = vunpack.c.l.b16 %v1338
    %v1692 = vunpack.c.h.b16 %v1338
    %v1693 = vunpack.c.l.b16 %v1339
    %v1694 = vunpack.c.h.b16 %v1339
    %v1695 = vunpack.c.l.b16 %v1340
    %v1696 = vunpack.c.h.b16 %v1340
    %v1697 = vunpack.c.l.b16 %v1341
    %v1698 = vunpack.c.h.b16 %v1341
    %v1699 = vunpack.c.l.b16 %v1342
    %v1700 = vunpack.c.h.b16 %v1342
    %v1701 = vunpack.c.l.b16 %v1343
    %v1702 = vunpack.c.h.b16 %v1343
    %v1703 = vunpack.c.l.b16 %v1344
    %v1704 = vunpack.c.h.b16 %v1344
    %v1705 = vunpack.c.l.b16 %v1345
    %v1706 = vunpack.c.h.b16 %v1345
    %v1707 = vunpack.c.l.b16 %v1346
    %v1708 = vunpack.c.h.b16 %v1346
    %v1709 = vunpack.c.l.b16 %v1347
    %v1710 = vunpack.c.h.b16 %v1347
    %v1711 = vunpack.c.l.b16 %v1348
    %v1712 = vunpack.c.h.b16 %v1348
    %v1713 = vunpack.c.l.b16 %v1349
    %v1714 = vunpack.c.h.b16 %v1349
    %v1715 = vunpack.c.l.b16 %v1350
    %v1716 = vunpack.c.h.b16 %v1350
    %v1717 = vunpack.c.l.b16 %v1351
    %v1718 = vunpack.c.h.b16 %v1351
    %v1719 = vunpack.c.l.b16 %v1352
    %v1720 = vunpack.c.h.b16 %v1352
    %v1721 = vunpack.c.l.b16 %v1353
    %v1722 = vunpack.c.h.b16 %v1353
    %v1723 = vunpack.c.l.b16 %v1354
    %v1724 = vunpack.c.h.b16 %v1354
    %v1725 = vunpack.c.l.b16 %v1355
    %v1726 = vunpack.c.h.b16 %v1355
    %v1727 = vunpack.c.l.b16 %v1356
    %v1728 = vunpack.c.h.b16 %v1356
    %v1729 = vunpack.c.l.b16 %v1357
    %v1730 = vunpack.c.h.b16 %v1357
    %v1731 = vunpack.c.l.b16 %v1358
    %v1732 = vunpack.c.h.b16 %v1358
    %v1733 = vunpack.c.l.b16 %v1359
    %v1734 = vunpack.c.h.b16 %v1359
    %v1735 = vunpack.c.l.b16 %v1360
    %v1736 = vunpack.c.h.b16 %v1360
    %v1737 = vunpack.c.l.b16 %v1361
    %v1738 = vunpack.c.h.b16 %v1361
    %v1739 = vunpack.c.l.b16 %v1362
    %v1740 = vunpack.c.h.b16 %v1362
    %v1741 = vunpack.c.l.b16 %v1363
    %v1742 = vunpack.c.h.b16 %v1363
    %v1743 = vunpack.c.l.b16 %v1364
    %v1744 = vunpack.c.h.b16 %v1364
    %v1745 = vunpack.c.l.b16 %v1365
    %v1746 = vunpack.c.h.b16 %v1365
    %v1747 = vunpack.c.l.b16 %v1366
    %v1748 = vunpack.c.h.b16 %v1366
    %v1749 = vunpack.c.l.b16 %v1367
    %v1750 = vunpack.c.h.b16 %v1367
    %v1751 = vunpack.c.l.b16 %v1368
    %v1752 = vunpack.c.h.b16 %v1368
    %v1753 = vunpack.c.l.b16 %v1369
    %v1754 = vunpack.c.h.b16 %v1369
    %v1755 = vunpack.c.l.b16 %v1370
    %v1756 = vunpack.c.h.b16 %v1370
    %v1757 = vunpack.c.l.b16 %v1371
    %v1758 = vunpack.c.h.b16 %v1371
    %v1759 = vunpack.c.l.b16 %v1372
    %v1760 = vunpack.c.h.b16 %v1372
    %v1761 = vunpack.c.l.b16 %v1373
    %v1762 = vunpack.c.h.b16 %v1373
    %v1763 = vunpack.c.l.b16 %v1374
    %v1764 = vunpack.c.h.b16 %v1374
    %v1765 = vunpack.c.l.b16 %v1375
    %v1766 = vunpack.c.h.b16 %v1375
    %v1767 = vunpack.c.l.b16 %v1376
    %v1768 = vunpack.c.h.b16 %v1376
    %v1769 = vunpack.c.l.b16 %v1377
    %v1770 = vunpack.c.h.b16 %v1377
    %v1771 = vunpack.c.l.b16 %v1378
    %v1772 = vunpack.c.h.b16 %v1378
    %v1773 = vunpack.c.l.b16 %v1379
    %v1774 = vunpack.c.h.b16 %v1379
    %v1775 = vunpack.c.l.b16 %v1380
    %v1776 = vunpack.c.h.b16 %v1380
    %v1777 = vunpack.c.l.b16 %v1381
    %v1778 = vunpack.c.h.b16 %v1381
    %v1779 = vunpack.c.l.b16 %v1382
    %v1780 = vunpack.c.h.b16 %v1382
    %v1781 = vunpack.c.l.b16 %v1383
    %v1782 = vunpack.c.h.b16 %v1383
    %v1783 = vunpack.c.l.b16 %v1384
    %v1784 = vunpack.c.h.b16 %v1384
    %v1785 = vunpack.c.l.b16 %v1385
    %v1786 = vunpack.c.h.b16 %v1385
    %v1787 = vunpack.c.l.b16 %v1386
    %v1788 = vunpack.c.h.b16 %v1386
    %v1789 = vunpack.c.l.b16 %v1387
    %v1790 = vunpack.c.h.b16 %v1387
    %v1791 = vunpack.c.l.b16 %v1388
    %v1792 = vunpack.c.h.b16 %v1388
    %v1793 = vunpack.c.l.b16 %v1389
    %v1794 = vunpack.c.h.b16 %v1389
    %v1795 = vunpack.c.l.b16 %v1390
    %v1796 = vunpack.c.h.b16 %v1390
    %v1797 = vunpack.c.l.b16 %v1391
    %v1798 = vunpack.c.h.b16 %v1391
    %v1799 = vunpack.c.l.b16 %v1392
    %v1800 = vunpack.c.h.b16 %v1392
    %v1801 = vunpack.c.l.b16 %v1393
    %v1802 = vunpack.c.h.b16 %v1393
    %v1803 = vunpack.c.l.b16 %v1394
    %v1804 = vunpack.c.h.b16 %v1394
    %v1805 = vunpack.c.l.b16 %v1395
    %v1806 = vunpack.c.h.b16 %v1395
    %v1807 = vpack.c.b16 %v1555, %v1551
    %v1808 = vpack.c.b16 %v1556, %v1552
    %v1809 = vpack.c.b16 %v1557, %v1553
    %v1810 = vpack.c.b16 %v1558, %v1554
    %v1811 = vpack.c.b16 %v1563, %v1559
    %v1812 = vpack.c.b16 %v1564, %v1560
    %v1813 = vpack.c.b16 %v1565, %v1561
    %v1814 = vpack.c.b16 %v1566, %v1562
    %v1815 = vpack.c.b16 %v1571, %v1567
    %v1816 = vpack.c.b16 %v1572, %v1568
    %v1817 = vpack.c.b16 %v1573, %v1569
    %v1818 = vpack.c.b16 %v1574, %v1570
    %v1819 = vpack.c.b16 %v1579, %v1575
    %v1820 = vpack.c.b16 %v1580, %v1576
    %v1821 = vpack.c.b16 %v1581, %v1577
    %v1822 = vpack.c.b16 %v1582, %v1578
    %v1823 = vpack.c.b16 %v1587, %v1583
    %v1824 = vpack.c.b16 %v1588, %v1584
    %v1825 = vpack.c.b16 %v1589, %v1585
    %v1826 = vpack.c.b16 %v1590, %v1586
    %v1827 = vpack.c.b16 %v1595, %v1591
    %v1828 = vpack.c.b16 %v1596, %v1592
    %v1829 = vpack.c.b16 %v1597, %v1593
    %v1830 = vpack.c.b16 %v1598, %v1594
    %v1831 = vpack.c.b16 %v1603, %v1599
    %v1832 = vpack.c.b16 %v1604, %v1600
    %v1833 = vpack.c.b16 %v1605, %v1601
    %v1834 = vpack.c.b16 %v1606, %v1602
    %v1835 = vpack.c.b16 %v1611, %v1607
    %v1836 = vpack.c.b16 %v1612, %v1608
    %v1837 = vpack.c.b16 %v1613, %v1609
    %v1838 = vpack.c.b16 %v1614, %v1610
    %v1839 = vpack.c.b16 %v1619, %v1615
    %v1840 = vpack.c.b16 %v1620, %v1616
    %v1841 = vpack.c.b16 %v1621, %v1617
    %v1842 = vpack.c.b16 %v1622, %v1618
    %v1843 = vpack.c.b16 %v1627, %v1623
    %v1844 = vpack.c.b16 %v1628, %v1624
    %v1845 = vpack.c.b16 %v1629, %v1625
    %v1846 = vpack.c.b16 %v1630, %v1626
    %v1847 = vpack.c.b16 %v1635, %v1631
    %v1848 = vpack.c.b16 %v1636, %v1632
    %v1849 = vpack.c.b16 %v1637, %v1633
    %v1850 = vpack.c.b16 %v1638, %v1634
    %v1851 = vpack.c.b16 %v1643, %v1639
    %v1852 = vpack.c.b16 %v1644, %v1640
    %v1853 = vpack.c.b16 %v1645, %v1641
    %v1854 = vpack.c.b16 %v1646, %v1642
    %v1855 = vpack.c.b16 %v1651, %v1647
    %v1856 = vpack.c.b16 %v1652, %v1648
    %v1857 = vpack.c.b16 %v1653, %v1649
    %v1858 = vpack.c.b16 %v1654, %v1650
    %v1859 = vpack.c.b16 %v1659, %v1655
    %v1860 = vpack.c.b16 %v1660, %v1656
    %v1861 = vpack.c.b16 %v1661, %v1657
    %v1862 = vpack.c.b16 %v1662, %v1658
    %v1863 = vpack.c.b16 %v1667, %v1663
    %v1864 = vpack.c.b16 %v1668, %v1664
    %v1865 = vpack.c.b16 %v1669, %v1665
    %v1866 = vpack.c.b16 %v1670, %v1666
    %v1867 = vpack.c.b16 %v1675, %v1671
    %v1868 = vpack.c.b16 %v1676, %v1672
    %v1869 = vpack.c.b16 %v1677, %v1673
    %v1870 = vpack.c.b16 %v1678, %v1674
    %v1871 = vpack.c.b16 %v1683, %v1679
    %v1872 = vpack.c.b16 %v1684, %v1680
    %v1873 = vpack.c.b16 %v1685, %v1681
    %v1874 = vpack.c.b16 %v1686, %v1682
    %v1875 = vpack.c.b16 %v1691, %v1687
    %v1876 = vpack.c.b16 %v1692, %v1688
    %v1877 = vpack.c.b16 %v1693, %v1689
    %v1878 = vpack.c.b16 %v1694, %v1690
    %v1879 = vpack.c.b16 %v1699, %v1695
    %v1880 = vpack.c.b16 %v1700, %v1696
    %v1881 = vpack.c.b16 %v1701, %v1697
    %v1882 = vpack.c.b16 %v1702, %v1698
    %v1883 = vpack.c.b16 %v1707, %v1703
    %v1884 = vpack.c.b16 %v1708, %v1704
    %v1885 = vpack.c.b16 %v1709, %v1705
    %v1886 = vpack.c.b16 %v1710, %v1706
    %v1887 = vpack.c.b16 %v1715, %v1711
    %v1888 = vpack.c.b16 %v1716, %v1712
    %v1889 = vpack.c.b16 %v1717, %v1713
    %v1890 = vpack.c.b16 %v1718, %v1714
    %v1891 = vpack.c.b16 %v1723, %v1719
    %v1892 = vpack.c.b16 %v1724, %v1720
    %v1893 = vpack.c.b16 %v1725, %v1721
    %v1894 = vpack.c.b16 %v1726, %v1722
    %v1895 = vpack.c.b16 %v1731, %v1727
    %v1896 = vpack.c.b16 %v1732, %v1728
    %v1897 = vpack.c.b16 %v1733, %v1729
    %v1898 = vpack.c.b16 %v1734, %v1730
    %v1899 = vpack.c.b16 %v1739, %v1735
    %v1900 = vpack.c.b16 %v1740, %v1736
    %v1901 = vpack.c.b16 %v1741, %v1737
    %v1902 = vpack.c.b16 %v1742, %v1738
    %v1903 = vpack.c.b16 %v1747, %v1743
    %v1904 = vpack.c.b16 %v1748, %v1744
    %v1905 = vpack.c.b16 %v1749, %v1745
    %v1906 = vpack.c.b16 %v1750, %v1746
    %v1907 = vpack.c.b16 %v1755, %v1751
    %v1908 = vpack.c.b16 %v1756, %v1752
    %v1909 = vpack.c.b16 %v1757, %v1753
    %v1910 = vpack.c.b16 %v1758, %v1754
    %v1911 = vpack.c.b16 %v1763, %v1759
    %v1912 = vpack.c.b16 %v1764, %v1760
    %v1913 = vpack.c.b16 %v1765, %v1761
    %v1914 = vpack.c.b16 %v1766, %v1762
    %v1915 = vpack.c.b16 %v1771, %v1767
    %v1916 = vpack.c.b16 %v1772, %v1768
    %v1917 = vpack.c.b16 %v1773, %v1769
    %v1918 = vpack.c.b16 %v1774, %v1770
    %v1919 = vpack.c.b16 %v1779, %v1775
    %v1920 = vpack.c.b16 %v1780, %v1776
    %v1921 = vpack.c.b16 %v1781, %v1777
    %v1922 = vpack.c.b16 %v1782, %v1778
    %v1923 = vpack.c.b16 %v1787, %v1783
    %v1924 = vpack.c.b16 %v1788, %v1784
    %v1925 = vpack.c.b16 %v1789, %v1785
    %v1926 = vpack.c.b16 %v1790, %v1786
    %v1927 = vpack.c.b16 %v1795, %v1791
    %v1928 = vpack.c.b16 %v1796, %v1792
    %v1929 = vpack.c.b16 %v1797, %v1793
    %v1930 = vpack.c.b16 %v1798, %v1794
    %v1931 = vpack.c.b16 %v1803, %v1799
    %v1932 = vpack.c.b16 %v1804, %v1800
    %v1933 = vpack.c.b16 %v1805, %v1801
    %v1934 = vpack.c.b16 %v1806, %v1802
    %2063 = vmatprep.subr.bf16.mxu0 %v1808
    %2064 = vmatpush1.bf16.msra.mxu0 %v1807
    %2065 = vmatprep.subr.bf16.mxu0 %v1812
    %2066 = vmatpush1.bf16.msra.mxu0 %v1811
    %2067 = vmatprep.subr.bf16.mxu0 %v1816
    %2068 = vmatpush1.bf16.msra.mxu0 %v1815
    %2069 = vmatprep.subr.bf16.mxu0 %v1820
    %2070 = vmatpush1.bf16.msra.mxu0 %v1819
    %2071 = vmatprep.subr.bf16.mxu0 %v1824
    %2072 = vmatpush1.bf16.msra.mxu0 %v1823
    %2073 = vmatprep.subr.bf16.mxu0 %v1828
    %2074 = vmatpush1.bf16.msra.mxu0 %v1827
    %2075 = vmatprep.subr.bf16.mxu0 %v1832
    %2076 = vmatpush1.bf16.msra.mxu0 %v1831
    %2077 = vmatprep.subr.bf16.mxu0 %v1836
    %2078 = vmatpush1.bf16.msra.mxu0 %v1835
    %2079 = vmatprep.subr.bf16.mxu0 %v1840
    %2080 = vmatpush1.bf16.msra.mxu0 %v1839
    %2081 = vmatprep.subr.bf16.mxu0 %v1844
    %2082 = vmatpush1.bf16.msra.mxu0 %v1843
    %2083 = vmatprep.subr.bf16.mxu0 %v1848
    %2084 = vmatpush1.bf16.msra.mxu0 %v1847
    %2085 = vmatprep.subr.bf16.mxu0 %v1852
    %2086 = vmatpush1.bf16.msra.mxu0 %v1851
    %2087 = vmatprep.subr.bf16.mxu0 %v1856
    %2088 = vmatpush1.bf16.msra.mxu0 %v1855
    %2089 = vmatprep.subr.bf16.mxu0 %v1860
    %2090 = vmatpush1.bf16.msra.mxu0 %v1859
    %2091 = vmatprep.subr.bf16.mxu0 %v1864
    %2092 = vmatpush1.bf16.msra.mxu0 %v1863
    %2093 = vmatprep.subr.bf16.mxu0 %v1868
    %2094 = vmatpush1.bf16.msra.mxu0 %v1867
    %2095 = vmatprep.mubr.bf16.mxu0 %v1397
    %2096 = vmatmul.mubr.bf16.gmra.mrb[0].mxu0 %v1396
    %v2097 = vpop.f32.mrb[0].mxu0
    %v2098 = vadd.f32 %v1406, %v2097
    %v2099 = vpop.f32.mrb[0].mxu0
    %v2100 = vadd.f32 %v1410, %v2099
    %v2101 = vpop.f32.mrb[0].mxu0
    %v2102 = vpop.f32.mrb[0].mxu0
    %2103 = vdwg.mxu0
    %2104 = vmatprep.subr.bf16.mxu0 %v1872
    %2105 = vmatpush1.bf16.msra.mxu0 %v1871
    %2106 = vmatprep.subr.bf16.mxu0 %v1876
    %2107 = vmatpush1.bf16.msra.mxu0 %v1875
    %2108 = vmatprep.subr.bf16.mxu0 %v1880
    %2109 = vmatpush1.bf16.msra.mxu0 %v1879
    %2110 = vmatprep.subr.bf16.mxu0 %v1884
    %2111 = vmatpush1.bf16.msra.mxu0 %v1883
    %2112 = vmatprep.subr.bf16.mxu0 %v1888
    %2113 = vmatpush1.bf16.msra.mxu0 %v1887
    %2114 = vmatprep.subr.bf16.mxu0 %v1892
    %2115 = vmatpush1.bf16.msra.mxu0 %v1891
    %2116 = vmatprep.subr.bf16.mxu0 %v1896
    %2117 = vmatpush1.bf16.msra.mxu0 %v1895
    %2118 = vmatprep.subr.bf16.mxu0 %v1900
    %2119 = vmatpush1.bf16.msra.mxu0 %v1899
    %2120 = vmatprep.subr.bf16.mxu0 %v1904
    %2121 = vmatpush1.bf16.msra.mxu0 %v1903
    %2122 = vmatprep.subr.bf16.mxu0 %v1908
    %2123 = vmatpush1.bf16.msra.mxu0 %v1907
    %2124 = vmatprep.subr.bf16.mxu0 %v1912
    %2125 = vmatpush1.bf16.msra.mxu0 %v1911
    %2126 = vmatprep.subr.bf16.mxu0 %v1916
    %2127 = vmatpush1.bf16.msra.mxu0 %v1915
    %2128 = vmatprep.subr.bf16.mxu0 %v1920
    %2129 = vmatpush1.bf16.msra.mxu0 %v1919
    %2130 = vmatprep.subr.bf16.mxu0 %v1924
    %2131 = vmatpush1.bf16.msra.mxu0 %v1923
    %2132 = vmatprep.subr.bf16.mxu0 %v1928
    %2133 = vmatpush1.bf16.msra.mxu0 %v1927
    %2134 = vmatprep.subr.bf16.mxu0 %v1932
    %2135 = vmatpush1.bf16.msra.mxu0 %v1931
    %2136 = vmatprep.mubr.bf16.mxu0 %v1399
    %2137 = vmatmul.mubr.bf16.gmra.mrb[0].mxu0 %v1398
    %v2138 = vpop.f32.mrb[0].mxu0
    %v2139 = vadd.f32 %v2098, %v2138
    %v2140 = vpop.f32.mrb[0].mxu0
    %v2141 = vadd.f32 %v2100, %v2140
    %v2142 = vpop.f32.mrb[0].mxu0
    %v2143 = vpop.f32.mrb[0].mxu0
    %2144 = vdwg.mxu0
    %2145 = vmatprep.subr.bf16.mxu0 %v1810
    %2146 = vmatpush1.bf16.msra.mxu0 %v1809
    %2147 = vmatprep.subr.bf16.mxu0 %v1814
    %2148 = vmatpush1.bf16.msra.mxu0 %v1813
    %2149 = vmatprep.subr.bf16.mxu0 %v1818
    %2150 = vmatpush1.bf16.msra.mxu0 %v1817
    %2151 = vmatprep.subr.bf16.mxu0 %v1822
    %2152 = vmatpush1.bf16.msra.mxu0 %v1821
    %2153 = vmatprep.subr.bf16.mxu0 %v1826
    %2154 = vmatpush1.bf16.msra.mxu0 %v1825
    %2155 = vmatprep.subr.bf16.mxu0 %v1830
    %2156 = vmatpush1.bf16.msra.mxu0 %v1829
    %2157 = vmatprep.subr.bf16.mxu0 %v1834
    %2158 = vmatpush1.bf16.msra.mxu0 %v1833
    %2159 = vmatprep.subr.bf16.mxu0 %v1838
    %2160 = vmatpush1.bf16.msra.mxu0 %v1837
    %2161 = vmatprep.subr.bf16.mxu0 %v1842
    %2162 = vmatpush1.bf16.msra.mxu0 %v1841
    %2163 = vmatprep.subr.bf16.mxu0 %v1846
    %2164 = vmatpush1.bf16.msra.mxu0 %v1845
    %2165 = vmatprep.subr.bf16.mxu0 %v1850
    %2166 = vmatpush1.bf16.msra.mxu0 %v1849
    %2167 = vmatprep.subr.bf16.mxu0 %v1854
    %2168 = vmatpush1.bf16.msra.mxu0 %v1853
    %2169 = vmatprep.subr.bf16.mxu0 %v1858
    %2170 = vmatpush1.bf16.msra.mxu0 %v1857
    %2171 = vmatprep.subr.bf16.mxu0 %v1862
    %2172 = vmatpush1.bf16.msra.mxu0 %v1861
    %2173 = vmatprep.subr.bf16.mxu0 %v1866
    %2174 = vmatpush1.bf16.msra.mxu0 %v1865
    %2175 = vmatprep.subr.bf16.mxu0 %v1870
    %2176 = vmatpush1.bf16.msra.mxu0 %v1869
    %2177 = vmatprep.mubr.bf16.mxu0 %v1397
    %2178 = vmatmul.mubr.bf16.gmra.mrb[0].mxu0 %v1396
    %v2179 = vpop.f32.mrb[0].mxu0
    %v2180 = vadd.f32 %v1414, %v2179
    %v2181 = vpop.f32.mrb[0].mxu0
    %v2182 = vadd.f32 %v1418, %v2181
    %v2183 = vpop.f32.mrb[0].mxu0
    %v2184 = vpop.f32.mrb[0].mxu0
    %2185 = vdwg.mxu0
    %2186 = vmatprep.subr.bf16.mxu0 %v1874
    %2187 = vmatpush1.bf16.msra.mxu0 %v1873
    %2188 = vmatprep.subr.bf16.mxu0 %v1878
    %2189 = vmatpush1.bf16.msra.mxu0 %v1877
    %2190 = vmatprep.subr.bf16.mxu0 %v1882
    %2191 = vmatpush1.bf16.msra.mxu0 %v1881
    %2192 = vmatprep.subr.bf16.mxu0 %v1886
    %2193 = vmatpush1.bf16.msra.mxu0 %v1885
    %2194 = vmatprep.subr.bf16.mxu0 %v1890
    %2195 = vmatpush1.bf16.msra.mxu0 %v1889
    %2196 = vmatprep.subr.bf16.mxu0 %v1894
    %2197 = vmatpush1.bf16.msra.mxu0 %v1893
    %2198 = vmatprep.subr.bf16.mxu0 %v1898
    %2199 = vmatpush1.bf16.msra.mxu0 %v1897
    %2200 = vmatprep.subr.bf16.mxu0 %v1902
    %2201 = vmatpush1.bf16.msra.mxu0 %v1901
    %2202 = vmatprep.subr.bf16.mxu0 %v1906
    %2203 = vmatpush1.bf16.msra.mxu0 %v1905
    %2204 = vmatprep.subr.bf16.mxu0 %v1910
    %2205 = vmatpush1.bf16.msra.mxu0 %v1909
    %2206 = vmatprep.subr.bf16.mxu0 %v1914
    %2207 = vmatpush1.bf16.msra.mxu0 %v1913
    %2208 = vmatprep.subr.bf16.mxu0 %v1918
    %2209 = vmatpush1.bf16.msra.mxu0 %v1917
    %2210 = vmatprep.subr.bf16.mxu0 %v1922
    %2211 = vmatpush1.bf16.msra.mxu0 %v1921
    %2212 = vmatprep.subr.bf16.mxu0 %v1926
    %2213 = vmatpush1.bf16.msra.mxu0 %v1925
    %2214 = vmatprep.subr.bf16.mxu0 %v1930
    %2215 = vmatpush1.bf16.msra.mxu0 %v1929
    %2216 = vmatprep.subr.bf16.mxu0 %v1934
    %2217 = vmatpush1.bf16.msra.mxu0 %v1933
    %2218 = vmatprep.mubr.bf16.mxu0 %v1399
    %2219 = vmatmul.mubr.bf16.gmra.mrb[0].mxu0 %v1398
    %v2220 = vpop.f32.mrb[0].mxu0
    %v2221 = vadd.f32 %v2180, %v2220
    %v2222 = vpop.f32.mrb[0].mxu0
    %v2223 = vadd.f32 %v2182, %v2222
    %v2224 = vpop.f32.mrb[0].mxu0
    %v2225 = vpop.f32.mrb[0].mxu0
    %2226 = vdwg.mxu0
    %v2227 = vmax.f32 %v2139, 0.0
    %v2228 = vmax.f32 %v2141, 0.0
    %v2229 = vmax.f32 %v2221, 0.0
    %v2230 = vmax.f32 %v2223, 0.0
    %s2231 = scalar_lea.vmem [#allocation11], 1024
    %v2232 = vld [vmem:[%s2231] sm:$0xff]
    %v2233 = vld [vmem:[%s2231 + $0x8] sm:$0xff]
    %v2234 = vld [vmem:[%s2231 + $0x10] sm:$0xff]
    %v2235 = vld [vmem:[%s2231 + $0x18] sm:$0xff]
    %v2236 = vld [vmem:[%s2231 + $0x20] sm:$0xff]
    %v2237 = vld [vmem:[%s2231 + $0x28] sm:$0xff]
    %v2238 = vld [vmem:[%s2231 + $0x30] sm:$0xff]
    %v2239 = vld [vmem:[%s2231 + $0x38] sm:$0xff]
    %v2240 = vld [vmem:[%s2231 + $0x40] sm:$0xff]
    %v2241 = vld [vmem:[%s2231 + $0x48] sm:$0xff]
    %v2242 = vld [vmem:[%s2231 + $0x50] sm:$0xff]
    %v2243 = vld [vmem:[%s2231 + $0x58] sm:$0xff]
    %v2244 = vld [vmem:[%s2231 + $0x60] sm:$0xff]
    %v2245 = vld [vmem:[%s2231 + $0x68] sm:$0xff]
    %v2246 = vld [vmem:[%s2231 + $0x70] sm:$0xff]
    %v2247 = vld [vmem:[%s2231 + $0x78] sm:$0xff]
    %v2248 = vld [vmem:[%s2231 + $0x80] sm:$0xff]
    %v2249 = vld [vmem:[%s2231 + $0x88] sm:$0xff]
    %v2250 = vld [vmem:[%s2231 + $0x90] sm:$0xff]
    %v2251 = vld [vmem:[%s2231 + $0x98] sm:$0xff]
    %v2252 = vld [vmem:[%s2231 + $0xa0] sm:$0xff]
    %v2253 = vld [vmem:[%s2231 + $0xa8] sm:$0xff]
    %v2254 = vld [vmem:[%s2231 + $0xb0] sm:$0xff]
    %v2255 = vld [vmem:[%s2231 + $0xb8] sm:$0xff]
    %v2256 = vld [vmem:[%s2231 + $0xc0] sm:$0xff]
    %v2257 = vld [vmem:[%s2231 + $0xc8] sm:$0xff]
    %v2258 = vld [vmem:[%s2231 + $0xd0] sm:$0xff]
    %v2259 = vld [vmem:[%s2231 + $0xd8] sm:$0xff]
    %v2260 = vld [vmem:[%s2231 + $0xe0] sm:$0xff]
    %v2261 = vld [vmem:[%s2231 + $0xe8] sm:$0xff]
    %v2262 = vld [vmem:[%s2231 + $0xf0] sm:$0xff]
    %v2263 = vld [vmem:[%s2231 + $0xf8] sm:$0xff]
    %v2264 = vld [vmem:[%s2231 + $0x100] sm:$0xff]
    %v2265 = vld [vmem:[%s2231 + $0x108] sm:$0xff]
    %v2266 = vld [vmem:[%s2231 + $0x110] sm:$0xff]
    %v2267 = vld [vmem:[%s2231 + $0x118] sm:$0xff]
    %v2268 = vld [vmem:[%s2231 + $0x120] sm:$0xff]
    %v2269 = vld [vmem:[%s2231 + $0x128] sm:$0xff]
    %v2270 = vld [vmem:[%s2231 + $0x130] sm:$0xff]
    %v2271 = vld [vmem:[%s2231 + $0x138] sm:$0xff]
    %v2272 = vld [vmem:[%s2231 + $0x140] sm:$0xff]
    %v2273 = vld [vmem:[%s2231 + $0x148] sm:$0xff]
    %v2274 = vld [vmem:[%s2231 + $0x150] sm:$0xff]
    %v2275 = vld [vmem:[%s2231 + $0x158] sm:$0xff]
    %v2276 = vld [vmem:[%s2231 + $0x160] sm:$0xff]
    %v2277 = vld [vmem:[%s2231 + $0x168] sm:$0xff]
    %v2278 = vld [vmem:[%s2231 + $0x170] sm:$0xff]
    %v2279 = vld [vmem:[%s2231 + $0x178] sm:$0xff]
    %v2280 = vld [vmem:[%s2231 + $0x180] sm:$0xff]
    %v2281 = vld [vmem:[%s2231 + $0x188] sm:$0xff]
    %v2282 = vld [vmem:[%s2231 + $0x190] sm:$0xff]
    %v2283 = vld [vmem:[%s2231 + $0x198] sm:$0xff]
    %v2284 = vld [vmem:[%s2231 + $0x1a0] sm:$0xff]
    %v2285 = vld [vmem:[%s2231 + $0x1a8] sm:$0xff]
    %v2286 = vld [vmem:[%s2231 + $0x1b0] sm:$0xff]
    %v2287 = vld [vmem:[%s2231 + $0x1b8] sm:$0xff]
    %v2288 = vld [vmem:[%s2231 + $0x1c0] sm:$0xff]
    %v2289 = vld [vmem:[%s2231 + $0x1c8] sm:$0xff]
    %v2290 = vld [vmem:[%s2231 + $0x1d0] sm:$0xff]
    %v2291 = vld [vmem:[%s2231 + $0x1d8] sm:$0xff]
    %v2292 = vld [vmem:[%s2231 + $0x1e0] sm:$0xff]
    %v2293 = vld [vmem:[%s2231 + $0x1e8] sm:$0xff]
    %v2294 = vld [vmem:[%s2231 + $0x1f0] sm:$0xff]
    %v2295 = vld [vmem:[%s2231 + $0x1f8] sm:$0xff]
    %v2296 = vld [vmem:[%s2231 + $0x200] sm:$0xff]
    %v2297 = vld [vmem:[%s2231 + $0x208] sm:$0xff]
    %v2298 = vld [vmem:[%s2231 + $0x210] sm:$0xff]
    %v2299 = vld [vmem:[%s2231 + $0x218] sm:$0xff]
    %v2300 = vld [vmem:[%s2231 + $0x220] sm:$0xff]
    %v2301 = vld [vmem:[%s2231 + $0x228] sm:$0xff]
    %v2302 = vld [vmem:[%s2231 + $0x230] sm:$0xff]
    %v2303 = vld [vmem:[%s2231 + $0x238] sm:$0xff]
    %v2304 = vld [vmem:[%s2231 + $0x240] sm:$0xff]
    %v2305 = vld [vmem:[%s2231 + $0x248] sm:$0xff]
    %v2306 = vld [vmem:[%s2231 + $0x250] sm:$0xff]
    %v2307 = vld [vmem:[%s2231 + $0x258] sm:$0xff]
    %v2308 = vld [vmem:[%s2231 + $0x260] sm:$0xff]
    %v2309 = vld [vmem:[%s2231 + $0x268] sm:$0xff]
    %v2310 = vld [vmem:[%s2231 + $0x270] sm:$0xff]
    %v2311 = vld [vmem:[%s2231 + $0x278] sm:$0xff]
    %v2312 = vld [vmem:[%s2231 + $0x280] sm:$0xff]
    %v2313 = vld [vmem:[%s2231 + $0x288] sm:$0xff]
    %v2314 = vld [vmem:[%s2231 + $0x290] sm:$0xff]
    %v2315 = vld [vmem:[%s2231 + $0x298] sm:$0xff]
    %v2316 = vld [vmem:[%s2231 + $0x2a0] sm:$0xff]
    %v2317 = vld [vmem:[%s2231 + $0x2a8] sm:$0xff]
    %v2318 = vld [vmem:[%s2231 + $0x2b0] sm:$0xff]
    %v2319 = vld [vmem:[%s2231 + $0x2b8] sm:$0xff]
    %v2320 = vld [vmem:[%s2231 + $0x2c0] sm:$0xff]
    %v2321 = vld [vmem:[%s2231 + $0x2c8] sm:$0xff]
    %v2322 = vld [vmem:[%s2231 + $0x2d0] sm:$0xff]
    %v2323 = vld [vmem:[%s2231 + $0x2d8] sm:$0xff]
    %v2324 = vld [vmem:[%s2231 + $0x2e0] sm:$0xff]
    %v2325 = vld [vmem:[%s2231 + $0x2e8] sm:$0xff]
    %v2326 = vld [vmem:[%s2231 + $0x2f0] sm:$0xff]
    %v2327 = vld [vmem:[%s2231 + $0x2f8] sm:$0xff]
    %v2328 = vld [vmem:[%s2231 + $0x300] sm:$0xff]
    %v2329 = vld [vmem:[%s2231 + $0x308] sm:$0xff]
    %v2330 = vld [vmem:[%s2231 + $0x310] sm:$0xff]
    %v2331 = vld [vmem:[%s2231 + $0x318] sm:$0xff]
    %v2332 = vld [vmem:[%s2231 + $0x320] sm:$0xff]
    %v2333 = vld [vmem:[%s2231 + $0x328] sm:$0xff]
    %v2334 = vld [vmem:[%s2231 + $0x330] sm:$0xff]
    %v2335 = vld [vmem:[%s2231 + $0x338] sm:$0xff]
    %v2336 = vld [vmem:[%s2231 + $0x340] sm:$0xff]
    %v2337 = vld [vmem:[%s2231 + $0x348] sm:$0xff]
    %v2338 = vld [vmem:[%s2231 + $0x350] sm:$0xff]
    %v2339 = vld [vmem:[%s2231 + $0x358] sm:$0xff]
    %v2340 = vld [vmem:[%s2231 + $0x360] sm:$0xff]
    %v2341 = vld [vmem:[%s2231 + $0x368] sm:$0xff]
    %v2342 = vld [vmem:[%s2231 + $0x370] sm:$0xff]
    %v2343 = vld [vmem:[%s2231 + $0x378] sm:$0xff]
    %v2344 = vld [vmem:[%s2231 + $0x380] sm:$0xff]
    %v2345 = vld [vmem:[%s2231 + $0x388] sm:$0xff]
    %v2346 = vld [vmem:[%s2231 + $0x390] sm:$0xff]
    %v2347 = vld [vmem:[%s2231 + $0x398] sm:$0xff]
    %v2348 = vld [vmem:[%s2231 + $0x3a0] sm:$0xff]
    %v2349 = vld [vmem:[%s2231 + $0x3a8] sm:$0xff]
    %v2350 = vld [vmem:[%s2231 + $0x3b0] sm:$0xff]
    %v2351 = vld [vmem:[%s2231 + $0x3b8] sm:$0xff]
    %v2352 = vld [vmem:[%s2231 + $0x3c0] sm:$0xff]
    %v2353 = vld [vmem:[%s2231 + $0x3c8] sm:$0xff]
    %v2354 = vld [vmem:[%s2231 + $0x3d0] sm:$0xff]
    %v2355 = vld [vmem:[%s2231 + $0x3d8] sm:$0xff]
    %v2356 = vld [vmem:[%s2231 + $0x3e0] sm:$0xff]
    %v2357 = vld [vmem:[%s2231 + $0x3e8] sm:$0xff]
    %v2358 = vld [vmem:[%s2231 + $0x3f0] sm:$0xff]
    %v2359 = vld [vmem:[%s2231 + $0x3f8] sm:$0xff]
    %v2360 = vpack.c.bf16 %v2227, %v2227
    %v2361 = vpack.c.bf16 %v2228, %v2228
    %v2362 = vpack.c.bf16 %v2229, %v2229
    %v2363 = vpack.c.bf16 %v2230, %v2230
    %s2364 = scalar_lea.vmem [#allocation16], 6
    %v2365 = vld [vmem:[%s2364] ss:$8 sm:$0xf]
    %v2367 = vlaneseq
    %v2368 = vshrl.u32 %v2367, 7
    %v2369 = vsub.s32 0, %v2368
    %v2370 = vrot.slane %v2365, %v2369
    %v2371 = vlaneseq
    %v2372 = vshrl.u32 %v2371, 7
    %v2373 = vsub.s32 1, %v2372
    %v2374 = vrot.slane %v2365, %v2373
    %v2375 = vlaneseq
    %v2376 = vshrl.u32 %v2375, 7
    %v2377 = vsub.s32 2, %v2376
    %v2378 = vrot.slane %v2365, %v2377
    %v2379 = vlaneseq
    %v2380 = vshrl.u32 %v2379, 7
    %v2381 = vsub.s32 3, %v2380
    %v2382 = vrot.slane %v2365, %v2381
    %v2515 = vunpack.c.l.b16 %v2232
    %v2516 = vunpack.c.h.b16 %v2232
    %v2517 = vunpack.c.l.b16 %v2233
    %v2518 = vunpack.c.h.b16 %v2233
    %v2519 = vunpack.c.l.b16 %v2234
    %v2520 = vunpack.c.h.b16 %v2234
    %v2521 = vunpack.c.l.b16 %v2235
    %v2522 = vunpack.c.h.b16 %v2235
    %v2523 = vunpack.c.l.b16 %v2236
    %v2524 = vunpack.c.h.b16 %v2236
    %v2525 = vunpack.c.l.b16 %v2237
    %v2526 = vunpack.c.h.b16 %v2237
    %v2527 = vunpack.c.l.b16 %v2238
    %v2528 = vunpack.c.h.b16 %v2238
    %v2529 = vunpack.c.l.b16 %v2239
    %v2530 = vunpack.c.h.b16 %v2239
    %v2531 = vunpack.c.l.b16 %v2240
    %v2532 = vunpack.c.h.b16 %v2240
    %v2533 = vunpack.c.l.b16 %v2241
    %v2534 = vunpack.c.h.b16 %v2241
    %v2535 = vunpack.c.l.b16 %v2242
    %v2536 = vunpack.c.h.b16 %v2242
    %v2537 = vunpack.c.l.b16 %v2243
    %v2538 = vunpack.c.h.b16 %v2243
    %v2539 = vunpack.c.l.b16 %v2244
    %v2540 = vunpack.c.h.b16 %v2244
    %v2541 = vunpack.c.l.b16 %v2245
    %v2542 = vunpack.c.h.b16 %v2245
    %v2543 = vunpack.c.l.b16 %v2246
    %v2544 = vunpack.c.h.b16 %v2246
    %v2545 = vunpack.c.l.b16 %v2247
    %v2546 = vunpack.c.h.b16 %v2247
    %v2547 = vunpack.c.l.b16 %v2248
    %v2548 = vunpack.c.h.b16 %v2248
    %v2549 = vunpack.c.l.b16 %v2249
    %v2550 = vunpack.c.h.b16 %v2249
    %v2551 = vunpack.c.l.b16 %v2250
    %v2552 = vunpack.c.h.b16 %v2250
    %v2553 = vunpack.c.l.b16 %v2251
    %v2554 = vunpack.c.h.b16 %v2251
    %v2555 = vunpack.c.l.b16 %v2252
    %v2556 = vunpack.c.h.b16 %v2252
    %v2557 = vunpack.c.l.b16 %v2253
    %v2558 = vunpack.c.h.b16 %v2253
    %v2559 = vunpack.c.l.b16 %v2254
    %v2560 = vunpack.c.h.b16 %v2254
    %v2561 = vunpack.c.l.b16 %v2255
    %v2562 = vunpack.c.h.b16 %v2255
    %v2563 = vunpack.c.l.b16 %v2256
    %v2564 = vunpack.c.h.b16 %v2256
    %v2565 = vunpack.c.l.b16 %v2257
    %v2566 = vunpack.c.h.b16 %v2257
    %v2567 = vunpack.c.l.b16 %v2258
    %v2568 = vunpack.c.h.b16 %v2258
    %v2569 = vunpack.c.l.b16 %v2259
    %v2570 = vunpack.c.h.b16 %v2259
    %v2571 = vunpack.c.l.b16 %v2260
    %v2572 = vunpack.c.h.b16 %v2260
    %v2573 = vunpack.c.l.b16 %v2261
    %v2574 = vunpack.c.h.b16 %v2261
    %v2575 = vunpack.c.l.b16 %v2262
    %v2576 = vunpack.c.h.b16 %v2262
    %v2577 = vunpack.c.l.b16 %v2263
    %v2578 = vunpack.c.h.b16 %v2263
    %v2579 = vunpack.c.l.b16 %v2264
    %v2580 = vunpack.c.h.b16 %v2264
    %v2581 = vunpack.c.l.b16 %v2265
    %v2582 = vunpack.c.h.b16 %v2265
    %v2583 = vunpack.c.l.b16 %v2266
    %v2584 = vunpack.c.h.b16 %v2266
    %v2585 = vunpack.c.l.b16 %v2267
    %v2586 = vunpack.c.h.b16 %v2267
    %v2587 = vunpack.c.l.b16 %v2268
    %v2588 = vunpack.c.h.b16 %v2268
    %v2589 = vunpack.c.l.b16 %v2269
    %v2590 = vunpack.c.h.b16 %v2269
    %v2591 = vunpack.c.l.b16 %v2270
    %v2592 = vunpack.c.h.b16 %v2270
    %v2593 = vunpack.c.l.b16 %v2271
    %v2594 = vunpack.c.h.b16 %v2271
    %v2595 = vunpack.c.l.b16 %v2272
    %v2596 = vunpack.c.h.b16 %v2272
    %v2597 = vunpack.c.l.b16 %v2273
    %v2598 = vunpack.c.h.b16 %v2273
    %v2599 = vunpack.c.l.b16 %v2274
    %v2600 = vunpack.c.h.b16 %v2274
    %v2601 = vunpack.c.l.b16 %v2275
    %v2602 = vunpack.c.h.b16 %v2275
    %v2603 = vunpack.c.l.b16 %v2276
    %v2604 = vunpack.c.h.b16 %v2276
    %v2605 = vunpack.c.l.b16 %v2277
    %v2606 = vunpack.c.h.b16 %v2277
    %v2607 = vunpack.c.l.b16 %v2278
    %v2608 = vunpack.c.h.b16 %v2278
    %v2609 = vunpack.c.l.b16 %v2279
    %v2610 = vunpack.c.h.b16 %v2279
    %v2611 = vunpack.c.l.b16 %v2280
    %v2612 = vunpack.c.h.b16 %v2280
    %v2613 = vunpack.c.l.b16 %v2281
    %v2614 = vunpack.c.h.b16 %v2281
    %v2615 = vunpack.c.l.b16 %v2282
    %v2616 = vunpack.c.h.b16 %v2282
    %v2617 = vunpack.c.l.b16 %v2283
    %v2618 = vunpack.c.h.b16 %v2283
    %v2619 = vunpack.c.l.b16 %v2284
    %v2620 = vunpack.c.h.b16 %v2284
    %v2621 = vunpack.c.l.b16 %v2285
    %v2622 = vunpack.c.h.b16 %v2285
    %v2623 = vunpack.c.l.b16 %v2286
    %v2624 = vunpack.c.h.b16 %v2286
    %v2625 = vunpack.c.l.b16 %v2287
    %v2626 = vunpack.c.h.b16 %v2287
    %v2627 = vunpack.c.l.b16 %v2288
    %v2628 = vunpack.c.h.b16 %v2288
    %v2629 = vunpack.c.l.b16 %v2289
    %v2630 = vunpack.c.h.b16 %v2289
    %v2631 = vunpack.c.l.b16 %v2290
    %v2632 = vunpack.c.h.b16 %v2290
    %v2633 = vunpack.c.l.b16 %v2291
    %v2634 = vunpack.c.h.b16 %v2291
    %v2635 = vunpack.c.l.b16 %v2292
    %v2636 = vunpack.c.h.b16 %v2292
    %v2637 = vunpack.c.l.b16 %v2293
    %v2638 = vunpack.c.h.b16 %v2293
    %v2639 = vunpack.c.l.b16 %v2294
    %v2640 = vunpack.c.h.b16 %v2294
    %v2641 = vunpack.c.l.b16 %v2295
    %v2642 = vunpack.c.h.b16 %v2295
    %v2643 = vunpack.c.l.b16 %v2296
    %v2644 = vunpack.c.h.b16 %v2296
    %v2645 = vunpack.c.l.b16 %v2297
    %v2646 = vunpack.c.h.b16 %v2297
    %v2647 = vunpack.c.l.b16 %v2298
    %v2648 = vunpack.c.h.b16 %v2298
    %v2649 = vunpack.c.l.b16 %v2299
    %v2650 = vunpack.c.h.b16 %v2299
    %v2651 = vunpack.c.l.b16 %v2300
    %v2652 = vunpack.c.h.b16 %v2300
    %v2653 = vunpack.c.l.b16 %v2301
    %v2654 = vunpack.c.h.b16 %v2301
    %v2655 = vunpack.c.l.b16 %v2302
    %v2656 = vunpack.c.h.b16 %v2302
    %v2657 = vunpack.c.l.b16 %v2303
    %v2658 = vunpack.c.h.b16 %v2303
    %v2659 = vunpack.c.l.b16 %v2304
    %v2660 = vunpack.c.h.b16 %v2304
    %v2661 = vunpack.c.l.b16 %v2305
    %v2662 = vunpack.c.h.b16 %v2305
    %v2663 = vunpack.c.l.b16 %v2306
    %v2664 = vunpack.c.h.b16 %v2306
    %v2665 = vunpack.c.l.b16 %v2307
    %v2666 = vunpack.c.h.b16 %v2307
    %v2667 = vunpack.c.l.b16 %v2308
    %v2668 = vunpack.c.h.b16 %v2308
    %v2669 = vunpack.c.l.b16 %v2309
    %v2670 = vunpack.c.h.b16 %v2309
    %v2671 = vunpack.c.l.b16 %v2310
    %v2672 = vunpack.c.h.b16 %v2310
    %v2673 = vunpack.c.l.b16 %v2311
    %v2674 = vunpack.c.h.b16 %v2311
    %v2675 = vunpack.c.l.b16 %v2312
    %v2676 = vunpack.c.h.b16 %v2312
    %v2677 = vunpack.c.l.b16 %v2313
    %v2678 = vunpack.c.h.b16 %v2313
    %v2679 = vunpack.c.l.b16 %v2314
    %v2680 = vunpack.c.h.b16 %v2314
    %v2681 = vunpack.c.l.b16 %v2315
    %v2682 = vunpack.c.h.b16 %v2315
    %v2683 = vunpack.c.l.b16 %v2316
    %v2684 = vunpack.c.h.b16 %v2316
    %v2685 = vunpack.c.l.b16 %v2317
    %v2686 = vunpack.c.h.b16 %v2317
    %v2687 = vunpack.c.l.b16 %v2318
    %v2688 = vunpack.c.h.b16 %v2318
    %v2689 = vunpack.c.l.b16 %v2319
    %v2690 = vunpack.c.h.b16 %v2319
    %v2691 = vunpack.c.l.b16 %v2320
    %v2692 = vunpack.c.h.b16 %v2320
    %v2693 = vunpack.c.l.b16 %v2321
    %v2694 = vunpack.c.h.b16 %v2321
    %v2695 = vunpack.c.l.b16 %v2322
    %v2696 = vunpack.c.h.b16 %v2322
    %v2697 = vunpack.c.l.b16 %v2323
    %v2698 = vunpack.c.h.b16 %v2323
    %v2699 = vunpack.c.l.b16 %v2324
    %v2700 = vunpack.c.h.b16 %v2324
    %v2701 = vunpack.c.l.b16 %v2325
    %v2702 = vunpack.c.h.b16 %v2325
    %v2703 = vunpack.c.l.b16 %v2326
    %v2704 = vunpack.c.h.b16 %v2326
    %v2705 = vunpack.c.l.b16 %v2327
    %v2706 = vunpack.c.h.b16 %v2327
    %v2707 = vunpack.c.l.b16 %v2328
    %v2708 = vunpack.c.h.b16 %v2328
    %v2709 = vunpack.c.l.b16 %v2329
    %v2710 = vunpack.c.h.b16 %v2329
    %v2711 = vunpack.c.l.b16 %v2330
    %v2712 = vunpack.c.h.b16 %v2330
    %v2713 = vunpack.c.l.b16 %v2331
    %v2714 = vunpack.c.h.b16 %v2331
    %v2715 = vunpack.c.l.b16 %v2332
    %v2716 = vunpack.c.h.b16 %v2332
    %v2717 = vunpack.c.l.b16 %v2333
    %v2718 = vunpack.c.h.b16 %v2333
    %v2719 = vunpack.c.l.b16 %v2334
    %v2720 = vunpack.c.h.b16 %v2334
    %v2721 = vunpack.c.l.b16 %v2335
    %v2722 = vunpack.c.h.b16 %v2335
    %v2723 = vunpack.c.l.b16 %v2336
    %v2724 = vunpack.c.h.b16 %v2336
    %v2725 = vunpack.c.l.b16 %v2337
    %v2726 = vunpack.c.h.b16 %v2337
    %v2727 = vunpack.c.l.b16 %v2338
    %v2728 = vunpack.c.h.b16 %v2338
    %v2729 = vunpack.c.l.b16 %v2339
    %v2730 = vunpack.c.h.b16 %v2339
    %v2731 = vunpack.c.l.b16 %v2340
    %v2732 = vunpack.c.h.b16 %v2340
    %v2733 = vunpack.c.l.b16 %v2341
    %v2734 = vunpack.c.h.b16 %v2341
    %v2735 = vunpack.c.l.b16 %v2342
    %v2736 = vunpack.c.h.b16 %v2342
    %v2737 = vunpack.c.l.b16 %v2343
    %v2738 = vunpack.c.h.b16 %v2343
    %v2739 = vunpack.c.l.b16 %v2344
    %v2740 = vunpack.c.h.b16 %v2344
    %v2741 = vunpack.c.l.b16 %v2345
    %v2742 = vunpack.c.h.b16 %v2345
    %v2743 = vunpack.c.l.b16 %v2346
    %v2744 = vunpack.c.h.b16 %v2346
    %v2745 = vunpack.c.l.b16 %v2347
    %v2746 = vunpack.c.h.b16 %v2347
    %v2747 = vunpack.c.l.b16 %v2348
    %v2748 = vunpack.c.h.b16 %v2348
    %v2749 = vunpack.c.l.b16 %v2349
    %v2750 = vunpack.c.h.b16 %v2349
    %v2751 = vunpack.c.l.b16 %v2350
    %v2752 = vunpack.c.h.b16 %v2350
    %v2753 = vunpack.c.l.b16 %v2351
    %v2754 = vunpack.c.h.b16 %v2351
    %v2755 = vunpack.c.l.b16 %v2352
    %v2756 = vunpack.c.h.b16 %v2352
    %v2757 = vunpack.c.l.b16 %v2353
    %v2758 = vunpack.c.h.b16 %v2353
    %v2759 = vunpack.c.l.b16 %v2354
    %v2760 = vunpack.c.h.b16 %v2354
    %v2761 = vunpack.c.l.b16 %v2355
    %v2762 = vunpack.c.h.b16 %v2355
    %v2763 = vunpack.c.l.b16 %v2356
    %v2764 = vunpack.c.h.b16 %v2356
    %v2765 = vunpack.c.l.b16 %v2357
    %v2766 = vunpack.c.h.b16 %v2357
    %v2767 = vunpack.c.l.b16 %v2358
    %v2768 = vunpack.c.h.b16 %v2358
    %v2769 = vunpack.c.l.b16 %v2359
    %v2770 = vunpack.c.h.b16 %v2359
    %v2771 = vpack.c.b16 %v2519, %v2515
    %v2772 = vpack.c.b16 %v2520, %v2516
    %v2773 = vpack.c.b16 %v2521, %v2517
    %v2774 = vpack.c.b16 %v2522, %v2518
    %v2775 = vpack.c.b16 %v2527, %v2523
    %v2776 = vpack.c.b16 %v2528, %v2524
    %v2777 = vpack.c.b16 %v2529, %v2525
    %v2778 = vpack.c.b16 %v2530, %v2526
    %v2779 = vpack.c.b16 %v2535, %v2531
    %v2780 = vpack.c.b16 %v2536, %v2532
    %v2781 = vpack.c.b16 %v2537, %v2533
    %v2782 = vpack.c.b16 %v2538, %v2534
    %v2783 = vpack.c.b16 %v2543, %v2539
    %v2784 = vpack.c.b16 %v2544, %v2540
    %v2785 = vpack.c.b16 %v2545, %v2541
    %v2786 = vpack.c.b16 %v2546, %v2542
    %v2787 = vpack.c.b16 %v2551, %v2547
    %v2788 = vpack.c.b16 %v2552, %v2548
    %v2789 = vpack.c.b16 %v2553, %v2549
    %v2790 = vpack.c.b16 %v2554, %v2550
    %v2791 = vpack.c.b16 %v2559, %v2555
    %v2792 = vpack.c.b16 %v2560, %v2556
    %v2793 = vpack.c.b16 %v2561, %v2557
    %v2794 = vpack.c.b16 %v2562, %v2558
    %v2795 = vpack.c.b16 %v2567, %v2563
    %v2796 = vpack.c.b16 %v2568, %v2564
    %v2797 = vpack.c.b16 %v2569, %v2565
    %v2798 = vpack.c.b16 %v2570, %v2566
    %v2799 = vpack.c.b16 %v2575, %v2571
    %v2800 = vpack.c.b16 %v2576, %v2572
    %v2801 = vpack.c.b16 %v2577, %v2573
    %v2802 = vpack.c.b16 %v2578, %v2574
    %v2803 = vpack.c.b16 %v2583, %v2579
    %v2804 = vpack.c.b16 %v2584, %v2580
    %v2805 = vpack.c.b16 %v2585, %v2581
    %v2806 = vpack.c.b16 %v2586, %v2582
    %v2807 = vpack.c.b16 %v2591, %v2587
    %v2808 = vpack.c.b16 %v2592, %v2588
    %v2809 = vpack.c.b16 %v2593, %v2589
    %v2810 = vpack.c.b16 %v2594, %v2590
    %v2811 = vpack.c.b16 %v2599, %v2595
    %v2812 = vpack.c.b16 %v2600, %v2596
    %v2813 = vpack.c.b16 %v2601, %v2597
    %v2814 = vpack.c.b16 %v2602, %v2598
    %v2815 = vpack.c.b16 %v2607, %v2603
    %v2816 = vpack.c.b16 %v2608, %v2604
    %v2817 = vpack.c.b16 %v2609, %v2605
    %v2818 = vpack.c.b16 %v2610, %v2606
    %v2819 = vpack.c.b16 %v2615, %v2611
    %v2820 = vpack.c.b16 %v2616, %v2612
    %v2821 = vpack.c.b16 %v2617, %v2613
    %v2822 = vpack.c.b16 %v2618, %v2614
    %v2823 = vpack.c.b16 %v2623, %v2619
    %v2824 = vpack.c.b16 %v2624, %v2620
    %v2825 = vpack.c.b16 %v2625, %v2621
    %v2826 = vpack.c.b16 %v2626, %v2622
    %v2827 = vpack.c.b16 %v2631, %v2627
    %v2828 = vpack.c.b16 %v2632, %v2628
    %v2829 = vpack.c.b16 %v2633, %v2629
    %v2830 = vpack.c.b16 %v2634, %v2630
    %v2831 = vpack.c.b16 %v2639, %v2635
    %v2832 = vpack.c.b16 %v2640, %v2636
    %v2833 = vpack.c.b16 %v2641, %v2637
    %v2834 = vpack.c.b16 %v2642, %v2638
    %v2835 = vpack.c.b16 %v2647, %v2643
    %v2836 = vpack.c.b16 %v2648, %v2644
    %v2837 = vpack.c.b16 %v2649, %v2645
    %v2838 = vpack.c.b16 %v2650, %v2646
    %v2839 = vpack.c.b16 %v2655, %v2651
    %v2840 = vpack.c.b16 %v2656, %v2652
    %v2841 = vpack.c.b16 %v2657, %v2653
    %v2842 = vpack.c.b16 %v2658, %v2654
    %v2843 = vpack.c.b16 %v2663, %v2659
    %v2844 = vpack.c.b16 %v2664, %v2660
    %v2845 = vpack.c.b16 %v2665, %v2661
    %v2846 = vpack.c.b16 %v2666, %v2662
    %v2847 = vpack.c.b16 %v2671, %v2667
    %v2848 = vpack.c.b16 %v2672, %v2668
    %v2849 = vpack.c.b16 %v2673, %v2669
    %v2850 = vpack.c.b16 %v2674, %v2670
    %v2851 = vpack.c.b16 %v2679, %v2675
    %v2852 = vpack.c.b16 %v2680, %v2676
    %v2853 = vpack.c.b16 %v2681, %v2677
    %v2854 = vpack.c.b16 %v2682, %v2678
    %v2855 = vpack.c.b16 %v2687, %v2683
    %v2856 = vpack.c.b16 %v2688, %v2684
    %v2857 = vpack.c.b16 %v2689, %v2685
    %v2858 = vpack.c.b16 %v2690, %v2686
    %v2859 = vpack.c.b16 %v2695, %v2691
    %v2860 = vpack.c.b16 %v2696, %v2692
    %v2861 = vpack.c.b16 %v2697, %v2693
    %v2862 = vpack.c.b16 %v2698, %v2694
    %v2863 = vpack.c.b16 %v2703, %v2699
    %v2864 = vpack.c.b16 %v2704, %v2700
    %v2865 = vpack.c.b16 %v2705, %v2701
    %v2866 = vpack.c.b16 %v2706, %v2702
    %v2867 = vpack.c.b16 %v2711, %v2707
    %v2868 = vpack.c.b16 %v2712, %v2708
    %v2869 = vpack.c.b16 %v2713, %v2709
    %v2870 = vpack.c.b16 %v2714, %v2710
    %v2871 = vpack.c.b16 %v2719, %v2715
    %v2872 = vpack.c.b16 %v2720, %v2716
    %v2873 = vpack.c.b16 %v2721, %v2717
    %v2874 = vpack.c.b16 %v2722, %v2718
    %v2875 = vpack.c.b16 %v2727, %v2723
    %v2876 = vpack.c.b16 %v2728, %v2724
    %v2877 = vpack.c.b16 %v2729, %v2725
    %v2878 = vpack.c.b16 %v2730, %v2726
    %v2879 = vpack.c.b16 %v2735, %v2731
    %v2880 = vpack.c.b16 %v2736, %v2732
    %v2881 = vpack.c.b16 %v2737, %v2733
    %v2882 = vpack.c.b16 %v2738, %v2734
    %v2883 = vpack.c.b16 %v2743, %v2739
    %v2884 = vpack.c.b16 %v2744, %v2740
    %v2885 = vpack.c.b16 %v2745, %v2741
    %v2886 = vpack.c.b16 %v2746, %v2742
    %v2887 = vpack.c.b16 %v2751, %v2747
    %v2888 = vpack.c.b16 %v2752, %v2748
    %v2889 = vpack.c.b16 %v2753, %v2749
    %v2890 = vpack.c.b16 %v2754, %v2750
    %v2891 = vpack.c.b16 %v2759, %v2755
    %v2892 = vpack.c.b16 %v2760, %v2756
    %v2893 = vpack.c.b16 %v2761, %v2757
    %v2894 = vpack.c.b16 %v2762, %v2758
    %v2895 = vpack.c.b16 %v2767, %v2763
    %v2896 = vpack.c.b16 %v2768, %v2764
    %v2897 = vpack.c.b16 %v2769, %v2765
    %v2898 = vpack.c.b16 %v2770, %v2766
    %3027 = vmatprep.subr.bf16.mxu0 %v2772
    %3028 = vmatpush1.bf16.msra.mxu0 %v2771
    %3029 = vmatprep.subr.bf16.mxu0 %v2776
    %3030 = vmatpush1.bf16.msra.mxu0 %v2775
    %3031 = vmatprep.subr.bf16.mxu0 %v2780
    %3032 = vmatpush1.bf16.msra.mxu0 %v2779
    %3033 = vmatprep.subr.bf16.mxu0 %v2784
    %3034 = vmatpush1.bf16.msra.mxu0 %v2783
    %3035 = vmatprep.subr.bf16.mxu0 %v2788
    %3036 = vmatpush1.bf16.msra.mxu0 %v2787
    %3037 = vmatprep.subr.bf16.mxu0 %v2792
    %3038 = vmatpush1.bf16.msra.mxu0 %v2791
    %3039 = vmatprep.subr.bf16.mxu0 %v2796
    %3040 = vmatpush1.bf16.msra.mxu0 %v2795
    %3041 = vmatprep.subr.bf16.mxu0 %v2800
    %3042 = vmatpush1.bf16.msra.mxu0 %v2799
    %3043 = vmatprep.subr.bf16.mxu0 %v2804
    %3044 = vmatpush1.bf16.msra.mxu0 %v2803
    %3045 = vmatprep.subr.bf16.mxu0 %v2808
    %3046 = vmatpush1.bf16.msra.mxu0 %v2807
    %3047 = vmatprep.subr.bf16.mxu0 %v2812
    %3048 = vmatpush1.bf16.msra.mxu0 %v2811
    %3049 = vmatprep.subr.bf16.mxu0 %v2816
    %3050 = vmatpush1.bf16.msra.mxu0 %v2815
    %3051 = vmatprep.subr.bf16.mxu0 %v2820
    %3052 = vmatpush1.bf16.msra.mxu0 %v2819
    %3053 = vmatprep.subr.bf16.mxu0 %v2824
    %3054 = vmatpush1.bf16.msra.mxu0 %v2823
    %3055 = vmatprep.subr.bf16.mxu0 %v2828
    %3056 = vmatpush1.bf16.msra.mxu0 %v2827
    %3057 = vmatprep.subr.bf16.mxu0 %v2832
    %3058 = vmatpush1.bf16.msra.mxu0 %v2831
    %3059 = vmatprep.mubr.bf16.mxu0 %v2361
    %3060 = vmatmul.mubr.bf16.gmra.mrb[0].mxu0 %v2360
    %v3061 = vpop.f32.mrb[0].mxu0
    %v3062 = vadd.f32 %v2370, %v3061
    %v3063 = vpop.f32.mrb[0].mxu0
    %v3064 = vadd.f32 %v2374, %v3063
    %v3065 = vpop.f32.mrb[0].mxu0
    %v3066 = vpop.f32.mrb[0].mxu0
    %3067 = vdwg.mxu0
    %3068 = vmatprep.subr.bf16.mxu0 %v2836
    %3069 = vmatpush1.bf16.msra.mxu0 %v2835
    %3070 = vmatprep.subr.bf16.mxu0 %v2840
    %3071 = vmatpush1.bf16.msra.mxu0 %v2839
    %3072 = vmatprep.subr.bf16.mxu0 %v2844
    %3073 = vmatpush1.bf16.msra.mxu0 %v2843
    %3074 = vmatprep.subr.bf16.mxu0 %v2848
    %3075 = vmatpush1.bf16.msra.mxu0 %v2847
    %3076 = vmatprep.subr.bf16.mxu0 %v2852
    %3077 = vmatpush1.bf16.msra.mxu0 %v2851
    %3078 = vmatprep.subr.bf16.mxu0 %v2856
    %3079 = vmatpush1.bf16.msra.mxu0 %v2855
    %3080 = vmatprep.subr.bf16.mxu0 %v2860
    %3081 = vmatpush1.bf16.msra.mxu0 %v2859
    %3082 = vmatprep.subr.bf16.mxu0 %v2864
    %3083 = vmatpush1.bf16.msra.mxu0 %v2863
    %3084 = vmatprep.subr.bf16.mxu0 %v2868
    %3085 = vmatpush1.bf16.msra.mxu0 %v2867
    %3086 = vmatprep.subr.bf16.mxu0 %v2872
    %3087 = vmatpush1.bf16.msra.mxu0 %v2871
    %3088 = vmatprep.subr.bf16.mxu0 %v2876
    %3089 = vmatpush1.bf16.msra.mxu0 %v2875
    %3090 = vmatprep.subr.bf16.mxu0 %v2880
    %3091 = vmatpush1.bf16.msra.mxu0 %v2879
    %3092 = vmatprep.subr.bf16.mxu0 %v2884
    %3093 = vmatpush1.bf16.msra.mxu0 %v2883
    %3094 = vmatprep.subr.bf16.mxu0 %v2888
    %3095 = vmatpush1.bf16.msra.mxu0 %v2887
    %3096 = vmatprep.subr.bf16.mxu0 %v2892
    %3097 = vmatpush1.bf16.msra.mxu0 %v2891
    %3098 = vmatprep.subr.bf16.mxu0 %v2896
    %3099 = vmatpush1.bf16.msra.mxu0 %v2895
    %3100 = vmatprep.mubr.bf16.mxu0 %v2363
    %3101 = vmatmul.mubr.bf16.gmra.mrb[0].mxu0 %v2362
    %v3102 = vpop.f32.mrb[0].mxu0
    %v3103 = vadd.f32 %v3062, %v3102
    %v3104 = vpop.f32.mrb[0].mxu0
    %v3105 = vadd.f32 %v3064, %v3104
    %v3106 = vpop.f32.mrb[0].mxu0
    %v3107 = vpop.f32.mrb[0].mxu0
    %3108 = vdwg.mxu0
    %3109 = vmatprep.subr.bf16.mxu0 %v2774
    %3110 = vmatpush1.bf16.msra.mxu0 %v2773
    %3111 = vmatprep.subr.bf16.mxu0 %v2778
    %3112 = vmatpush1.bf16.msra.mxu0 %v2777
    %3113 = vmatprep.subr.bf16.mxu0 %v2782
    %3114 = vmatpush1.bf16.msra.mxu0 %v2781
    %3115 = vmatprep.subr.bf16.mxu0 %v2786
    %3116 = vmatpush1.bf16.msra.mxu0 %v2785
    %3117 = vmatprep.subr.bf16.mxu0 %v2790
    %3118 = vmatpush1.bf16.msra.mxu0 %v2789
    %3119 = vmatprep.subr.bf16.mxu0 %v2794
    %3120 = vmatpush1.bf16.msra.mxu0 %v2793
    %3121 = vmatprep.subr.bf16.mxu0 %v2798
    %3122 = vmatpush1.bf16.msra.mxu0 %v2797
    %3123 = vmatprep.subr.bf16.mxu0 %v2802
    %3124 = vmatpush1.bf16.msra.mxu0 %v2801
    %3125 = vmatprep.subr.bf16.mxu0 %v2806
    %3126 = vmatpush1.bf16.msra.mxu0 %v2805
    %3127 = vmatprep.subr.bf16.mxu0 %v2810
    %3128 = vmatpush1.bf16.msra.mxu0 %v2809
    %3129 = vmatprep.subr.bf16.mxu0 %v2814
    %3130 = vmatpush1.bf16.msra.mxu0 %v2813
    %3131 = vmatprep.subr.bf16.mxu0 %v2818
    %3132 = vmatpush1.bf16.msra.mxu0 %v2817
    %3133 = vmatprep.subr.bf16.mxu0 %v2822
    %3134 = vmatpush1.bf16.msra.mxu0 %v2821
    %3135 = vmatprep.subr.bf16.mxu0 %v2826
    %3136 = vmatpush1.bf16.msra.mxu0 %v2825
    %3137 = vmatprep.subr.bf16.mxu0 %v2830
    %3138 = vmatpush1.bf16.msra.mxu0 %v2829
    %3139 = vmatprep.subr.bf16.mxu0 %v2834
    %3140 = vmatpush1.bf16.msra.mxu0 %v2833
    %3141 = vmatprep.mubr.bf16.mxu0 %v2361
    %3142 = vmatmul.mubr.bf16.gmra.mrb[0].mxu0 %v2360
    %v3143 = vpop.f32.mrb[0].mxu0
    %v3144 = vadd.f32 %v2378, %v3143
    %v3145 = vpop.f32.mrb[0].mxu0
    %v3146 = vadd.f32 %v2382, %v3145
    %v3147 = vpop.f32.mrb[0].mxu0
    %v3148 = vpop.f32.mrb[0].mxu0
    %3149 = vdwg.mxu0
    %3150 = vmatprep.subr.bf16.mxu0 %v2838
    %3151 = vmatpush1.bf16.msra.mxu0 %v2837
    %3152 = vmatprep.subr.bf16.mxu0 %v2842
    %3153 = vmatpush1.bf16.msra.mxu0 %v2841
    %3154 = vmatprep.subr.bf16.mxu0 %v2846
    %3155 = vmatpush1.bf16.msra.mxu0 %v2845
    %3156 = vmatprep.subr.bf16.mxu0 %v2850
    %3157 = vmatpush1.bf16.msra.mxu0 %v2849
    %3158 = vmatprep.subr.bf16.mxu0 %v2854
    %3159 = vmatpush1.bf16.msra.mxu0 %v2853
    %3160 = vmatprep.subr.bf16.mxu0 %v2858
    %3161 = vmatpush1.bf16.msra.mxu0 %v2857
    %3162 = vmatprep.subr.bf16.mxu0 %v2862
    %3163 = vmatpush1.bf16.msra.mxu0 %v2861
    %3164 = vmatprep.subr.bf16.mxu0 %v2866
    %3165 = vmatpush1.bf16.msra.mxu0 %v2865
    %3166 = vmatprep.subr.bf16.mxu0 %v2870
    %3167 = vmatpush1.bf16.msra.mxu0 %v2869
    %3168 = vmatprep.subr.bf16.mxu0 %v2874
    %3169 = vmatpush1.bf16.msra.mxu0 %v2873
    %3170 = vmatprep.subr.bf16.mxu0 %v2878
    %3171 = vmatpush1.bf16.msra.mxu0 %v2877
    %3172 = vmatprep.subr.bf16.mxu0 %v2882
    %3173 = vmatpush1.bf16.msra.mxu0 %v2881
    %3174 = vmatprep.subr.bf16.mxu0 %v2886
    %3175 = vmatpush1.bf16.msra.mxu0 %v2885
    %3176 = vmatprep.subr.bf16.mxu0 %v2890
    %3177 = vmatpush1.bf16.msra.mxu0 %v2889
    %3178 = vmatprep.subr.bf16.mxu0 %v2894
    %3179 = vmatpush1.bf16.msra.mxu0 %v2893
    %3180 = vmatprep.subr.bf16.mxu0 %v2898
    %3181 = vmatpush1.bf16.msra.mxu0 %v2897
    %3182 = vmatprep.mubr.bf16.mxu0 %v2363
    %3183 = vmatmul.mubr.bf16.gmra.mrb[0].mxu0 %v2362
    %v3184 = vpop.f32.mrb[0].mxu0
    %v3185 = vadd.f32 %v3144, %v3184
    %v3186 = vpop.f32.mrb[0].mxu0
    %v3187 = vadd.f32 %v3146, %v3186
    %v3188 = vpop.f32.mrb[0].mxu0
    %v3189 = vpop.f32.mrb[0].mxu0
    %3190 = vdwg.mxu0
    %v3191 = vmax.f32 %v3103, 0.0
    %v3192 = vmax.f32 %v3105, 0.0
    %v3193 = vmax.f32 %v3185, 0.0
    %v3194 = vmax.f32 %v3187, 0.0
    %s3195 = scalar_lea.vmem [#allocation11], 2048
    %v3196 = vld [vmem:[%s3195] sm:$0xff]
    %v3197 = vld [vmem:[%s3195 + $0x8] sm:$0xff]
    %v3198 = vld [vmem:[%s3195 + $0x10] sm:$0xff]
    %v3199 = vld [vmem:[%s3195 + $0x18] sm:$0xff]
    %v3200 = vld [vmem:[%s3195 + $0x20] sm:$0xff]
    %v3201 = vld [vmem:[%s3195 + $0x28] sm:$0xff]
    %v3202 = vld [vmem:[%s3195 + $0x30] sm:$0xff]
    %v3203 = vld [vmem:[%s3195 + $0x38] sm:$0xff]
    %v3204 = vld [vmem:[%s3195 + $0x40] sm:$0xff]
    %v3205 = vld [vmem:[%s3195 + $0x48] sm:$0xff]
    %v3206 = vld [vmem:[%s3195 + $0x50] sm:$0xff]
    %v3207 = vld [vmem:[%s3195 + $0x58] sm:$0xff]
    %v3208 = vld [vmem:[%s3195 + $0x60] sm:$0xff]
    %v3209 = vld [vmem:[%s3195 + $0x68] sm:$0xff]
    %v3210 = vld [vmem:[%s3195 + $0x70] sm:$0xff]
    %v3211 = vld [vmem:[%s3195 + $0x78] sm:$0xff]
    %v3212 = vld [vmem:[%s3195 + $0x80] sm:$0xff]
    %v3213 = vld [vmem:[%s3195 + $0x88] sm:$0xff]
    %v3214 = vld [vmem:[%s3195 + $0x90] sm:$0xff]
    %v3215 = vld [vmem:[%s3195 + $0x98] sm:$0xff]
    %v3216 = vld [vmem:[%s3195 + $0xa0] sm:$0xff]
    %v3217 = vld [vmem:[%s3195 + $0xa8] sm:$0xff]
    %v3218 = vld [vmem:[%s3195 + $0xb0] sm:$0xff]
    %v3219 = vld [vmem:[%s3195 + $0xb8] sm:$0xff]
    %v3220 = vld [vmem:[%s3195 + $0xc0] sm:$0xff]
    %v3221 = vld [vmem:[%s3195 + $0xc8] sm:$0xff]
    %v3222 = vld [vmem:[%s3195 + $0xd0] sm:$0xff]
    %v3223 = vld [vmem:[%s3195 + $0xd8] sm:$0xff]
    %v3224 = vld [vmem:[%s3195 + $0xe0] sm:$0xff]
    %v3225 = vld [vmem:[%s3195 + $0xe8] sm:$0xff]
    %v3226 = vld [vmem:[%s3195 + $0xf0] sm:$0xff]
    %v3227 = vld [vmem:[%s3195 + $0xf8] sm:$0xff]
    %v3228 = vld [vmem:[%s3195 + $0x100] sm:$0xff]
    %v3229 = vld [vmem:[%s3195 + $0x108] sm:$0xff]
    %v3230 = vld [vmem:[%s3195 + $0x110] sm:$0xff]
    %v3231 = vld [vmem:[%s3195 + $0x118] sm:$0xff]
    %v3232 = vld [vmem:[%s3195 + $0x120] sm:$0xff]
    %v3233 = vld [vmem:[%s3195 + $0x128] sm:$0xff]
    %v3234 = vld [vmem:[%s3195 + $0x130] sm:$0xff]
    %v3235 = vld [vmem:[%s3195 + $0x138] sm:$0xff]
    %v3236 = vld [vmem:[%s3195 + $0x140] sm:$0xff]
    %v3237 = vld [vmem:[%s3195 + $0x148] sm:$0xff]
    %v3238 = vld [vmem:[%s3195 + $0x150] sm:$0xff]
    %v3239 = vld [vmem:[%s3195 + $0x158] sm:$0xff]
    %v3240 = vld [vmem:[%s3195 + $0x160] sm:$0xff]
    %v3241 = vld [vmem:[%s3195 + $0x168] sm:$0xff]
    %v3242 = vld [vmem:[%s3195 + $0x170] sm:$0xff]
    %v3243 = vld [vmem:[%s3195 + $0x178] sm:$0xff]
    %v3244 = vld [vmem:[%s3195 + $0x180] sm:$0xff]
    %v3245 = vld [vmem:[%s3195 + $0x188] sm:$0xff]
    %v3246 = vld [vmem:[%s3195 + $0x190] sm:$0xff]
    %v3247 = vld [vmem:[%s3195 + $0x198] sm:$0xff]
    %v3248 = vld [vmem:[%s3195 + $0x1a0] sm:$0xff]
    %v3249 = vld [vmem:[%s3195 + $0x1a8] sm:$0xff]
    %v3250 = vld [vmem:[%s3195 + $0x1b0] sm:$0xff]
    %v3251 = vld [vmem:[%s3195 + $0x1b8] sm:$0xff]
    %v3252 = vld [vmem:[%s3195 + $0x1c0] sm:$0xff]
    %v3253 = vld [vmem:[%s3195 + $0x1c8] sm:$0xff]
    %v3254 = vld [vmem:[%s3195 + $0x1d0] sm:$0xff]
    %v3255 = vld [vmem:[%s3195 + $0x1d8] sm:$0xff]
    %v3256 = vld [vmem:[%s3195 + $0x1e0] sm:$0xff]
    %v3257 = vld [vmem:[%s3195 + $0x1e8] sm:$0xff]
    %v3258 = vld [vmem:[%s3195 + $0x1f0] sm:$0xff]
    %v3259 = vld [vmem:[%s3195 + $0x1f8] sm:$0xff]
    %v3260 = vld [vmem:[%s3195 + $0x200] sm:$0xff]
    %v3261 = vld [vmem:[%s3195 + $0x208] sm:$0xff]
    %v3262 = vld [vmem:[%s3195 + $0x210] sm:$0xff]
    %v3263 = vld [vmem:[%s3195 + $0x218] sm:$0xff]
    %v3264 = vld [vmem:[%s3195 + $0x220] sm:$0xff]
    %v3265 = vld [vmem:[%s3195 + $0x228] sm:$0xff]
    %v3266 = vld [vmem:[%s3195 + $0x230] sm:$0xff]
    %v3267 = vld [vmem:[%s3195 + $0x238] sm:$0xff]
    %v3268 = vld [vmem:[%s3195 + $0x240] sm:$0xff]
    %v3269 = vld [vmem:[%s3195 + $0x248] sm:$0xff]
    %v3270 = vld [vmem:[%s3195 + $0x250] sm:$0xff]
    %v3271 = vld [vmem:[%s3195 + $0x258] sm:$0xff]
    %v3272 = vld [vmem:[%s3195 + $0x260] sm:$0xff]
    %v3273 = vld [vmem:[%s3195 + $0x268] sm:$0xff]
    %v3274 = vld [vmem:[%s3195 + $0x270] sm:$0xff]
    %v3275 = vld [vmem:[%s3195 + $0x278] sm:$0xff]
    %v3276 = vld [vmem:[%s3195 + $0x280] sm:$0xff]
    %v3277 = vld [vmem:[%s3195 + $0x288] sm:$0xff]
    %v3278 = vld [vmem:[%s3195 + $0x290] sm:$0xff]
    %v3279 = vld [vmem:[%s3195 + $0x298] sm:$0xff]
    %v3280 = vld [vmem:[%s3195 + $0x2a0] sm:$0xff]
    %v3281 = vld [vmem:[%s3195 + $0x2a8] sm:$0xff]
    %v3282 = vld [vmem:[%s3195 + $0x2b0] sm:$0xff]
    %v3283 = vld [vmem:[%s3195 + $0x2b8] sm:$0xff]
    %v3284 = vld [vmem:[%s3195 + $0x2c0] sm:$0xff]
    %v3285 = vld [vmem:[%s3195 + $0x2c8] sm:$0xff]
    %v3286 = vld [vmem:[%s3195 + $0x2d0] sm:$0xff]
    %v3287 = vld [vmem:[%s3195 + $0x2d8] sm:$0xff]
    %v3288 = vld [vmem:[%s3195 + $0x2e0] sm:$0xff]
    %v3289 = vld [vmem:[%s3195 + $0x2e8] sm:$0xff]
    %v3290 = vld [vmem:[%s3195 + $0x2f0] sm:$0xff]
    %v3291 = vld [vmem:[%s3195 + $0x2f8] sm:$0xff]
    %v3292 = vld [vmem:[%s3195 + $0x300] sm:$0xff]
    %v3293 = vld [vmem:[%s3195 + $0x308] sm:$0xff]
    %v3294 = vld [vmem:[%s3195 + $0x310] sm:$0xff]
    %v3295 = vld [vmem:[%s3195 + $0x318] sm:$0xff]
    %v3296 = vld [vmem:[%s3195 + $0x320] sm:$0xff]
    %v3297 = vld [vmem:[%s3195 + $0x328] sm:$0xff]
    %v3298 = vld [vmem:[%s3195 + $0x330] sm:$0xff]
    %v3299 = vld [vmem:[%s3195 + $0x338] sm:$0xff]
    %v3300 = vld [vmem:[%s3195 + $0x340] sm:$0xff]
    %v3301 = vld [vmem:[%s3195 + $0x348] sm:$0xff]
    %v3302 = vld [vmem:[%s3195 + $0x350] sm:$0xff]
    %v3303 = vld [vmem:[%s3195 + $0x358] sm:$0xff]
    %v3304 = vld [vmem:[%s3195 + $0x360] sm:$0xff]
    %v3305 = vld [vmem:[%s3195 + $0x368] sm:$0xff]
    %v3306 = vld [vmem:[%s3195 + $0x370] sm:$0xff]
    %v3307 = vld [vmem:[%s3195 + $0x378] sm:$0xff]
    %v3308 = vld [vmem:[%s3195 + $0x380] sm:$0xff]
    %v3309 = vld [vmem:[%s3195 + $0x388] sm:$0xff]
    %v3310 = vld [vmem:[%s3195 + $0x390] sm:$0xff]
    %v3311 = vld [vmem:[%s3195 + $0x398] sm:$0xff]
    %v3312 = vld [vmem:[%s3195 + $0x3a0] sm:$0xff]
    %v3313 = vld [vmem:[%s3195 + $0x3a8] sm:$0xff]
    %v3314 = vld [vmem:[%s3195 + $0x3b0] sm:$0xff]
    %v3315 = vld [vmem:[%s3195 + $0x3b8] sm:$0xff]
    %v3316 = vld [vmem:[%s3195 + $0x3c0] sm:$0xff]
    %v3317 = vld [vmem:[%s3195 + $0x3c8] sm:$0xff]
    %v3318 = vld [vmem:[%s3195 + $0x3d0] sm:$0xff]
    %v3319 = vld [vmem:[%s3195 + $0x3d8] sm:$0xff]
    %v3320 = vld [vmem:[%s3195 + $0x3e0] sm:$0xff]
    %v3321 = vld [vmem:[%s3195 + $0x3e8] sm:$0xff]
    %v3322 = vld [vmem:[%s3195 + $0x3f0] sm:$0xff]
    %v3323 = vld [vmem:[%s3195 + $0x3f8] sm:$0xff]
    %v3324 = vpack.c.bf16 %v3191, %v3191
    %v3325 = vpack.c.bf16 %v3192, %v3192
    %v3326 = vpack.c.bf16 %v3193, %v3193
    %v3327 = vpack.c.bf16 %v3194, %v3194
    %s3328 = scalar_lea.vmem [#allocation16], 7
    %v3329 = vld [vmem:[%s3328] ss:$8 sm:$0xf]
    %v3331 = vlaneseq
    %v3332 = vshrl.u32 %v3331, 7
    %v3333 = vsub.s32 0, %v3332
    %v3334 = vrot.slane %v3329, %v3333
    %v3335 = vlaneseq
    %v3336 = vshrl.u32 %v3335, 7
    %v3337 = vsub.s32 1, %v3336
    %v3338 = vrot.slane %v3329, %v3337
    %v3339 = vlaneseq
    %v3340 = vshrl.u32 %v3339, 7
    %v3341 = vsub.s32 2, %v3340
    %v3342 = vrot.slane %v3329, %v3341
    %v3343 = vlaneseq
    %v3344 = vshrl.u32 %v3343, 7
    %v3345 = vsub.s32 3, %v3344
    %v3346 = vrot.slane %v3329, %v3345
    %v3479 = vunpack.c.l.b16 %v3196
    %v3480 = vunpack.c.h.b16 %v3196
    %v3481 = vunpack.c.l.b16 %v3197
    %v3482 = vunpack.c.h.b16 %v3197
    %v3483 = vunpack.c.l.b16 %v3198
    %v3484 = vunpack.c.h.b16 %v3198
    %v3485 = vunpack.c.l.b16 %v3199
    %v3486 = vunpack.c.h.b16 %v3199
    %v3487 = vunpack.c.l.b16 %v3200
    %v3488 = vunpack.c.h.b16 %v3200
    %v3489 = vunpack.c.l.b16 %v3201
    %v3490 = vunpack.c.h.b16 %v3201
    %v3491 = vunpack.c.l.b16 %v3202
    %v3492 = vunpack.c.h.b16 %v3202
    %v3493 = vunpack.c.l.b16 %v3203
    %v3494 = vunpack.c.h.b16 %v3203
    %v3495 = vunpack.c.l.b16 %v3204
    %v3496 = vunpack.c.h.b16 %v3204
    %v3497 = vunpack.c.l.b16 %v3205
    %v3498 = vunpack.c.h.b16 %v3205
    %v3499 = vunpack.c.l.b16 %v3206
    %v3500 = vunpack.c.h.b16 %v3206
    %v3501 = vunpack.c.l.b16 %v3207
    %v3502 = vunpack.c.h.b16 %v3207
    %v3503 = vunpack.c.l.b16 %v3208
    %v3504 = vunpack.c.h.b16 %v3208
    %v3505 = vunpack.c.l.b16 %v3209
    %v3506 = vunpack.c.h.b16 %v3209
    %v3507 = vunpack.c.l.b16 %v3210
    %v3508 = vunpack.c.h.b16 %v3210
    %v3509 = vunpack.c.l.b16 %v3211
    %v3510 = vunpack.c.h.b16 %v3211
    %v3511 = vunpack.c.l.b16 %v3212
    %v3512 = vunpack.c.h.b16 %v3212
    %v3513 = vunpack.c.l.b16 %v3213
    %v3514 = vunpack.c.h.b16 %v3213
    %v3515 = vunpack.c.l.b16 %v3214
    %v3516 = vunpack.c.h.b16 %v3214
    %v3517 = vunpack.c.l.b16 %v3215
    %v3518 = vunpack.c.h.b16 %v3215
    %v3519 = vunpack.c.l.b16 %v3216
    %v3520 = vunpack.c.h.b16 %v3216
    %v3521 = vunpack.c.l.b16 %v3217
    %v3522 = vunpack.c.h.b16 %v3217
    %v3523 = vunpack.c.l.b16 %v3218
    %v3524 = vunpack.c.h.b16 %v3218
    %v3525 = vunpack.c.l.b16 %v3219
    %v3526 = vunpack.c.h.b16 %v3219
    %v3527 = vunpack.c.l.b16 %v3220
    %v3528 = vunpack.c.h.b16 %v3220
    %v3529 = vunpack.c.l.b16 %v3221
    %v3530 = vunpack.c.h.b16 %v3221
    %v3531 = vunpack.c.l.b16 %v3222
    %v3532 = vunpack.c.h.b16 %v3222
    %v3533 = vunpack.c.l.b16 %v3223
    %v3534 = vunpack.c.h.b16 %v3223
    %v3535 = vunpack.c.l.b16 %v3224
    %v3536 = vunpack.c.h.b16 %v3224
    %v3537 = vunpack.c.l.b16 %v3225
    %v3538 = vunpack.c.h.b16 %v3225
    %v3539 = vunpack.c.l.b16 %v3226
    %v3540 = vunpack.c.h.b16 %v3226
    %v3541 = vunpack.c.l.b16 %v3227
    %v3542 = vunpack.c.h.b16 %v3227
    %v3543 = vunpack.c.l.b16 %v3228
    %v3544 = vunpack.c.h.b16 %v3228
    %v3545 = vunpack.c.l.b16 %v3229
    %v3546 = vunpack.c.h.b16 %v3229
    %v3547 = vunpack.c.l.b16 %v3230
    %v3548 = vunpack.c.h.b16 %v3230
    %v3549 = vunpack.c.l.b16 %v3231
    %v3550 = vunpack.c.h.b16 %v3231
    %v3551 = vunpack.c.l.b16 %v3232
    %v3552 = vunpack.c.h.b16 %v3232
    %v3553 = vunpack.c.l.b16 %v3233
    %v3554 = vunpack.c.h.b16 %v3233
    %v3555 = vunpack.c.l.b16 %v3234
    %v3556 = vunpack.c.h.b16 %v3234
    %v3557 = vunpack.c.l.b16 %v3235
    %v3558 = vunpack.c.h.b16 %v3235
    %v3559 = vunpack.c.l.b16 %v3236
    %v3560 = vunpack.c.h.b16 %v3236
    %v3561 = vunpack.c.l.b16 %v3237
    %v3562 = vunpack.c.h.b16 %v3237
    %v3563 = vunpack.c.l.b16 %v3238
    %v3564 = vunpack.c.h.b16 %v3238
    %v3565 = vunpack.c.l.b16 %v3239
    %v3566 = vunpack.c.h.b16 %v3239
    %v3567 = vunpack.c.l.b16 %v3240
    %v3568 = vunpack.c.h.b16 %v3240
    %v3569 = vunpack.c.l.b16 %v3241
    %v3570 = vunpack.c.h.b16 %v3241
    %v3571 = vunpack.c.l.b16 %v3242
    %v3572 = vunpack.c.h.b16 %v3242
    %v3573 = vunpack.c.l.b16 %v3243
    %v3574 = vunpack.c.h.b16 %v3243
    %v3575 = vunpack.c.l.b16 %v3244
    %v3576 = vunpack.c.h.b16 %v3244
    %v3577 = vunpack.c.l.b16 %v3245
    %v3578 = vunpack.c.h.b16 %v3245
    %v3579 = vunpack.c.l.b16 %v3246
    %v3580 = vunpack.c.h.b16 %v3246
    %v3581 = vunpack.c.l.b16 %v3247
    %v3582 = vunpack.c.h.b16 %v3247
    %v3583 = vunpack.c.l.b16 %v3248
    %v3584 = vunpack.c.h.b16 %v3248
    %v3585 = vunpack.c.l.b16 %v3249
    %v3586 = vunpack.c.h.b16 %v3249
    %v3587 = vunpack.c.l.b16 %v3250
    %v3588 = vunpack.c.h.b16 %v3250
    %v3589 = vunpack.c.l.b16 %v3251
    %v3590 = vunpack.c.h.b16 %v3251
    %v3591 = vunpack.c.l.b16 %v3252
    %v3592 = vunpack.c.h.b16 %v3252
    %v3593 = vunpack.c.l.b16 %v3253
    %v3594 = vunpack.c.h.b16 %v3253
    %v3595 = vunpack.c.l.b16 %v3254
    %v3596 = vunpack.c.h.b16 %v3254
    %v3597 = vunpack.c.l.b16 %v3255
    %v3598 = vunpack.c.h.b16 %v3255
    %v3599 = vunpack.c.l.b16 %v3256
    %v3600 = vunpack.c.h.b16 %v3256
    %v3601 = vunpack.c.l.b16 %v3257
    %v3602 = vunpack.c.h.b16 %v3257
    %v3603 = vunpack.c.l.b16 %v3258
    %v3604 = vunpack.c.h.b16 %v3258
    %v3605 = vunpack.c.l.b16 %v3259
    %v3606 = vunpack.c.h.b16 %v3259
    %v3607 = vunpack.c.l.b16 %v3260
    %v3608 = vunpack.c.h.b16 %v3260
    %v3609 = vunpack.c.l.b16 %v3261
    %v3610 = vunpack.c.h.b16 %v3261
    %v3611 = vunpack.c.l.b16 %v3262
    %v3612 = vunpack.c.h.b16 %v3262
    %v3613 = vunpack.c.l.b16 %v3263
    %v3614 = vunpack.c.h.b16 %v3263
    %v3615 = vunpack.c.l.b16 %v3264
    %v3616 = vunpack.c.h.b16 %v3264
    %v3617 = vunpack.c.l.b16 %v3265
    %v3618 = vunpack.c.h.b16 %v3265
    %v3619 = vunpack.c.l.b16 %v3266
    %v3620 = vunpack.c.h.b16 %v3266
    %v3621 = vunpack.c.l.b16 %v3267
    %v3622 = vunpack.c.h.b16 %v3267
    %v3623 = vunpack.c.l.b16 %v3268
    %v3624 = vunpack.c.h.b16 %v3268
    %v3625 = vunpack.c.l.b16 %v3269
    %v3626 = vunpack.c.h.b16 %v3269
    %v3627 = vunpack.c.l.b16 %v3270
    %v3628 = vunpack.c.h.b16 %v3270
    %v3629 = vunpack.c.l.b16 %v3271
    %v3630 = vunpack.c.h.b16 %v3271
    %v3631 = vunpack.c.l.b16 %v3272
    %v3632 = vunpack.c.h.b16 %v3272
    %v3633 = vunpack.c.l.b16 %v3273
    %v3634 = vunpack.c.h.b16 %v3273
    %v3635 = vunpack.c.l.b16 %v3274
    %v3636 = vunpack.c.h.b16 %v3274
    %v3637 = vunpack.c.l.b16 %v3275
    %v3638 = vunpack.c.h.b16 %v3275
    %v3639 = vunpack.c.l.b16 %v3276
    %v3640 = vunpack.c.h.b16 %v3276
    %v3641 = vunpack.c.l.b16 %v3277
    %v3642 = vunpack.c.h.b16 %v3277
    %v3643 = vunpack.c.l.b16 %v3278
    %v3644 = vunpack.c.h.b16 %v3278
    %v3645 = vunpack.c.l.b16 %v3279
    %v3646 = vunpack.c.h.b16 %v3279
    %v3647 = vunpack.c.l.b16 %v3280
    %v3648 = vunpack.c.h.b16 %v3280
    %v3649 = vunpack.c.l.b16 %v3281
    %v3650 = vunpack.c.h.b16 %v3281
    %v3651 = vunpack.c.l.b16 %v3282
    %v3652 = vunpack.c.h.b16 %v3282
    %v3653 = vunpack.c.l.b16 %v3283
    %v3654 = vunpack.c.h.b16 %v3283
    %v3655 = vunpack.c.l.b16 %v3284
    %v3656 = vunpack.c.h.b16 %v3284
    %v3657 = vunpack.c.l.b16 %v3285
    %v3658 = vunpack.c.h.b16 %v3285
    %v3659 = vunpack.c.l.b16 %v3286
    %v3660 = vunpack.c.h.b16 %v3286
    %v3661 = vunpack.c.l.b16 %v3287
    %v3662 = vunpack.c.h.b16 %v3287
    %v3663 = vunpack.c.l.b16 %v3288
    %v3664 = vunpack.c.h.b16 %v3288
    %v3665 = vunpack.c.l.b16 %v3289
    %v3666 = vunpack.c.h.b16 %v3289
    %v3667 = vunpack.c.l.b16 %v3290
    %v3668 = vunpack.c.h.b16 %v3290
    %v3669 = vunpack.c.l.b16 %v3291
    %v3670 = vunpack.c.h.b16 %v3291
    %v3671 = vunpack.c.l.b16 %v3292
    %v3672 = vunpack.c.h.b16 %v3292
    %v3673 = vunpack.c.l.b16 %v3293
    %v3674 = vunpack.c.h.b16 %v3293
    %v3675 = vunpack.c.l.b16 %v3294
    %v3676 = vunpack.c.h.b16 %v3294
    %v3677 = vunpack.c.l.b16 %v3295
    %v3678 = vunpack.c.h.b16 %v3295
    %v3679 = vunpack.c.l.b16 %v3296
    %v3680 = vunpack.c.h.b16 %v3296
    %v3681 = vunpack.c.l.b16 %v3297
    %v3682 = vunpack.c.h.b16 %v3297
    %v3683 = vunpack.c.l.b16 %v3298
    %v3684 = vunpack.c.h.b16 %v3298
    %v3685 = vunpack.c.l.b16 %v3299
    %v3686 = vunpack.c.h.b16 %v3299
    %v3687 = vunpack.c.l.b16 %v3300
    %v3688 = vunpack.c.h.b16 %v3300
    %v3689 = vunpack.c.l.b16 %v3301
    %v3690 = vunpack.c.h.b16 %v3301
    %v3691 = vunpack.c.l.b16 %v3302
    %v3692 = vunpack.c.h.b16 %v3302
    %v3693 = vunpack.c.l.b16 %v3303
    %v3694 = vunpack.c.h.b16 %v3303
    %v3695 = vunpack.c.l.b16 %v3304
    %v3696 = vunpack.c.h.b16 %v3304
    %v3697 = vunpack.c.l.b16 %v3305
    %v3698 = vunpack.c.h.b16 %v3305
    %v3699 = vunpack.c.l.b16 %v3306
    %v3700 = vunpack.c.h.b16 %v3306
    %v3701 = vunpack.c.l.b16 %v3307
    %v3702 = vunpack.c.h.b16 %v3307
    %v3703 = vunpack.c.l.b16 %v3308
    %v3704 = vunpack.c.h.b16 %v3308
    %v3705 = vunpack.c.l.b16 %v3309
    %v3706 = vunpack.c.h.b16 %v3309
    %v3707 = vunpack.c.l.b16 %v3310
    %v3708 = vunpack.c.h.b16 %v3310
    %v3709 = vunpack.c.l.b16 %v3311
    %v3710 = vunpack.c.h.b16 %v3311
    %v3711 = vunpack.c.l.b16 %v3312
    %v3712 = vunpack.c.h.b16 %v3312
    %v3713 = vunpack.c.l.b16 %v3313
    %v3714 = vunpack.c.h.b16 %v3313
    %v3715 = vunpack.c.l.b16 %v3314
    %v3716 = vunpack.c.h.b16 %v3314
    %v3717 = vunpack.c.l.b16 %v3315
    %v3718 = vunpack.c.h.b16 %v3315
    %v3719 = vunpack.c.l.b16 %v3316
    %v3720 = vunpack.c.h.b16 %v3316
    %v3721 = vunpack.c.l.b16 %v3317
    %v3722 = vunpack.c.h.b16 %v3317
    %v3723 = vunpack.c.l.b16 %v3318
    %v3724 = vunpack.c.h.b16 %v3318
    %v3725 = vunpack.c.l.b16 %v3319
    %v3726 = vunpack.c.h.b16 %v3319
    %v3727 = vunpack.c.l.b16 %v3320
    %v3728 = vunpack.c.h.b16 %v3320
    %v3729 = vunpack.c.l.b16 %v3321
    %v3730 = vunpack.c.h.b16 %v3321
    %v3731 = vunpack.c.l.b16 %v3322
    %v3732 = vunpack.c.h.b16 %v3322
    %v3733 = vunpack.c.l.b16 %v3323
    %v3734 = vunpack.c.h.b16 %v3323
    %v3735 = vpack.c.b16 %v3483, %v3479
    %v3736 = vpack.c.b16 %v3484, %v3480
    %v3737 = vpack.c.b16 %v3485, %v3481
    %v3738 = vpack.c.b16 %v3486, %v3482
    %v3739 = vpack.c.b16 %v3491, %v3487
    %v3740 = vpack.c.b16 %v3492, %v3488
    %v3741 = vpack.c.b16 %v3493, %v3489
    %v3742 = vpack.c.b16 %v3494, %v3490
    %v3743 = vpack.c.b16 %v3499, %v3495
    %v3744 = vpack.c.b16 %v3500, %v3496
    %v3745 = vpack.c.b16 %v3501, %v3497
    %v3746 = vpack.c.b16 %v3502, %v3498
    %v3747 = vpack.c.b16 %v3507, %v3503
    %v3748 = vpack.c.b16 %v3508, %v3504
    %v3749 = vpack.c.b16 %v3509, %v3505
    %v3750 = vpack.c.b16 %v3510, %v3506
    %v3751 = vpack.c.b16 %v3515, %v3511
    %v3752 = vpack.c.b16 %v3516, %v3512
    %v3753 = vpack.c.b16 %v3517, %v3513
    %v3754 = vpack.c.b16 %v3518, %v3514
    %v3755 = vpack.c.b16 %v3523, %v3519
    %v3756 = vpack.c.b16 %v3524, %v3520
    %v3757 = vpack.c.b16 %v3525, %v3521
    %v3758 = vpack.c.b16 %v3526, %v3522
    %v3759 = vpack.c.b16 %v3531, %v3527
    %v3760 = vpack.c.b16 %v3532, %v3528
    %v3761 = vpack.c.b16 %v3533, %v3529
    %v3762 = vpack.c.b16 %v3534, %v3530
    %v3763 = vpack.c.b16 %v3539, %v3535
    %v3764 = vpack.c.b16 %v3540, %v3536
    %v3765 = vpack.c.b16 %v3541, %v3537
    %v3766 = vpack.c.b16 %v3542, %v3538
    %v3767 = vpack.c.b16 %v3547, %v3543
    %v3768 = vpack.c.b16 %v3548, %v3544
    %v3769 = vpack.c.b16 %v3549, %v3545
    %v3770 = vpack.c.b16 %v3550, %v3546
    %v3771 = vpack.c.b16 %v3555, %v3551
    %v3772 = vpack.c.b16 %v3556, %v3552
    %v3773 = vpack.c.b16 %v3557, %v3553
    %v3774 = vpack.c.b16 %v3558, %v3554
    %v3775 = vpack.c.b16 %v3563, %v3559
    %v3776 = vpack.c.b16 %v3564, %v3560
    %v3777 = vpack.c.b16 %v3565, %v3561
    %v3778 = vpack.c.b16 %v3566, %v3562
    %v3779 = vpack.c.b16 %v3571, %v3567
    %v3780 = vpack.c.b16 %v3572, %v3568
    %v3781 = vpack.c.b16 %v3573, %v3569
    %v3782 = vpack.c.b16 %v3574, %v3570
    %v3783 = vpack.c.b16 %v3579, %v3575
    %v3784 = vpack.c.b16 %v3580, %v3576
    %v3785 = vpack.c.b16 %v3581, %v3577
    %v3786 = vpack.c.b16 %v3582, %v3578
    %v3787 = vpack.c.b16 %v3587, %v3583
    %v3788 = vpack.c.b16 %v3588, %v3584
    %v3789 = vpack.c.b16 %v3589, %v3585
    %v3790 = vpack.c.b16 %v3590, %v3586
    %v3791 = vpack.c.b16 %v3595, %v3591
    %v3792 = vpack.c.b16 %v3596, %v3592
    %v3793 = vpack.c.b16 %v3597, %v3593
    %v3794 = vpack.c.b16 %v3598, %v3594
    %v3795 = vpack.c.b16 %v3603, %v3599
    %v3796 = vpack.c.b16 %v3604, %v3600
    %v3797 = vpack.c.b16 %v3605, %v3601
    %v3798 = vpack.c.b16 %v3606, %v3602
    %v3799 = vpack.c.b16 %v3611, %v3607
    %v3800 = vpack.c.b16 %v3612, %v3608
    %v3801 = vpack.c.b16 %v3613, %v3609
    %v3802 = vpack.c.b16 %v3614, %v3610
    %v3803 = vpack.c.b16 %v3619, %v3615
    %v3804 = vpack.c.b16 %v3620, %v3616
    %v3805 = vpack.c.b16 %v3621, %v3617
    %v3806 = vpack.c.b16 %v3622, %v3618
    %v3807 = vpack.c.b16 %v3627, %v3623
    %v3808 = vpack.c.b16 %v3628, %v3624
    %v3809 = vpack.c.b16 %v3629, %v3625
    %v3810 = vpack.c.b16 %v3630, %v3626
    %v3811 = vpack.c.b16 %v3635, %v3631
    %v3812 = vpack.c.b16 %v3636, %v3632
    %v3813 = vpack.c.b16 %v3637, %v3633
    %v3814 = vpack.c.b16 %v3638, %v3634
    %v3815 = vpack.c.b16 %v3643, %v3639
    %v3816 = vpack.c.b16 %v3644, %v3640
    %v3817 = vpack.c.b16 %v3645, %v3641
    %v3818 = vpack.c.b16 %v3646, %v3642
    %v3819 = vpack.c.b16 %v3651, %v3647
    %v3820 = vpack.c.b16 %v3652, %v3648
    %v3821 = vpack.c.b16 %v3653, %v3649
    %v3822 = vpack.c.b16 %v3654, %v3650
    %v3823 = vpack.c.b16 %v3659, %v3655
    %v3824 = vpack.c.b16 %v3660, %v3656
    %v3825 = vpack.c.b16 %v3661, %v3657
    %v3826 = vpack.c.b16 %v3662, %v3658
    %v3827 = vpack.c.b16 %v3667, %v3663
    %v3828 = vpack.c.b16 %v3668, %v3664
    %v3829 = vpack.c.b16 %v3669, %v3665
    %v3830 = vpack.c.b16 %v3670, %v3666
    %v3831 = vpack.c.b16 %v3675, %v3671
    %v3832 = vpack.c.b16 %v3676, %v3672
    %v3833 = vpack.c.b16 %v3677, %v3673
    %v3834 = vpack.c.b16 %v3678, %v3674
    %v3835 = vpack.c.b16 %v3683, %v3679
    %v3836 = vpack.c.b16 %v3684, %v3680
    %v3837 = vpack.c.b16 %v3685, %v3681
    %v3838 = vpack.c.b16 %v3686, %v3682
    %v3839 = vpack.c.b16 %v3691, %v3687
    %v3840 = vpack.c.b16 %v3692, %v3688
    %v3841 = vpack.c.b16 %v3693, %v3689
    %v3842 = vpack.c.b16 %v3694, %v3690
    %v3843 = vpack.c.b16 %v3699, %v3695
    %v3844 = vpack.c.b16 %v3700, %v3696
    %v3845 = vpack.c.b16 %v3701, %v3697
    %v3846 = vpack.c.b16 %v3702, %v3698
    %v3847 = vpack.c.b16 %v3707, %v3703
    %v3848 = vpack.c.b16 %v3708, %v3704
    %v3849 = vpack.c.b16 %v3709, %v3705
    %v3850 = vpack.c.b16 %v3710, %v3706
    %v3851 = vpack.c.b16 %v3715, %v3711
    %v3852 = vpack.c.b16 %v3716, %v3712
    %v3853 = vpack.c.b16 %v3717, %v3713
    %v3854 = vpack.c.b16 %v3718, %v3714
    %v3855 = vpack.c.b16 %v3723, %v3719
    %v3856 = vpack.c.b16 %v3724, %v3720
    %v3857 = vpack.c.b16 %v3725, %v3721
    %v3858 = vpack.c.b16 %v3726, %v3722
    %v3859 = vpack.c.b16 %v3731, %v3727
    %v3860 = vpack.c.b16 %v3732, %v3728
    %v3861 = vpack.c.b16 %v3733, %v3729
    %v3862 = vpack.c.b16 %v3734, %v3730
    %3991 = vmatprep.subr.bf16.mxu0 %v3736
    %3992 = vmatpush1.bf16.msra.mxu0 %v3735
    %3993 = vmatprep.subr.bf16.mxu0 %v3740
    %3994 = vmatpush1.bf16.msra.mxu0 %v3739
    %3995 = vmatprep.subr.bf16.mxu0 %v3744
    %3996 = vmatpush1.bf16.msra.mxu0 %v3743
    %3997 = vmatprep.subr.bf16.mxu0 %v3748
    %3998 = vmatpush1.bf16.msra.mxu0 %v3747
    %3999 = vmatprep.subr.bf16.mxu0 %v3752
    %4000 = vmatpush1.bf16.msra.mxu0 %v3751
    %4001 = vmatprep.subr.bf16.mxu0 %v3756
    %4002 = vmatpush1.bf16.msra.mxu0 %v3755
    %4003 = vmatprep.subr.bf16.mxu0 %v3760
    %4004 = vmatpush1.bf16.msra.mxu0 %v3759
    %4005 = vmatprep.subr.bf16.mxu0 %v3764
    %4006 = vmatpush1.bf16.msra.mxu0 %v3763
    %4007 = vmatprep.subr.bf16.mxu0 %v3768
    %4008 = vmatpush1.bf16.msra.mxu0 %v3767
    %4009 = vmatprep.subr.bf16.mxu0 %v3772
    %4010 = vmatpush1.bf16.msra.mxu0 %v3771
    %4011 = vmatprep.subr.bf16.mxu0 %v3776
    %4012 = vmatpush1.bf16.msra.mxu0 %v3775
    %4013 = vmatprep.subr.bf16.mxu0 %v3780
    %4014 = vmatpush1.bf16.msra.mxu0 %v3779
    %4015 = vmatprep.subr.bf16.mxu0 %v3784
    %4016 = vmatpush1.bf16.msra.mxu0 %v3783
    %4017 = vmatprep.subr.bf16.mxu0 %v3788
    %4018 = vmatpush1.bf16.msra.mxu0 %v3787
    %4019 = vmatprep.subr.bf16.mxu0 %v3792
    %4020 = vmatpush1.bf16.msra.mxu0 %v3791
    %4021 = vmatprep.subr.bf16.mxu0 %v3796
    %4022 = vmatpush1.bf16.msra.mxu0 %v3795
    %4023 = vmatprep.mubr.bf16.mxu0 %v3325
    %4024 = vmatmul.mubr.bf16.gmra.mrb[0].mxu0 %v3324
    %v4025 = vpop.f32.mrb[0].mxu0
    %v4026 = vadd.f32 %v3334, %v4025
    %v4027 = vpop.f32.mrb[0].mxu0
    %v4028 = vadd.f32 %v3338, %v4027
    %v4029 = vpop.f32.mrb[0].mxu0
    %v4030 = vpop.f32.mrb[0].mxu0
    %4031 = vdwg.mxu0
    %4032 = vmatprep.subr.bf16.mxu0 %v3800
    %4033 = vmatpush1.bf16.msra.mxu0 %v3799
    %4034 = vmatprep.subr.bf16.mxu0 %v3804
    %4035 = vmatpush1.bf16.msra.mxu0 %v3803
    %4036 = vmatprep.subr.bf16.mxu0 %v3808
    %4037 = vmatpush1.bf16.msra.mxu0 %v3807
    %4038 = vmatprep.subr.bf16.mxu0 %v3812
    %4039 = vmatpush1.bf16.msra.mxu0 %v3811
    %4040 = vmatprep.subr.bf16.mxu0 %v3816
    %4041 = vmatpush1.bf16.msra.mxu0 %v3815
    %4042 = vmatprep.subr.bf16.mxu0 %v3820
    %4043 = vmatpush1.bf16.msra.mxu0 %v3819
    %4044 = vmatprep.subr.bf16.mxu0 %v3824
    %4045 = vmatpush1.bf16.msra.mxu0 %v3823
    %4046 = vmatprep.subr.bf16.mxu0 %v3828
    %4047 = vmatpush1.bf16.msra.mxu0 %v3827
    %4048 = vmatprep.subr.bf16.mxu0 %v3832
    %4049 = vmatpush1.bf16.msra.mxu0 %v3831
    %4050 = vmatprep.subr.bf16.mxu0 %v3836
    %4051 = vmatpush1.bf16.msra.mxu0 %v3835
    %4052 = vmatprep.subr.bf16.mxu0 %v3840
    %4053 = vmatpush1.bf16.msra.mxu0 %v3839
    %4054 = vmatprep.subr.bf16.mxu0 %v3844
    %4055 = vmatpush1.bf16.msra.mxu0 %v3843
    %4056 = vmatprep.subr.bf16.mxu0 %v3848
    %4057 = vmatpush1.bf16.msra.mxu0 %v3847
    %4058 = vmatprep.subr.bf16.mxu0 %v3852
    %4059 = vmatpush1.bf16.msra.mxu0 %v3851
    %4060 = vmatprep.subr.bf16.mxu0 %v3856
    %4061 = vmatpush1.bf16.msra.mxu0 %v3855
    %4062 = vmatprep.subr.bf16.mxu0 %v3860
    %4063 = vmatpush1.bf16.msra.mxu0 %v3859
    %4064 = vmatprep.mubr.bf16.mxu0 %v3327
    %4065 = vmatmul.mubr.bf16.gmra.mrb[0].mxu0 %v3326
    %v4066 = vpop.f32.mrb[0].mxu0
    %v4067 = vadd.f32 %v4026, %v4066
    %v4068 = vpop.f32.mrb[0].mxu0
    %v4069 = vadd.f32 %v4028, %v4068
    %v4070 = vpop.f32.mrb[0].mxu0
    %v4071 = vpop.f32.mrb[0].mxu0
    %4072 = vdwg.mxu0
    %4073 = vmatprep.subr.bf16.mxu0 %v3738
    %4074 = vmatpush1.bf16.msra.mxu0 %v3737
    %4075 = vmatprep.subr.bf16.mxu0 %v3742
    %4076 = vmatpush1.bf16.msra.mxu0 %v3741
    %4077 = vmatprep.subr.bf16.mxu0 %v3746
    %4078 = vmatpush1.bf16.msra.mxu0 %v3745
    %4079 = vmatprep.subr.bf16.mxu0 %v3750
    %4080 = vmatpush1.bf16.msra.mxu0 %v3749
    %4081 = vmatprep.subr.bf16.mxu0 %v3754
    %4082 = vmatpush1.bf16.msra.mxu0 %v3753
    %4083 = vmatprep.subr.bf16.mxu0 %v3758
    %4084 = vmatpush1.bf16.msra.mxu0 %v3757
    %4085 = vmatprep.subr.bf16.mxu0 %v3762
    %4086 = vmatpush1.bf16.msra.mxu0 %v3761
    %4087 = vmatprep.subr.bf16.mxu0 %v3766
    %4088 = vmatpush1.bf16.msra.mxu0 %v3765
    %4089 = vmatprep.subr.bf16.mxu0 %v3770
    %4090 = vmatpush1.bf16.msra.mxu0 %v3769
    %4091 = vmatprep.subr.bf16.mxu0 %v3774
    %4092 = vmatpush1.bf16.msra.mxu0 %v3773
    %4093 = vmatprep.subr.bf16.mxu0 %v3778
    %4094 = vmatpush1.bf16.msra.mxu0 %v3777
    %4095 = vmatprep.subr.bf16.mxu0 %v3782
    %4096 = vmatpush1.bf16.msra.mxu0 %v3781
    %4097 = vmatprep.subr.bf16.mxu0 %v3786
    %4098 = vmatpush1.bf16.msra.mxu0 %v3785
    %4099 = vmatprep.subr.bf16.mxu0 %v3790
    %4100 = vmatpush1.bf16.msra.mxu0 %v3789
    %4101 = vmatprep.subr.bf16.mxu0 %v3794
    %4102 = vmatpush1.bf16.msra.mxu0 %v3793
    %4103 = vmatprep.subr.bf16.mxu0 %v3798
    %4104 = vmatpush1.bf16.msra.mxu0 %v3797
    %4105 = vmatprep.mubr.bf16.mxu0 %v3325
    %4106 = vmatmul.mubr.bf16.gmra.mrb[0].mxu0 %v3324
    %v4107 = vpop.f32.mrb[0].mxu0
    %v4108 = vadd.f32 %v3342, %v4107
    %v4109 = vpop.f32.mrb[0].mxu0
    %v4110 = vadd.f32 %v3346, %v4109
    %v4111 = vpop.f32.mrb[0].mxu0
    %v4112 = vpop.f32.mrb[0].mxu0
    %4113 = vdwg.mxu0
    %4114 = vmatprep.subr.bf16.mxu0 %v3802
    %4115 = vmatpush1.bf16.msra.mxu0 %v3801
    %4116 = vmatprep.subr.bf16.mxu0 %v3806
    %4117 = vmatpush1.bf16.msra.mxu0 %v3805
    %4118 = vmatprep.subr.bf16.mxu0 %v3810
    %4119 = vmatpush1.bf16.msra.mxu0 %v3809
    %4120 = vmatprep.subr.bf16.mxu0 %v3814
    %4121 = vmatpush1.bf16.msra.mxu0 %v3813
    %4122 = vmatprep.subr.bf16.mxu0 %v3818
    %4123 = vmatpush1.bf16.msra.mxu0 %v3817
    %4124 = vmatprep.subr.bf16.mxu0 %v3822
    %4125 = vmatpush1.bf16.msra.mxu0 %v3821
    %4126 = vmatprep.subr.bf16.mxu0 %v3826
    %4127 = vmatpush1.bf16.msra.mxu0 %v3825
    %4128 = vmatprep.subr.bf16.mxu0 %v3830
    %4129 = vmatpush1.bf16.msra.mxu0 %v3829
    %4130 = vmatprep.subr.bf16.mxu0 %v3834
    %4131 = vmatpush1.bf16.msra.mxu0 %v3833
    %4132 = vmatprep.subr.bf16.mxu0 %v3838
    %4133 = vmatpush1.bf16.msra.mxu0 %v3837
    %4134 = vmatprep.subr.bf16.mxu0 %v3842
    %4135 = vmatpush1.bf16.msra.mxu0 %v3841
    %4136 = vmatprep.subr.bf16.mxu0 %v3846
    %4137 = vmatpush1.bf16.msra.mxu0 %v3845
    %4138 = vmatprep.subr.bf16.mxu0 %v3850
    %4139 = vmatpush1.bf16.msra.mxu0 %v3849
    %4140 = vmatprep.subr.bf16.mxu0 %v3854
    %4141 = vmatpush1.bf16.msra.mxu0 %v3853
    %4142 = vmatprep.subr.bf16.mxu0 %v3858
    %4143 = vmatpush1.bf16.msra.mxu0 %v3857
    %4144 = vmatprep.subr.bf16.mxu0 %v3862
    %4145 = vmatpush1.bf16.msra.mxu0 %v3861
    %4146 = vmatprep.mubr.bf16.mxu0 %v3327
    %4147 = vmatmul.mubr.bf16.gmra.mrb[0].mxu0 %v3326
    %v4148 = vpop.f32.mrb[0].mxu0
    %v4149 = vadd.f32 %v4108, %v4148
    %v4150 = vpop.f32.mrb[0].mxu0
    %v4151 = vadd.f32 %v4110, %v4150
    %v4152 = vpop.f32.mrb[0].mxu0
    %v4153 = vpop.f32.mrb[0].mxu0
    %4154 = vdwg.mxu0
    %v4155 = vmax.f32 %v4067, 0.0
    %v4156 = vmax.f32 %v4069, 0.0
    %v4157 = vmax.f32 %v4149, 0.0
    %v4158 = vmax.f32 %v4151, 0.0
    %v4159 = vld [vmem:[#allocation13] sm:$0xff]
    %v4160 = vld [vmem:[#allocation13 + $0x8] sm:$0xff]
    %v4161 = vld [vmem:[#allocation13 + $0x10] sm:$0xff]
    %v4162 = vld [vmem:[#allocation13 + $0x18] sm:$0xff]
    %v4163 = vld [vmem:[#allocation13 + $0x20] sm:$0xff]
    %v4164 = vld [vmem:[#allocation13 + $0x28] sm:$0xff]
    %v4165 = vld [vmem:[#allocation13 + $0x30] sm:$0xff]
    %v4166 = vld [vmem:[#allocation13 + $0x38] sm:$0xff]
    %v4167 = vld [vmem:[#allocation13 + $0x40] sm:$0xff]
    %v4168 = vld [vmem:[#allocation13 + $0x48] sm:$0xff]
    %v4169 = vld [vmem:[#allocation13 + $0x50] sm:$0xff]
    %v4170 = vld [vmem:[#allocation13 + $0x58] sm:$0xff]
    %v4171 = vld [vmem:[#allocation13 + $0x60] sm:$0xff]
    %v4172 = vld [vmem:[#allocation13 + $0x68] sm:$0xff]
    %v4173 = vld [vmem:[#allocation13 + $0x70] sm:$0xff]
    %v4174 = vld [vmem:[#allocation13 + $0x78] sm:$0xff]
    %v4175 = vld [vmem:[#allocation13 + $0x80] sm:$0xff]
    %v4176 = vld [vmem:[#allocation13 + $0x88] sm:$0xff]
    %v4177 = vld [vmem:[#allocation13 + $0x90] sm:$0xff]
    %v4178 = vld [vmem:[#allocation13 + $0x98] sm:$0xff]
    %v4179 = vld [vmem:[#allocation13 + $0xa0] sm:$0xff]
    %v4180 = vld [vmem:[#allocation13 + $0xa8] sm:$0xff]
    %v4181 = vld [vmem:[#allocation13 + $0xb0] sm:$0xff]
    %v4182 = vld [vmem:[#allocation13 + $0xb8] sm:$0xff]
    %v4183 = vld [vmem:[#allocation13 + $0xc0] sm:$0xff]
    %v4184 = vld [vmem:[#allocation13 + $0xc8] sm:$0xff]
    %v4185 = vld [vmem:[#allocation13 + $0xd0] sm:$0xff]
    %v4186 = vld [vmem:[#allocation13 + $0xd8] sm:$0xff]
    %v4187 = vld [vmem:[#allocation13 + $0xe0] sm:$0xff]
    %v4188 = vld [vmem:[#allocation13 + $0xe8] sm:$0xff]
    %v4189 = vld [vmem:[#allocation13 + $0xf0] sm:$0xff]
    %v4190 = vld [vmem:[#allocation13 + $0xf8] sm:$0xff]
    %v4191 = vld [vmem:[#allocation13 + $0x100] sm:$0xff]
    %v4192 = vld [vmem:[#allocation13 + $0x108] sm:$0xff]
    %v4193 = vld [vmem:[#allocation13 + $0x110] sm:$0xff]
    %v4194 = vld [vmem:[#allocation13 + $0x118] sm:$0xff]
    %v4195 = vld [vmem:[#allocation13 + $0x120] sm:$0xff]
    %v4196 = vld [vmem:[#allocation13 + $0x128] sm:$0xff]
    %v4197 = vld [vmem:[#allocation13 + $0x130] sm:$0xff]
    %v4198 = vld [vmem:[#allocation13 + $0x138] sm:$0xff]
    %v4199 = vld [vmem:[#allocation13 + $0x140] sm:$0xff]
    %v4200 = vld [vmem:[#allocation13 + $0x148] sm:$0xff]
    %v4201 = vld [vmem:[#allocation13 + $0x150] sm:$0xff]
    %v4202 = vld [vmem:[#allocation13 + $0x158] sm:$0xff]
    %v4203 = vld [vmem:[#allocation13 + $0x160] sm:$0xff]
    %v4204 = vld [vmem:[#allocation13 + $0x168] sm:$0xff]
    %v4205 = vld [vmem:[#allocation13 + $0x170] sm:$0xff]
    %v4206 = vld [vmem:[#allocation13 + $0x178] sm:$0xff]
    %v4207 = vld [vmem:[#allocation13 + $0x180] sm:$0xff]
    %v4208 = vld [vmem:[#allocation13 + $0x188] sm:$0xff]
    %v4209 = vld [vmem:[#allocation13 + $0x190] sm:$0xff]
    %v4210 = vld [vmem:[#allocation13 + $0x198] sm:$0xff]
    %v4211 = vld [vmem:[#allocation13 + $0x1a0] sm:$0xff]
    %v4212 = vld [vmem:[#allocation13 + $0x1a8] sm:$0xff]
    %v4213 = vld [vmem:[#allocation13 + $0x1b0] sm:$0xff]
    %v4214 = vld [vmem:[#allocation13 + $0x1b8] sm:$0xff]
    %v4215 = vld [vmem:[#allocation13 + $0x1c0] sm:$0xff]
    %v4216 = vld [vmem:[#allocation13 + $0x1c8] sm:$0xff]
    %v4217 = vld [vmem:[#allocation13 + $0x1d0] sm:$0xff]
    %v4218 = vld [vmem:[#allocation13 + $0x1d8] sm:$0xff]
    %v4219 = vld [vmem:[#allocation13 + $0x1e0] sm:$0xff]
    %v4220 = vld [vmem:[#allocation13 + $0x1e8] sm:$0xff]
    %v4221 = vld [vmem:[#allocation13 + $0x1f0] sm:$0xff]
    %v4222 = vld [vmem:[#allocation13 + $0x1f8] sm:$0xff]
    %v4223 = vpack.c.bf16 %v4155, %v4155
    %v4224 = vpack.c.bf16 %v4156, %v4156
    %v4225 = vpack.c.bf16 %v4157, %v4157
    %v4226 = vpack.c.bf16 %v4158, %v4158
    %s4227 = scalar_lea.vmem [#allocation16], 32
    %v4228 = vld [vmem:[%s4227] ss:$8 sm:$0x3]
    %v4230 = vlaneseq
    %v4231 = vshrl.u32 %v4230, 7
    %v4232 = vsub.s32 0, %v4231
    %v4233 = vrot.slane %v4228, %v4232
    %v4234 = vlaneseq
    %v4235 = vshrl.u32 %v4234, 7
    %v4236 = vsub.s32 1, %v4235
    %v4237 = vrot.slane %v4228, %v4236
    %v4304 = vunpack.c.l.b16 %v4159
    %v4305 = vunpack.c.h.b16 %v4159
    %v4306 = vunpack.c.l.b16 %v4160
    %v4307 = vunpack.c.h.b16 %v4160
    %v4308 = vunpack.c.l.b16 %v4161
    %v4309 = vunpack.c.h.b16 %v4161
    %v4310 = vunpack.c.l.b16 %v4162
    %v4311 = vunpack.c.h.b16 %v4162
    %v4312 = vunpack.c.l.b16 %v4163
    %v4313 = vunpack.c.h.b16 %v4163
    %v4314 = vunpack.c.l.b16 %v4164
    %v4315 = vunpack.c.h.b16 %v4164
    %v4316 = vunpack.c.l.b16 %v4165
    %v4317 = vunpack.c.h.b16 %v4165
    %v4318 = vunpack.c.l.b16 %v4166
    %v4319 = vunpack.c.h.b16 %v4166
    %v4320 = vunpack.c.l.b16 %v4167
    %v4321 = vunpack.c.h.b16 %v4167
    %v4322 = vunpack.c.l.b16 %v4168
    %v4323 = vunpack.c.h.b16 %v4168
    %v4324 = vunpack.c.l.b16 %v4169
    %v4325 = vunpack.c.h.b16 %v4169
    %v4326 = vunpack.c.l.b16 %v4170
    %v4327 = vunpack.c.h.b16 %v4170
    %v4328 = vunpack.c.l.b16 %v4171
    %v4329 = vunpack.c.h.b16 %v4171
    %v4330 = vunpack.c.l.b16 %v4172
    %v4331 = vunpack.c.h.b16 %v4172
    %v4332 = vunpack.c.l.b16 %v4173
    %v4333 = vunpack.c.h.b16 %v4173
    %v4334 = vunpack.c.l.b16 %v4174
    %v4335 = vunpack.c.h.b16 %v4174
    %v4336 = vunpack.c.l.b16 %v4175
    %v4337 = vunpack.c.h.b16 %v4175
    %v4338 = vunpack.c.l.b16 %v4176
    %v4339 = vunpack.c.h.b16 %v4176
    %v4340 = vunpack.c.l.b16 %v4177
    %v4341 = vunpack.c.h.b16 %v4177
    %v4342 = vunpack.c.l.b16 %v4178
    %v4343 = vunpack.c.h.b16 %v4178
    %v4344 = vunpack.c.l.b16 %v4179
    %v4345 = vunpack.c.h.b16 %v4179
    %v4346 = vunpack.c.l.b16 %v4180
    %v4347 = vunpack.c.h.b16 %v4180
    %v4348 = vunpack.c.l.b16 %v4181
    %v4349 = vunpack.c.h.b16 %v4181
    %v4350 = vunpack.c.l.b16 %v4182
    %v4351 = vunpack.c.h.b16 %v4182
    %v4352 = vunpack.c.l.b16 %v4183
    %v4353 = vunpack.c.h.b16 %v4183
    %v4354 = vunpack.c.l.b16 %v4184
    %v4355 = vunpack.c.h.b16 %v4184
    %v4356 = vunpack.c.l.b16 %v4185
    %v4357 = vunpack.c.h.b16 %v4185
    %v4358 = vunpack.c.l.b16 %v4186
    %v4359 = vunpack.c.h.b16 %v4186
    %v4360 = vunpack.c.l.b16 %v4187
    %v4361 = vunpack.c.h.b16 %v4187
    %v4362 = vunpack.c.l.b16 %v4188
    %v4363 = vunpack.c.h.b16 %v4188
    %v4364 = vunpack.c.l.b16 %v4189
    %v4365 = vunpack.c.h.b16 %v4189
    %v4366 = vunpack.c.l.b16 %v4190
    %v4367 = vunpack.c.h.b16 %v4190
    %v4368 = vunpack.c.l.b16 %v4191
    %v4369 = vunpack.c.h.b16 %v4191
    %v4370 = vunpack.c.l.b16 %v4192
    %v4371 = vunpack.c.h.b16 %v4192
    %v4372 = vunpack.c.l.b16 %v4193
    %v4373 = vunpack.c.h.b16 %v4193
    %v4374 = vunpack.c.l.b16 %v4194
    %v4375 = vunpack.c.h.b16 %v4194
    %v4376 = vunpack.c.l.b16 %v4195
    %v4377 = vunpack.c.h.b16 %v4195
    %v4378 = vunpack.c.l.b16 %v4196
    %v4379 = vunpack.c.h.b16 %v4196
    %v4380 = vunpack.c.l.b16 %v4197
    %v4381 = vunpack.c.h.b16 %v4197
    %v4382 = vunpack.c.l.b16 %v4198
    %v4383 = vunpack.c.h.b16 %v4198
    %v4384 = vunpack.c.l.b16 %v4199
    %v4385 = vunpack.c.h.b16 %v4199
    %v4386 = vunpack.c.l.b16 %v4200
    %v4387 = vunpack.c.h.b16 %v4200
    %v4388 = vunpack.c.l.b16 %v4201
    %v4389 = vunpack.c.h.b16 %v4201
    %v4390 = vunpack.c.l.b16 %v4202
    %v4391 = vunpack.c.h.b16 %v4202
    %v4392 = vunpack.c.l.b16 %v4203
    %v4393 = vunpack.c.h.b16 %v4203
    %v4394 = vunpack.c.l.b16 %v4204
    %v4395 = vunpack.c.h.b16 %v4204
    %v4396 = vunpack.c.l.b16 %v4205
    %v4397 = vunpack.c.h.b16 %v4205
    %v4398 = vunpack.c.l.b16 %v4206
    %v4399 = vunpack.c.h.b16 %v4206
    %v4400 = vunpack.c.l.b16 %v4207
    %v4401 = vunpack.c.h.b16 %v4207
    %v4402 = vunpack.c.l.b16 %v4208
    %v4403 = vunpack.c.h.b16 %v4208
    %v4404 = vunpack.c.l.b16 %v4209
    %v4405 = vunpack.c.h.b16 %v4209
    %v4406 = vunpack.c.l.b16 %v4210
    %v4407 = vunpack.c.h.b16 %v4210
    %v4408 = vunpack.c.l.b16 %v4211
    %v4409 = vunpack.c.h.b16 %v4211
    %v4410 = vunpack.c.l.b16 %v4212
    %v4411 = vunpack.c.h.b16 %v4212
    %v4412 = vunpack.c.l.b16 %v4213
    %v4413 = vunpack.c.h.b16 %v4213
    %v4414 = vunpack.c.l.b16 %v4214
    %v4415 = vunpack.c.h.b16 %v4214
    %v4416 = vunpack.c.l.b16 %v4215
    %v4417 = vunpack.c.h.b16 %v4215
    %v4418 = vunpack.c.l.b16 %v4216
    %v4419 = vunpack.c.h.b16 %v4216
    %v4420 = vunpack.c.l.b16 %v4217
    %v4421 = vunpack.c.h.b16 %v4217
    %v4422 = vunpack.c.l.b16 %v4218
    %v4423 = vunpack.c.h.b16 %v4218
    %v4424 = vunpack.c.l.b16 %v4219
    %v4425 = vunpack.c.h.b16 %v4219
    %v4426 = vunpack.c.l.b16 %v4220
    %v4427 = vunpack.c.h.b16 %v4220
    %v4428 = vunpack.c.l.b16 %v4221
    %v4429 = vunpack.c.h.b16 %v4221
    %v4430 = vunpack.c.l.b16 %v4222
    %v4431 = vunpack.c.h.b16 %v4222
    %v4432 = vpack.c.b16 %v4306, %v4304
    %v4433 = vpack.c.b16 %v4307, %v4305
    %v4434 = vpack.c.b16 %v4310, %v4308
    %v4435 = vpack.c.b16 %v4311, %v4309
    %v4436 = vpack.c.b16 %v4314, %v4312
    %v4437 = vpack.c.b16 %v4315, %v4313
    %v4438 = vpack.c.b16 %v4318, %v4316
    %v4439 = vpack.c.b16 %v4319, %v4317
    %v4440 = vpack.c.b16 %v4322, %v4320
    %v4441 = vpack.c.b16 %v4323, %v4321
    %v4442 = vpack.c.b16 %v4326, %v4324
    %v4443 = vpack.c.b16 %v4327, %v4325
    %v4444 = vpack.c.b16 %v4330, %v4328
    %v4445 = vpack.c.b16 %v4331, %v4329
    %v4446 = vpack.c.b16 %v4334, %v4332
    %v4447 = vpack.c.b16 %v4335, %v4333
    %v4448 = vpack.c.b16 %v4338, %v4336
    %v4449 = vpack.c.b16 %v4339, %v4337
    %v4450 = vpack.c.b16 %v4342, %v4340
    %v4451 = vpack.c.b16 %v4343, %v4341
    %v4452 = vpack.c.b16 %v4346, %v4344
    %v4453 = vpack.c.b16 %v4347, %v4345
    %v4454 = vpack.c.b16 %v4350, %v4348
    %v4455 = vpack.c.b16 %v4351, %v4349
    %v4456 = vpack.c.b16 %v4354, %v4352
    %v4457 = vpack.c.b16 %v4355, %v4353
    %v4458 = vpack.c.b16 %v4358, %v4356
    %v4459 = vpack.c.b16 %v4359, %v4357
    %v4460 = vpack.c.b16 %v4362, %v4360
    %v4461 = vpack.c.b16 %v4363, %v4361
    %v4462 = vpack.c.b16 %v4366, %v4364
    %v4463 = vpack.c.b16 %v4367, %v4365
    %v4464 = vpack.c.b16 %v4370, %v4368
    %v4465 = vpack.c.b16 %v4371, %v4369
    %v4466 = vpack.c.b16 %v4374, %v4372
    %v4467 = vpack.c.b16 %v4375, %v4373
    %v4468 = vpack.c.b16 %v4378, %v4376
    %v4469 = vpack.c.b16 %v4379, %v4377
    %v4470 = vpack.c.b16 %v4382, %v4380
    %v4471 = vpack.c.b16 %v4383, %v4381
    %v4472 = vpack.c.b16 %v4386, %v4384
    %v4473 = vpack.c.b16 %v4387, %v4385
    %v4474 = vpack.c.b16 %v4390, %v4388
    %v4475 = vpack.c.b16 %v4391, %v4389
    %v4476 = vpack.c.b16 %v4394, %v4392
    %v4477 = vpack.c.b16 %v4395, %v4393
    %v4478 = vpack.c.b16 %v4398, %v4396
    %v4479 = vpack.c.b16 %v4399, %v4397
    %v4480 = vpack.c.b16 %v4402, %v4400
    %v4481 = vpack.c.b16 %v4403, %v4401
    %v4482 = vpack.c.b16 %v4406, %v4404
    %v4483 = vpack.c.b16 %v4407, %v4405
    %v4484 = vpack.c.b16 %v4410, %v4408
    %v4485 = vpack.c.b16 %v4411, %v4409
    %v4486 = vpack.c.b16 %v4414, %v4412
    %v4487 = vpack.c.b16 %v4415, %v4413
    %v4488 = vpack.c.b16 %v4418, %v4416
    %v4489 = vpack.c.b16 %v4419, %v4417
    %v4490 = vpack.c.b16 %v4422, %v4420
    %v4491 = vpack.c.b16 %v4423, %v4421
    %v4492 = vpack.c.b16 %v4426, %v4424
    %v4493 = vpack.c.b16 %v4427, %v4425
    %v4494 = vpack.c.b16 %v4430, %v4428
    %v4495 = vpack.c.b16 %v4431, %v4429
    %4560 = vmatprep.subr.bf16.mxu0 %v4433
    %4561 = vmatpush1.bf16.msra.mxu0 %v4432
    %4562 = vmatprep.subr.bf16.mxu0 %v4435
    %4563 = vmatpush1.bf16.msra.mxu0 %v4434
    %4564 = vmatprep.subr.bf16.mxu0 %v4437
    %4565 = vmatpush1.bf16.msra.mxu0 %v4436
    %4566 = vmatprep.subr.bf16.mxu0 %v4439
    %4567 = vmatpush1.bf16.msra.mxu0 %v4438
    %4568 = vmatprep.subr.bf16.mxu0 %v4441
    %4569 = vmatpush1.bf16.msra.mxu0 %v4440
    %4570 = vmatprep.subr.bf16.mxu0 %v4443
    %4571 = vmatpush1.bf16.msra.mxu0 %v4442
    %4572 = vmatprep.subr.bf16.mxu0 %v4445
    %4573 = vmatpush1.bf16.msra.mxu0 %v4444
    %4574 = vmatprep.subr.bf16.mxu0 %v4447
    %4575 = vmatpush1.bf16.msra.mxu0 %v4446
    %4576 = vmatprep.subr.bf16.mxu0 %v4449
    %4577 = vmatpush1.bf16.msra.mxu0 %v4448
    %4578 = vmatprep.subr.bf16.mxu0 %v4451
    %4579 = vmatpush1.bf16.msra.mxu0 %v4450
    %4580 = vmatprep.subr.bf16.mxu0 %v4453
    %4581 = vmatpush1.bf16.msra.mxu0 %v4452
    %4582 = vmatprep.subr.bf16.mxu0 %v4455
    %4583 = vmatpush1.bf16.msra.mxu0 %v4454
    %4584 = vmatprep.subr.bf16.mxu0 %v4457
    %4585 = vmatpush1.bf16.msra.mxu0 %v4456
    %4586 = vmatprep.subr.bf16.mxu0 %v4459
    %4587 = vmatpush1.bf16.msra.mxu0 %v4458
    %4588 = vmatprep.subr.bf16.mxu0 %v4461
    %4589 = vmatpush1.bf16.msra.mxu0 %v4460
    %4590 = vmatprep.subr.bf16.mxu0 %v4463
    %4591 = vmatpush1.bf16.msra.mxu0 %v4462
    %4592 = vmatprep.mubr.bf16.mxu0 %v4224
    %4593 = vmatmul.mubr.bf16.gmra.mrb[0].mxu0 %v4223
    %v4594 = vpop.f32.mrb[0].mxu0
    %v4595 = vadd.f32 %v4233, %v4594
    %v4596 = vpop.f32.mrb[0].mxu0
    %v4597 = vadd.f32 %v4237, %v4596
    %v4598 = vpop.f32.mrb[0].mxu0
    %v4599 = vpop.f32.mrb[0].mxu0
    %4600 = vdwg.mxu0
    %4601 = vmatprep.subr.bf16.mxu0 %v4465
    %4602 = vmatpush1.bf16.msra.mxu0 %v4464
    %4603 = vmatprep.subr.bf16.mxu0 %v4467
    %4604 = vmatpush1.bf16.msra.mxu0 %v4466
    %4605 = vmatprep.subr.bf16.mxu0 %v4469
    %4606 = vmatpush1.bf16.msra.mxu0 %v4468
    %4607 = vmatprep.subr.bf16.mxu0 %v4471
    %4608 = vmatpush1.bf16.msra.mxu0 %v4470
    %4609 = vmatprep.subr.bf16.mxu0 %v4473
    %4610 = vmatpush1.bf16.msra.mxu0 %v4472
    %4611 = vmatprep.subr.bf16.mxu0 %v4475
    %4612 = vmatpush1.bf16.msra.mxu0 %v4474
    %4613 = vmatprep.subr.bf16.mxu0 %v4477
    %4614 = vmatpush1.bf16.msra.mxu0 %v4476
    %4615 = vmatprep.subr.bf16.mxu0 %v4479
    %4616 = vmatpush1.bf16.msra.mxu0 %v4478
    %4617 = vmatprep.subr.bf16.mxu0 %v4481
    %4618 = vmatpush1.bf16.msra.mxu0 %v4480
    %4619 = vmatprep.subr.bf16.mxu0 %v4483
    %4620 = vmatpush1.bf16.msra.mxu0 %v4482
    %4621 = vmatprep.subr.bf16.mxu0 %v4485
    %4622 = vmatpush1.bf16.msra.mxu0 %v4484
    %4623 = vmatprep.subr.bf16.mxu0 %v4487
    %4624 = vmatpush1.bf16.msra.mxu0 %v4486
    %4625 = vmatprep.subr.bf16.mxu0 %v4489
    %4626 = vmatpush1.bf16.msra.mxu0 %v4488
    %4627 = vmatprep.subr.bf16.mxu0 %v4491
    %4628 = vmatpush1.bf16.msra.mxu0 %v4490
    %4629 = vmatprep.subr.bf16.mxu0 %v4493
    %4630 = vmatpush1.bf16.msra.mxu0 %v4492
    %4631 = vmatprep.subr.bf16.mxu0 %v4495
    %4632 = vmatpush1.bf16.msra.mxu0 %v4494
    %4633 = vmatprep.mubr.bf16.mxu0 %v4226
    %4634 = vmatmul.mubr.bf16.gmra.mrb[0].mxu0 %v4225
    %v4635 = vpop.f32.mrb[0].mxu0
    %v4636 = vadd.f32 %v4595, %v4635
    %v4637 = vpop.f32.mrb[0].mxu0
    %v4638 = vadd.f32 %v4597, %v4637
    %v4639 = vpop.f32.mrb[0].mxu0
    %v4640 = vpop.f32.mrb[0].mxu0
    %4641 = vdwg.mxu0
    %v4642 = vmax.f32 %v4636, 0.0
    %v4643 = vmax.f32 %v4638, 0.0
    %v4644 = vld [vmem:[#allocation14] sm:$0xf]
    %v4645 = vld [vmem:[#allocation14 + $0x4] sm:$0xf]
    %v4646 = vld [vmem:[#allocation14 + $0x8] sm:$0xf]
    %v4647 = vld [vmem:[#allocation14 + $0xc] sm:$0xf]
    %v4648 = vld [vmem:[#allocation14 + $0x10] sm:$0xf]
    %v4649 = vld [vmem:[#allocation14 + $0x14] sm:$0xf]
    %v4650 = vld [vmem:[#allocation14 + $0x18] sm:$0xf]
    %v4651 = vld [vmem:[#allocation14 + $0x1c] sm:$0xf]
    %v4652 = vld [vmem:[#allocation14 + $0x20] sm:$0xf]
    %v4653 = vld [vmem:[#allocation14 + $0x24] sm:$0xf]
    %v4654 = vld [vmem:[#allocation14 + $0x28] sm:$0xf]
    %v4655 = vld [vmem:[#allocation14 + $0x2c] sm:$0xf]
    %v4656 = vld [vmem:[#allocation14 + $0x30] sm:$0xf]
    %v4657 = vld [vmem:[#allocation14 + $0x34] sm:$0xf]
    %v4658 = vld [vmem:[#allocation14 + $0x38] sm:$0xf]
    %v4659 = vld [vmem:[#allocation14 + $0x3c] sm:$0xf]
    %v4660 = vld [vmem:[#allocation14 + $0x40] sm:$0xf]
    %v4661 = vld [vmem:[#allocation14 + $0x44] sm:$0xf]
    %v4662 = vld [vmem:[#allocation14 + $0x48] sm:$0xf]
    %v4663 = vld [vmem:[#allocation14 + $0x4c] sm:$0xf]
    %v4664 = vld [vmem:[#allocation14 + $0x50] sm:$0xf]
    %v4665 = vld [vmem:[#allocation14 + $0x54] sm:$0xf]
    %v4666 = vld [vmem:[#allocation14 + $0x58] sm:$0xf]
    %v4667 = vld [vmem:[#allocation14 + $0x5c] sm:$0xf]
    %v4668 = vld [vmem:[#allocation14 + $0x60] sm:$0xf]
    %v4669 = vld [vmem:[#allocation14 + $0x64] sm:$0xf]
    %v4670 = vld [vmem:[#allocation14 + $0x68] sm:$0xf]
    %v4671 = vld [vmem:[#allocation14 + $0x6c] sm:$0xf]
    %v4672 = vld [vmem:[#allocation14 + $0x70] sm:$0xf]
    %v4673 = vld [vmem:[#allocation14 + $0x74] sm:$0xf]
    %v4674 = vld [vmem:[#allocation14 + $0x78] sm:$0xf]
    %v4675 = vld [vmem:[#allocation14 + $0x7c] sm:$0xf]
    %v4676 = vpack.c.bf16 %v4642, %v4642
    %v4677 = vpack.c.bf16 %v4643, %v4643
    %v4678 = vld [vmem:[#allocation16 + $0x21] ss:$0 sm:$0xff]
    %v4711 = vunpack.c.l.b16 %v4644
    %v4712 = vunpack.c.l.b16 %v4645
    %v4713 = vunpack.c.l.b16 %v4646
    %v4714 = vunpack.c.l.b16 %v4647
    %v4715 = vunpack.c.l.b16 %v4648
    %v4716 = vunpack.c.l.b16 %v4649
    %v4717 = vunpack.c.l.b16 %v4650
    %v4718 = vunpack.c.l.b16 %v4651
    %v4719 = vunpack.c.l.b16 %v4652
    %v4720 = vunpack.c.l.b16 %v4653
    %v4721 = vunpack.c.l.b16 %v4654
    %v4722 = vunpack.c.l.b16 %v4655
    %v4723 = vunpack.c.l.b16 %v4656
    %v4724 = vunpack.c.l.b16 %v4657
    %v4725 = vunpack.c.l.b16 %v4658
    %v4726 = vunpack.c.l.b16 %v4659
    %v4727 = vunpack.c.l.b16 %v4660
    %v4728 = vunpack.c.l.b16 %v4661
    %v4729 = vunpack.c.l.b16 %v4662
    %v4730 = vunpack.c.l.b16 %v4663
    %v4731 = vunpack.c.l.b16 %v4664
    %v4732 = vunpack.c.l.b16 %v4665
    %v4733 = vunpack.c.l.b16 %v4666
    %v4734 = vunpack.c.l.b16 %v4667
    %v4735 = vunpack.c.l.b16 %v4668
    %v4736 = vunpack.c.l.b16 %v4669
    %v4737 = vunpack.c.l.b16 %v4670
    %v4738 = vunpack.c.l.b16 %v4671
    %v4739 = vunpack.c.l.b16 %v4672
    %v4740 = vunpack.c.l.b16 %v4673
    %v4741 = vunpack.c.l.b16 %v4674
    %v4742 = vunpack.c.l.b16 %v4675
    %v4743 = vpack.c.b16 %v4712, %v4711
    %v4744 = vpack.c.b16 %v4714, %v4713
    %v4745 = vpack.c.b16 %v4716, %v4715
    %v4746 = vpack.c.b16 %v4718, %v4717
    %v4747 = vpack.c.b16 %v4720, %v4719
    %v4748 = vpack.c.b16 %v4722, %v4721
    %v4749 = vpack.c.b16 %v4724, %v4723
    %v4750 = vpack.c.b16 %v4726, %v4725
    %v4751 = vpack.c.b16 %v4728, %v4727
    %v4752 = vpack.c.b16 %v4730, %v4729
    %v4753 = vpack.c.b16 %v4732, %v4731
    %v4754 = vpack.c.b16 %v4734, %v4733
    %v4755 = vpack.c.b16 %v4736, %v4735
    %v4756 = vpack.c.b16 %v4738, %v4737
    %v4757 = vpack.c.b16 %v4740, %v4739
    %v4758 = vpack.c.b16 %v4742, %v4741
    %4775 = vmatprep.subr.bf16.mxu0 0
    %4776 = vmatpush1.bf16.msra.mxu0 %v4743
    %4777 = vmatprep.subr.bf16.mxu0 0
    %4778 = vmatpush1.bf16.msra.mxu0 %v4744
    %4779 = vmatprep.subr.bf16.mxu0 0
    %4780 = vmatpush1.bf16.msra.mxu0 %v4745
    %4781 = vmatprep.subr.bf16.mxu0 0
    %4782 = vmatpush1.bf16.msra.mxu0 %v4746
    %4783 = vmatprep.subr.bf16.mxu0 0
    %4784 = vmatpush1.bf16.msra.mxu0 %v4747
    %4785 = vmatprep.subr.bf16.mxu0 0
    %4786 = vmatpush1.bf16.msra.mxu0 %v4748
    %4787 = vmatprep.subr.bf16.mxu0 0
    %4788 = vmatpush1.bf16.msra.mxu0 %v4749
    %4789 = vmatprep.subr.bf16.mxu0 0
    %4790 = vmatpush1.bf16.msra.mxu0 %v4750
    %4791 = vmatprep.subr.bf16.mxu0 0
    %4792 = vmatpush1.bf16.msra.mxu0 %v4751
    %4793 = vmatprep.subr.bf16.mxu0 0
    %4794 = vmatpush1.bf16.msra.mxu0 %v4752
    %4795 = vmatprep.subr.bf16.mxu0 0
    %4796 = vmatpush1.bf16.msra.mxu0 %v4753
    %4797 = vmatprep.subr.bf16.mxu0 0
    %4798 = vmatpush1.bf16.msra.mxu0 %v4754
    %4799 = vmatprep.subr.bf16.mxu0 0
    %4800 = vmatpush1.bf16.msra.mxu0 %v4755
    %4801 = vmatprep.subr.bf16.mxu0 0
    %4802 = vmatpush1.bf16.msra.mxu0 %v4756
    %4803 = vmatprep.subr.bf16.mxu0 0
    %4804 = vmatpush1.bf16.msra.mxu0 %v4757
    %4805 = vmatprep.subr.bf16.mxu0 0
    %4806 = vmatpush1.bf16.msra.mxu0 %v4758
    %4807 = vmatprep.mubr.bf16.mxu0 %v4677
    %4808 = vmatmul.mubr.bf16.gmra.mrb[0].mxu0 %v4676
    %v4809 = vpop.f32.mrb[0].mxu0
    %v4810 = vadd.f32 %v4678, %v4809
    %v4811 = vpop.f32.mrb[0].mxu0
    %v4812 = vpop.f32.mrb[0].mxu0
    %v4813 = vpop.f32.mrb[0].mxu0
    %4814 = vdwg.mxu0
    %v4815 = vxor.u32 %v4810, 2147483648
    %v4816 = vmul.f32 %v4815, 1.442695
    %v4817 = vpow.pop %v4816
    %v4818 = vadd.f32 %v4817, 1.0
    %v4819 = vrcp.pop %v4818
    %v4820 = vmul.f32 1.0, %v4819
    %4821 = vst [vmem:[#allocation17] sm:$0xff] %v4820
    // Predicated region
    $region74: #{tpu_custom_call.1} parent=1 // pred_check
      _
    $region75: #{tpu_custom_call.1} parent=1 // pred_check_branch
      %4823 = sbr.rel (0) target = $region77
    $region76: #{tpu_custom_call.1} parent=1 // pred_region
      %s4825 = ssub.s32 128, 128
      %4826 = vsyncadd [#allocation4], %s4825
      %s4828 = sshll.u32 [#allocation17], 4
      %s4829 = int_to_ptr.vmem [resolvable:$true] %s4828
      %4831 = dma.vmem_to_hbm [thread:$0]  %s4829, 128, %s9, [#allocation4]
    $region77: #{tpu_custom_call.1} parent=1 // pred_fallthru
      _
    // Predicated region
    $region78: #{tpu_custom_call.1} parent=1 // pred_check
      _
    $region79: #{tpu_custom_call.1} parent=1 // pred_check_branch
      %4833 = sbr.rel (0) target = $region81
    $region80: #{tpu_custom_call.1} parent=1 // pred_region
      %4834 = dma.done [#allocation4], 128
    $region81: #{tpu_custom_call.1} parent=1 // pred_fallthru
      _
    %4835 = vsyncpa [#allocation3], 1
    %4836 = vsyncpa [#allocation6], 1
    %4837 = vsyncpa [#allocation9], 1
    %4838 = vsyncpa [#allocation12], 1
    %4839 = vsyncpa [#allocation15], 1
    %4840 = vsyncpa [#allocation4], 1

</llo_original>
